<compile_context>
chip_gen: v7x
topology: tpu7x:2x2x1
jax: 0.10.0
libtpu: 0.0.40
codegen_flags: <defaults>
</compile_context>

<pallas_src>
import math
import numpy as np

import jax
import jax.numpy as jnp
from jax import lax
from jax.experimental import pallas as pl
from jax.experimental.pallas import tpu as pltpu

# ----------------------------- config (small, BERT-like) -----------------------------
HIDDEN = 32
N_HEADS = 4
HEAD_DIM = HIDDEN // N_HEADS
N_LAYERS = 2
INTERMEDIATE = 64
VOCAB = 50
MAX_POS = 64
TYPE_VOCAB = 2
N_OP = 4
N_DOMAIN = 5
LN_EPS = 1e-12

BATCH = 2
SEQ = 16
N_SLOTS = 3                      # number of state positions (J)

ATTN_SCALE = 1.0 / math.sqrt(HEAD_DIM)
LANES = 128
OUT_ROWS = BATCH * N_SLOTS + BATCH      # state rows + CLS rows

assert HIDDEN % N_HEADS == 0
assert 3 * HIDDEN <= LANES and INTERMEDIATE <= LANES
assert 2 * HIDDEN <= LANES               # output slab: [state|pooled , scores , pad]
assert N_OP <= HIDDEN
assert OUT_ROWS <= BATCH * SEQ           # gather targets fit in one int column


# ----------------------------- weight-slab layout -----------------------------
def _align8(n):
    return ((n + 7) // 8) * 8


def _build_layout():
    layout = {}
    row = 0

    def add(name, nrows, ncols):
        nonlocal row
        layout[name] = (row, nrows, ncols)
        row += _align8(nrows)

    # contiguous embedding superblock: [word | pos | type] (zero-padded between sections)
    add("word_emb", VOCAB, HIDDEN)
    add("pos_emb", SEQ, HIDDEN)
    add("type_emb", TYPE_VOCAB, HIDDEN)
    emb_rows = row

    add("emb_g", 1, HIDDEN)
    add("emb_b", 1, HIDDEN)
    for l in range(N_LAYERS):
        add(f"qkv_w{l}", HIDDEN, 3 * HIDDEN)
        add(f"qkv_b{l}", 1, 3 * HIDDEN)
        add(f"o_w{l}", HIDDEN, HIDDEN)
        add(f"o_b{l}", 1, HIDDEN)
        add(f"ln1_g{l}", 1, HIDDEN)
        add(f"ln1_b{l}", 1, HIDDEN)
        add(f"i_w{l}", HIDDEN, INTERMEDIATE)
        add(f"i_b{l}", 1, INTERMEDIATE)
        add(f"fo_w{l}", INTERMEDIATE, HIDDEN)
        add(f"fo_b{l}", 1, HIDDEN)
        add(f"ln2_g{l}", 1, HIDDEN)
        add(f"ln2_b{l}", 1, HIDDEN)
    add("pool_w", HIDDEN, HIDDEN)
    add("pool_b", 1, HIDDEN)
    add("cls_w", HIDDEN, N_OP)
    add("cls_b", 1, N_OP)
    return layout, row, emb_rows


LAYOUT, TOTAL_ROWS, EMB_ROWS = _build_layout()
WORD_OFF = LAYOUT["word_emb"][0]
POS_OFF = LAYOUT["pos_emb"][0]
TYPE_OFF = LAYOUT["type_emb"][0]


def _w(w_ref, name, width=None):
    """Static (zero-cost) carve-out of one parameter from the packed weight slab."""
    r0, nrows, ncols = LAYOUT[name]
    c = ncols if width is None else width      # reading wider picks up zero padding (e.g. cls_w)
    return w_ref[r0:r0 + nrows, 0:c]


# ----------------------------- fused encoder kernel -----------------------------
def _layernorm(x, g, b):
    mu = jnp.mean(x, axis=-1, keepdims=True)
    var = jnp.mean(jnp.square(x - mu), axis=-1, keepdims=True)
    return (x - mu) * lax.rsqrt(var + LN_EPS) * g + b


def _gelu(x):
    # erf-based GELU (matches PyTorch BERT reference)
    return 0.5 * x * (1.0 + lax.erf(x * 0.7071067811865475))


def encoder_kernel(ints_ref, amask_ref, w_ref, out_ref):
    B, S, H, nH, dh = BATCH, SEQ, HIDDEN, N_HEADS, HEAD_DIM
    BS, BJ = B * S, B * N_SLOTS
    f32 = jnp.float32

    ints = ints_ref[...]                                   # [BS, 4] int32
    word_id = ints[:, 0:1]
    type_id = ints[:, 1:2]
    tgt_id = ints[0:OUT_ROWS, 2:3]                          # flat gather targets (state + CLS)
    pos_id = ints[:, 3:4]

    # ---- fused embedding lookup: one one-hot selection matmul over [word|pos|type] block ----
    col = lax.broadcasted_iota(jnp.int32, (BS, EMB_ROWS), 1)
    sel = (jnp.where(col == (WORD_OFF + word_id), 1.0, 0.0)
           + jnp.where(col == (POS_OFF + pos_id), 1.0, 0.0)
           + jnp.where(col == (TYPE_OFF + type_id), 1.0, 0.0)).astype(f32)
    emb_tbl = w_ref[0:EMB_ROWS, 0:H]                        # [EMB_ROWS, H]
    x = jnp.dot(sel, emb_tbl, preferred_element_type=f32)   # [BS, H]
    x = _layernorm(x, _w(w_ref, "emb_g"), _w(w_ref, "emb_b"))

    # additive attention mask broadcast once to [B, S(q), S(k)]
    am = amask_ref[...]                                     # [B, S]
    am_bqk = jnp.broadcast_to(am[:, None, :], (B, S, S))

    # constant per-head lane masks (hoisted out of all loops)
    lane = lax.broadcasted_iota(jnp.int32, (1, 1, H), 2)
    head_masks = [
        jnp.where(jnp.logical_and(lane >= h * dh, lane < (h + 1) * dh), 1.0, 0.0).astype(f32)
        for h in range(nH)
    ]

    # ---- transformer layers (statically unrolled; all weights resident in VMEM) ----
    for l in range(N_LAYERS):
        qkv = (jnp.dot(x, _w(w_ref, f"qkv_w{l}"), preferred_element_type=f32)
               + _w(w_ref, f"qkv_b{l}"))                    # [BS, 3H]
        q3 = qkv[:, 0:H].reshape(B, S, H)
        k3 = qkv[:, H:2 * H].reshape(B, S, H)
        v3 = qkv[:, 2 * H:3 * H].reshape(B, S, H)

        ctx = jnp.zeros((B, S, H), f32)
        for hm in head_masks:
            # masking q to one head's lanes makes the full-H contraction equal the per-head score
            s = jnp.einsum('bqd,bkd->bqk', q3 * hm, k3,
                           preferred_element_type=f32) * ATTN_SCALE
            s = s + am_bqk
            s = s - jnp.max(s, axis=-1, keepdims=True)
            p = jnp.exp(s)
            p = p * pl.reciprocal(jnp.sum(p, axis=-1, keepdims=True), approx=False)
            ctx = ctx + jnp.einsum('bqk,bkd->bqd', p, v3,
                                   preferred_element_type=f32) * hm

        attn = (jnp.dot(ctx.reshape(BS, H), _w(w_ref, f"o_w{l}"),
                        preferred_element_type=f32) + _w(w_ref, f"o_b{l}"))
        x = _layernorm(attn + x, _w(w_ref, f"ln1_g{l}"), _w(w_ref, f"ln1_b{l}"))

        inter = _gelu(jnp.dot(x, _w(w_ref, f"i_w{l}"),
                              preferred_element_type=f32) + _w(w_ref, f"i_b{l}"))
        ffn = (jnp.dot(inter, _w(w_ref, f"fo_w{l}"),
                       preferred_element_type=f32) + _w(w_ref, f"fo_b{l}"))
        x = _layernorm(ffn + x, _w(w_ref, f"ln2_g{l}"), _w(w_ref, f"ln2_b{l}"))

    # ---- state-position + CLS gather as one one-hot matmul (MXU is idle -> free) ----
    gcol = lax.broadcasted_iota(jnp.int32, (OUT_ROWS, BS), 1)
    onehot = jnp.where(gcol == tgt_id, 1.0, 0.0).astype(f32)        # [OUT_ROWS, BS]
    gathered = jnp.dot(onehot, x, preferred_element_type=f32)       # [OUT_ROWS, H]

    # BERT pooler (meaningful on the CLS rows) and action classifier (on the state rows)
    pooled = jnp.tanh(jnp.dot(gathered, _w(w_ref, "pool_w"),
                              preferred_element_type=f32) + _w(w_ref, "pool_b"))
    # TODO(synk): nn.Dropout is identity in eval mode; no stochastic dropout implemented.
    scores = (jnp.dot(gathered, _w(w_ref, "cls_w", width=H),       # zero-padded to H lanes
                      preferred_element_type=f32) + _w(w_ref, "cls_b", width=H))

    # assemble one lane-dense [OUT_ROWS, 128] output slab and store it unmasked, once
    rows = lax.broadcasted_iota(jnp.int32, (OUT_ROWS, H), 0)
    left = jnp.where(rows < BJ, gathered, pooled)                   # state rows | pooled rows
    pad = jnp.zeros((OUT_ROWS, LANES - 2 * HIDDEN), f32)
    out_ref[...] = jnp.concatenate([left, scores, pad], axis=1)


_fused_encoder = pl.pallas_call(
    encoder_kernel,
    out_shape=jax.ShapeDtypeStruct((OUT_ROWS, LANES), jnp.float32),
    in_specs=[pl.BlockSpec(memory_space=pltpu.MemorySpace.VMEM)] * 3,
    out_specs=pl.BlockSpec(memory_space=pltpu.MemorySpace.VMEM),
)


# ----------------------------- parameter init & packing -----------------------------
def init_params(key):
    keys = iter(jax.random.split(key, 256))
    std = 0.02

    def w(shape):
        return (std * jax.random.normal(next(keys), shape)).astype(jnp.float32)

    def z(shape):
        return jnp.zeros(shape, jnp.float32)

    def ones(shape):
        return jnp.ones(shape, jnp.float32)

    params = {
        "word_emb": w((VOCAB, HIDDEN)),
        "pos_emb": w((MAX_POS, HIDDEN)),
        "type_emb": w((TYPE_VOCAB, HIDDEN)),
        "emb_ln_g": ones((HIDDEN,)), "emb_ln_b": z((HIDDEN,)),
        "pool_w": w((HIDDEN, HIDDEN)), "pool_b": z((HIDDEN,)),
        "cls_w": w((HIDDEN, N_OP)), "cls_b": z((N_OP,)),
        "layers": [],
    }
    for _ in range(N_LAYERS):
        params["layers"].append({
            "q_w": w((HIDDEN, HIDDEN)), "q_b": z((HIDDEN,)),
            "k_w": w((HIDDEN, HIDDEN)), "k_b": z((HIDDEN,)),
            "v_w": w((HIDDEN, HIDDEN)), "v_b": z((HIDDEN,)),
            "o_w": w((HIDDEN, HIDDEN)), "o_b": z((HIDDEN,)),
            "ln1_g": ones((HIDDEN,)), "ln1_b": z((HIDDEN,)),
            "i_w": w((HIDDEN, INTERMEDIATE)), "i_b": z((INTERMEDIATE,)),
            "fo_w": w((INTERMEDIATE, HIDDEN)), "fo_b": z((HIDDEN,)),
            "ln2_g": ones((HIDDEN,)), "ln2_b": z((HIDDEN,)),
        })
    return params


def pack_params(params):
    """Pack every f32 weight into ONE lane-dense [TOTAL_ROWS, 128] slab (8-row-aligned blocks)."""
    slab = np.zeros((TOTAL_ROWS, LANES), np.float32)

    def put(name, arr):
        r0, nrows, ncols = LAYOUT[name]
        slab[r0:r0 + nrows, 0:ncols] = np.asarray(arr, np.float32).reshape(nrows, ncols)

    put("word_emb", params["word_emb"])
    put("pos_emb", params["pos_emb"][:SEQ])
    put("type_emb", params["type_emb"])
    put("emb_g", params["emb_ln_g"])
    put("emb_b", params["emb_ln_b"])
    for l, L in enumerate(params["layers"]):
        put(f"qkv_w{l}", np.concatenate([np.asarray(L["q_w"]), np.asarray(L["k_w"]),
                                         np.asarray(L["v_w"])], axis=1))
        put(f"qkv_b{l}", np.concatenate([np.asarray(L["q_b"]), np.asarray(L["k_b"]),
                                         np.asarray(L["v_b"])]))
        put(f"o_w{l}", L["o_w"]); put(f"o_b{l}", L["o_b"])
        put(f"ln1_g{l}", L["ln1_g"]); put(f"ln1_b{l}", L["ln1_b"])
        put(f"i_w{l}", L["i_w"]); put(f"i_b{l}", L["i_b"])
        put(f"fo_w{l}", L["fo_w"]); put(f"fo_b{l}", L["fo_b"])
        put(f"ln2_g{l}", L["ln2_g"]); put(f"ln2_b{l}", L["ln2_b"])
    put("pool_w", params["pool_w"]); put("pool_b", params["pool_b"])
    put("cls_w", params["cls_w"]); put("cls_b", params["cls_b"])
    return jnp.asarray(slab)


# ----------------------------- forward pass -----------------------------
def encoder_forward(weight_slab, input_ids, token_type_ids, state_positions, attention_mask):
    B, S = input_ids.shape
    J = state_positions.shape[1]
    BS = B * S
    out_rows = B * J + B

    # pack all integer side-inputs into one [BS, 4] int32 array
    word = input_ids.reshape(BS).astype(jnp.int32)
    ttype = token_type_ids.reshape(BS).astype(jnp.int32)
    pos = jnp.arange(BS, dtype=jnp.int32) % S
    targets = jnp.concatenate([
        (jnp.arange(B, dtype=jnp.int32)[:, None] * S
         + state_positions.astype(jnp.int32)).reshape(B * J),
        jnp.arange(B, dtype=jnp.int32) * S,                 # CLS rows for the pooler
    ], axis=0)
    tcol = jnp.zeros((BS,), jnp.int32).at[:out_rows].set(targets)
    ints = jnp.stack([word, ttype, tcol, pos], axis=1)      # [BS, 4]

    add_mask = (1.0 - attention_mask.astype(jnp.float32)) * -10000.0   # [B, S]

    out = _fused_encoder(ints, add_mask, weight_slab)       # [out_rows, 128]

    state_output = out[0:B * J, 0:HIDDEN].reshape(B, J, HIDDEN)
    state_scores = out[0:B * J, HIDDEN:HIDDEN + N_OP].reshape(B, J, N_OP)
    pooled = out[B * J:out_rows, 0:HIDDEN]                  # [B, H]
    domain_scores = jnp.zeros((1,), jnp.float32)            # exclude_domain=True branch
    return domain_scores, state_scores, state_output, pooled[None, :, :]


# ----------------------------- main -----------------------------
if __name__ == "__main__":
    key = jax.random.PRNGKey(0)
    pkey, k1, k2, k3 = jax.random.split(key, 4)

    params = init_params(pkey)
    weight_slab = pack_params(params)

    input_ids = jax.random.randint(k1, (BATCH, SEQ), 0, VOCAB, dtype=jnp.int32)
    token_type_ids = jax.random.randint(k2, (BATCH, SEQ), 0, TYPE_VOCAB, dtype=jnp.int32)
    state_positions = jax.random.randint(k3, (BATCH, N_SLOTS), 0, SEQ, dtype=jnp.int32)
    attention_mask = jnp.ones((BATCH, SEQ), jnp.int32)

    fwd = jax.jit(encoder_forward)
    domain_scores, state_scores, state_output, pooled = fwd(
        weight_slab, input_ids, token_type_ids, state_positions, attention_mask)

    jax.block_until_ready((domain_scores, state_scores, state_output, pooled))

    assert domain_scores.shape == (1,)
    assert state_scores.shape == (BATCH, N_SLOTS, N_OP)
    assert state_output.shape == (BATCH, N_SLOTS, HIDDEN)
    assert pooled.shape == (1, BATCH, HIDDEN)
    print("KERNEL_OK")
</pallas_src>

<mosaic_0001>
module attributes {stable_mosaic.version = 11 : i64} {
  func.func @encoder_kernel(%arg0: memref<32x4xi32, #tpu.memory_space<vmem>>, %arg1: memref<2x16xf32, #tpu.memory_space<vmem>>, %arg2: memref<624x128xf32, #tpu.memory_space<vmem>>, %arg3: memref<8x128xf32, #tpu.memory_space<vmem>>) attributes {dimension_semantics = [], scalar_prefetch = 0 : i64, scratch_operands = 0 : i64, tpu.core_type = #tpu.core_type<tc>} {
    %c0 = arith.constant 0 : index
    %c0_0 = arith.constant 0 : index
    %0 = vector.load %arg0[%c0, %c0_0] : memref<32x4xi32, #tpu.memory_space<vmem>>, vector<32x4xi32>
    %1 = vector.extract_strided_slice %0 {offsets = [0, 0], sizes = [32, 1], strides = [1, 1]} : vector<32x4xi32> to vector<32x1xi32>
    %2 = vector.extract_strided_slice %0 {offsets = [0, 1], sizes = [32, 1], strides = [1, 1]} : vector<32x4xi32> to vector<32x1xi32>
    %3 = vector.extract_strided_slice %0 {offsets = [0, 2], sizes = [8, 1], strides = [1, 1]} : vector<32x4xi32> to vector<8x1xi32>
    %4 = vector.extract_strided_slice %0 {offsets = [0, 3], sizes = [32, 1], strides = [1, 1]} : vector<32x4xi32> to vector<32x1xi32>
    %5 = tpu.iota {dimensions = array<i32: 1>} : vector<32x80xi32>
    %c0_i32 = arith.constant 0 : i32
    %6 = vector.broadcast %c0_i32 : i32 to vector<32x1xi32>
    %7 = arith.addi %6, %1 : vector<32x1xi32>
    %8 = vector.broadcast %7 : vector<32x1xi32> to vector<32x80xi32>
    %9 = arith.cmpi eq, %5, %8 : vector<32x80xi32>
    %cst = arith.constant 1.000000e+00 : f32
    %cst_1 = arith.constant 0.000000e+00 : f32
    %10 = vector.broadcast %cst : f32 to vector<32x80xf32>
    %11 = vector.broadcast %cst_1 : f32 to vector<32x80xf32>
    %12 = arith.select %9, %10, %11 : vector<32x80xi1>, vector<32x80xf32>
    %c56_i32 = arith.constant 56 : i32
    %13 = vector.broadcast %c56_i32 : i32 to vector<32x1xi32>
    %14 = arith.addi %13, %4 : vector<32x1xi32>
    %15 = vector.broadcast %14 : vector<32x1xi32> to vector<32x80xi32>
    %16 = arith.cmpi eq, %5, %15 : vector<32x80xi32>
    %cst_2 = arith.constant 1.000000e+00 : f32
    %cst_3 = arith.constant 0.000000e+00 : f32
    %17 = vector.broadcast %cst_2 : f32 to vector<32x80xf32>
    %18 = vector.broadcast %cst_3 : f32 to vector<32x80xf32>
    %19 = arith.select %16, %17, %18 : vector<32x80xi1>, vector<32x80xf32>
    %20 = arith.addf %12, %19 : vector<32x80xf32>
    %c72_i32 = arith.constant 72 : i32
    %21 = vector.broadcast %c72_i32 : i32 to vector<32x1xi32>
    %22 = arith.addi %21, %2 : vector<32x1xi32>
    %23 = vector.broadcast %22 : vector<32x1xi32> to vector<32x80xi32>
    %24 = arith.cmpi eq, %5, %23 : vector<32x80xi32>
    %cst_4 = arith.constant 1.000000e+00 : f32
    %cst_5 = arith.constant 0.000000e+00 : f32
    %25 = vector.broadcast %cst_4 : f32 to vector<32x80xf32>
    %26 = vector.broadcast %cst_5 : f32 to vector<32x80xf32>
    %27 = arith.select %24, %25, %26 : vector<32x80xi1>, vector<32x80xf32>
    %28 = arith.addf %20, %27 : vector<32x80xf32>
    %c0_6 = arith.constant 0 : index
    %c0_7 = arith.constant 0 : index
    %29 = vector.load %arg2[%c0_6, %c0_7] : memref<624x128xf32, #tpu.memory_space<vmem>>, vector<80x32xf32>
    %cst_8 = arith.constant dense<0.000000e+00> : vector<32x32xf32>
    %30 = tpu.matmul %28, %29, %cst_8 {dimension_numbers = #tpu.dot_dimension_numbers<[1], [0], [0], [1], [0, 0, 1, 1], [], []>} : vector<32x80xf32>, vector<80x32xf32>, vector<32x32xf32> -> vector<32x32xf32>
    %c80 = arith.constant 80 : index
    %c0_9 = arith.constant 0 : index
    %31 = vector.load %arg2[%c80, %c0_9] : memref<624x128xf32, #tpu.memory_space<vmem>>, vector<1x32xf32>
    %c88 = arith.constant 88 : index
    %c0_10 = arith.constant 0 : index
    %32 = vector.load %arg2[%c88, %c0_10] : memref<624x128xf32, #tpu.memory_space<vmem>>, vector<1x32xf32>
    %cst_11 = arith.constant dense<0.000000e+00> : vector<32xf32>
    %33 = vector.multi_reduction <add>, %30, %cst_11 [1] : vector<32x32xf32> to vector<32xf32>
    %34 = vector.shape_cast %33 : vector<32xf32> to vector<32x1xf32>
    %cst_12 = arith.constant 3.200000e+01 : f32
    %35 = vector.broadcast %cst_12 : f32 to vector<32x1xf32>
    %36 = arith.divf %34, %35 : vector<32x1xf32>
    %37 = vector.broadcast %36 : vector<32x1xf32> to vector<32x32xf32>
    %38 = arith.subf %30, %37 : vector<32x32xf32>
    %39 = arith.mulf %38, %38 : vector<32x32xf32>
    %cst_13 = arith.constant dense<0.000000e+00> : vector<32xf32>
    %40 = vector.multi_reduction <add>, %39, %cst_13 [1] : vector<32x32xf32> to vector<32xf32>
    %41 = vector.shape_cast %40 : vector<32xf32> to vector<32x1xf32>
    %cst_14 = arith.constant 3.200000e+01 : f32
    %42 = vector.broadcast %cst_14 : f32 to vector<32x1xf32>
    %43 = arith.divf %41, %42 : vector<32x1xf32>
    %44 = vector.broadcast %36 : vector<32x1xf32> to vector<32x32xf32>
    %45 = arith.subf %30, %44 : vector<32x32xf32>
    %cst_15 = arith.constant 9.99999996E-13 : f32
    %46 = vector.broadcast %cst_15 : f32 to vector<32x1xf32>
    %47 = arith.addf %43, %46 : vector<32x1xf32>
    %48 = math.rsqrt %47 : vector<32x1xf32>
    %49 = vector.broadcast %48 : vector<32x1xf32> to vector<32x32xf32>
    %50 = arith.mulf %45, %49 : vector<32x32xf32>
    %51 = vector.broadcast %31 : vector<1x32xf32> to vector<32x32xf32>
    %52 = arith.mulf %50, %51 : vector<32x32xf32>
    %53 = vector.broadcast %32 : vector<1x32xf32> to vector<32x32xf32>
    %54 = arith.addf %52, %53 : vector<32x32xf32>
    %c0_16 = arith.constant 0 : index
    %c0_17 = arith.constant 0 : index
    %55 = vector.load %arg1[%c0_16, %c0_17] : memref<2x16xf32, #tpu.memory_space<vmem>>, vector<2x16xf32>
    %56 = vector.shape_cast %55 : vector<2x16xf32> to vector<2x1x16xf32>
    %57 = vector.shape_cast %56 : vector<2x1x16xf32> to vector<2x1x16xf32>
    %58 = vector.broadcast %57 : vector<2x1x16xf32> to vector<2x16x16xf32>
    %59 = tpu.iota {dimensions = array<i32: 2>} : vector<1x1x32xi32>
    %c0_i32_18 = arith.constant 0 : i32
    %60 = vector.broadcast %c0_i32_18 : i32 to vector<1x1x32xi32>
    %61 = arith.cmpi sge, %59, %60 : vector<1x1x32xi32>
    %c8_i32 = arith.constant 8 : i32
    %62 = vector.broadcast %c8_i32 : i32 to vector<1x1x32xi32>
    %63 = arith.cmpi slt, %59, %62 : vector<1x1x32xi32>
    %64 = arith.andi %61, %63 : vector<1x1x32xi1>
    %cst_19 = arith.constant 1.000000e+00 : f32
    %cst_20 = arith.constant 0.000000e+00 : f32
    %65 = vector.broadcast %cst_19 : f32 to vector<1x1x32xf32>
    %66 = vector.broadcast %cst_20 : f32 to vector<1x1x32xf32>
    %67 = arith.select %64, %65, %66 : vector<1x1x32xi1>, vector<1x1x32xf32>
    %c8_i32_21 = arith.constant 8 : i32
    %68 = vector.broadcast %c8_i32_21 : i32 to vector<1x1x32xi32>
    %69 = arith.cmpi sge, %59, %68 : vector<1x1x32xi32>
    %c16_i32 = arith.constant 16 : i32
    %70 = vector.broadcast %c16_i32 : i32 to vector<1x1x32xi32>
    %71 = arith.cmpi slt, %59, %70 : vector<1x1x32xi32>
    %72 = arith.andi %69, %71 : vector<1x1x32xi1>
    %cst_22 = arith.constant 1.000000e+00 : f32
    %cst_23 = arith.constant 0.000000e+00 : f32
    %73 = vector.broadcast %cst_22 : f32 to vector<1x1x32xf32>
    %74 = vector.broadcast %cst_23 : f32 to vector<1x1x32xf32>
    %75 = arith.select %72, %73, %74 : vector<1x1x32xi1>, vector<1x1x32xf32>
    %c16_i32_24 = arith.constant 16 : i32
    %76 = vector.broadcast %c16_i32_24 : i32 to vector<1x1x32xi32>
    %77 = arith.cmpi sge, %59, %76 : vector<1x1x32xi32>
    %c24_i32 = arith.constant 24 : i32
    %78 = vector.broadcast %c24_i32 : i32 to vector<1x1x32xi32>
    %79 = arith.cmpi slt, %59, %78 : vector<1x1x32xi32>
    %80 = arith.andi %77, %79 : vector<1x1x32xi1>
    %cst_25 = arith.constant 1.000000e+00 : f32
    %cst_26 = arith.constant 0.000000e+00 : f32
    %81 = vector.broadcast %cst_25 : f32 to vector<1x1x32xf32>
    %82 = vector.broadcast %cst_26 : f32 to vector<1x1x32xf32>
    %83 = arith.select %80, %81, %82 : vector<1x1x32xi1>, vector<1x1x32xf32>
    %c24_i32_27 = arith.constant 24 : i32
    %84 = vector.broadcast %c24_i32_27 : i32 to vector<1x1x32xi32>
    %85 = arith.cmpi sge, %59, %84 : vector<1x1x32xi32>
    %c32_i32 = arith.constant 32 : i32
    %86 = vector.broadcast %c32_i32 : i32 to vector<1x1x32xi32>
    %87 = arith.cmpi slt, %59, %86 : vector<1x1x32xi32>
    %88 = arith.andi %85, %87 : vector<1x1x32xi1>
    %cst_28 = arith.constant 1.000000e+00 : f32
    %cst_29 = arith.constant 0.000000e+00 : f32
    %89 = vector.broadcast %cst_28 : f32 to vector<1x1x32xf32>
    %90 = vector.broadcast %cst_29 : f32 to vector<1x1x32xf32>
    %91 = arith.select %88, %89, %90 : vector<1x1x32xi1>, vector<1x1x32xf32>
    %c96 = arith.constant 96 : index
    %c0_30 = arith.constant 0 : index
    %92 = vector.load %arg2[%c96, %c0_30] : memref<624x128xf32, #tpu.memory_space<vmem>>, vector<32x96xf32>
    %cst_31 = arith.constant dense<0.000000e+00> : vector<32x96xf32>
    %93 = tpu.matmul %54, %92, %cst_31 {dimension_numbers = #tpu.dot_dimension_numbers<[1], [0], [0], [1], [0, 0, 1, 1], [], []>} : vector<32x32xf32>, vector<32x96xf32>, vector<32x96xf32> -> vector<32x96xf32>
    %c128 = arith.constant 128 : index
    %c0_32 = arith.constant 0 : index
    %94 = vector.load %arg2[%c128, %c0_32] : memref<624x128xf32, #tpu.memory_space<vmem>>, vector<1x96xf32>
    %95 = vector.broadcast %94 : vector<1x96xf32> to vector<32x96xf32>
    %96 = arith.addf %93, %95 : vector<32x96xf32>
    %97 = vector.extract_strided_slice %96 {offsets = [0, 0], sizes = [32, 32], strides = [1, 1]} : vector<32x96xf32> to vector<32x32xf32>
    %98 = vector.shape_cast %97 : vector<32x32xf32> to vector<2x16x32xf32>
    %99 = vector.extract_strided_slice %96 {offsets = [0, 32], sizes = [32, 32], strides = [1, 1]} : vector<32x96xf32> to vector<32x32xf32>
    %100 = vector.shape_cast %99 : vector<32x32xf32> to vector<2x16x32xf32>
    %101 = vector.extract_strided_slice %96 {offsets = [0, 64], sizes = [32, 32], strides = [1, 1]} : vector<32x96xf32> to vector<32x32xf32>
    %102 = vector.shape_cast %101 : vector<32x32xf32> to vector<2x16x32xf32>
    %cst_33 = arith.constant 0.000000e+00 : f32
    %103 = vector.broadcast %cst_33 : f32 to vector<2x16x32xf32>
    %104 = vector.broadcast %67 : vector<1x1x32xf32> to vector<2x16x32xf32>
    %105 = arith.mulf %98, %104 : vector<2x16x32xf32>
    "tpu.trace_start"() <{level = 10 : i32, message = "bqd,bkd->bqk"}> : () -> ()
    %cst_34 = arith.constant dense<0.000000e+00> : vector<2x16x16xf32>
    %106 = tpu.matmul %105, %100, %cst_34 {dimension_numbers = #tpu.dot_dimension_numbers<[2], [2], [1], [1], [0, 0, 0, 1, 1, 1], [0], [0]>} : vector<2x16x32xf32>, vector<2x16x32xf32>, vector<2x16x16xf32> -> vector<2x16x16xf32>
    "tpu.trace_stop"() : () -> ()
    %cst_35 = arith.constant 0.353553385 : f32
    %107 = vector.broadcast %cst_35 : f32 to vector<2x16x16xf32>
    %108 = arith.mulf %106, %107 : vector<2x16x16xf32>
    %109 = arith.addf %108, %58 : vector<2x16x16xf32>
    %cst_36 = arith.constant dense<0xFF800000> : vector<2x16xf32>
    %110 = vector.multi_reduction <maximumf>, %109, %cst_36 [2] : vector<2x16x16xf32> to vector<2x16xf32>
    %111 = vector.shape_cast %110 : vector<2x16xf32> to vector<2x16x1xf32>
    %112 = vector.broadcast %111 : vector<2x16x1xf32> to vector<2x16x16xf32>
    %113 = arith.subf %109, %112 : vector<2x16x16xf32>
    %114 = math.exp %113 : vector<2x16x16xf32>
    %cst_37 = arith.constant dense<0.000000e+00> : vector<2x16xf32>
    %115 = vector.multi_reduction <add>, %114, %cst_37 [2] : vector<2x16x16xf32> to vector<2x16xf32>
    %116 = vector.shape_cast %115 : vector<2x16xf32> to vector<2x16x1xf32>
    %117 = tpu.reciprocal %116 : vector<2x16x1xf32> -> vector<2x16x1xf32>
    %118 = vector.broadcast %117 : vector<2x16x1xf32> to vector<2x16x16xf32>
    %119 = arith.mulf %114, %118 : vector<2x16x16xf32>
    "tpu.trace_start"() <{level = 10 : i32, message = "bqk,bkd->bqd"}> : () -> ()
    %cst_38 = arith.constant dense<0.000000e+00> : vector<2x16x32xf32>
    %120 = tpu.matmul %119, %102, %cst_38 {dimension_numbers = #tpu.dot_dimension_numbers<[2], [1], [1], [2], [0, 0, 0, 1, 1, 2], [0], [0]>} : vector<2x16x16xf32>, vector<2x16x32xf32>, vector<2x16x32xf32> -> vector<2x16x32xf32>
    "tpu.trace_stop"() : () -> ()
    %121 = vector.broadcast %67 : vector<1x1x32xf32> to vector<2x16x32xf32>
    %122 = arith.mulf %120, %121 : vector<2x16x32xf32>
    %123 = arith.addf %103, %122 : vector<2x16x32xf32>
    %124 = vector.broadcast %75 : vector<1x1x32xf32> to vector<2x16x32xf32>
    %125 = arith.mulf %98, %124 : vector<2x16x32xf32>
    "tpu.trace_start"() <{level = 10 : i32, message = "bqd,bkd->bqk"}> : () -> ()
    %cst_39 = arith.constant dense<0.000000e+00> : vector<2x16x16xf32>
    %126 = tpu.matmul %125, %100, %cst_39 {dimension_numbers = #tpu.dot_dimension_numbers<[2], [2], [1], [1], [0, 0, 0, 1, 1, 1], [0], [0]>} : vector<2x16x32xf32>, vector<2x16x32xf32>, vector<2x16x16xf32> -> vector<2x16x16xf32>
    "tpu.trace_stop"() : () -> ()
    %cst_40 = arith.constant 0.353553385 : f32
    %127 = vector.broadcast %cst_40 : f32 to vector<2x16x16xf32>
    %128 = arith.mulf %126, %127 : vector<2x16x16xf32>
    %129 = arith.addf %128, %58 : vector<2x16x16xf32>
    %cst_41 = arith.constant dense<0xFF800000> : vector<2x16xf32>
    %130 = vector.multi_reduction <maximumf>, %129, %cst_41 [2] : vector<2x16x16xf32> to vector<2x16xf32>
    %131 = vector.shape_cast %130 : vector<2x16xf32> to vector<2x16x1xf32>
    %132 = vector.broadcast %131 : vector<2x16x1xf32> to vector<2x16x16xf32>
    %133 = arith.subf %129, %132 : vector<2x16x16xf32>
    %134 = math.exp %133 : vector<2x16x16xf32>
    %cst_42 = arith.constant dense<0.000000e+00> : vector<2x16xf32>
    %135 = vector.multi_reduction <add>, %134, %cst_42 [2] : vector<2x16x16xf32> to vector<2x16xf32>
    %136 = vector.shape_cast %135 : vector<2x16xf32> to vector<2x16x1xf32>
    %137 = tpu.reciprocal %136 : vector<2x16x1xf32> -> vector<2x16x1xf32>
    %138 = vector.broadcast %137 : vector<2x16x1xf32> to vector<2x16x16xf32>
    %139 = arith.mulf %134, %138 : vector<2x16x16xf32>
    "tpu.trace_start"() <{level = 10 : i32, message = "bqk,bkd->bqd"}> : () -> ()
    %cst_43 = arith.constant dense<0.000000e+00> : vector<2x16x32xf32>
    %140 = tpu.matmul %139, %102, %cst_43 {dimension_numbers = #tpu.dot_dimension_numbers<[2], [1], [1], [2], [0, 0, 0, 1, 1, 2], [0], [0]>} : vector<2x16x16xf32>, vector<2x16x32xf32>, vector<2x16x32xf32> -> vector<2x16x32xf32>
    "tpu.trace_stop"() : () -> ()
    %141 = vector.broadcast %75 : vector<1x1x32xf32> to vector<2x16x32xf32>
    %142 = arith.mulf %140, %141 : vector<2x16x32xf32>
    %143 = arith.addf %123, %142 : vector<2x16x32xf32>
    %144 = vector.broadcast %83 : vector<1x1x32xf32> to vector<2x16x32xf32>
    %145 = arith.mulf %98, %144 : vector<2x16x32xf32>
    "tpu.trace_start"() <{level = 10 : i32, message = "bqd,bkd->bqk"}> : () -> ()
    %cst_44 = arith.constant dense<0.000000e+00> : vector<2x16x16xf32>
    %146 = tpu.matmul %145, %100, %cst_44 {dimension_numbers = #tpu.dot_dimension_numbers<[2], [2], [1], [1], [0, 0, 0, 1, 1, 1], [0], [0]>} : vector<2x16x32xf32>, vector<2x16x32xf32>, vector<2x16x16xf32> -> vector<2x16x16xf32>
    "tpu.trace_stop"() : () -> ()
    %cst_45 = arith.constant 0.353553385 : f32
    %147 = vector.broadcast %cst_45 : f32 to vector<2x16x16xf32>
    %148 = arith.mulf %146, %147 : vector<2x16x16xf32>
    %149 = arith.addf %148, %58 : vector<2x16x16xf32>
    %cst_46 = arith.constant dense<0xFF800000> : vector<2x16xf32>
    %150 = vector.multi_reduction <maximumf>, %149, %cst_46 [2] : vector<2x16x16xf32> to vector<2x16xf32>
    %151 = vector.shape_cast %150 : vector<2x16xf32> to vector<2x16x1xf32>
    %152 = vector.broadcast %151 : vector<2x16x1xf32> to vector<2x16x16xf32>
    %153 = arith.subf %149, %152 : vector<2x16x16xf32>
    %154 = math.exp %153 : vector<2x16x16xf32>
    %cst_47 = arith.constant dense<0.000000e+00> : vector<2x16xf32>
    %155 = vector.multi_reduction <add>, %154, %cst_47 [2] : vector<2x16x16xf32> to vector<2x16xf32>
    %156 = vector.shape_cast %155 : vector<2x16xf32> to vector<2x16x1xf32>
    %157 = tpu.reciprocal %156 : vector<2x16x1xf32> -> vector<2x16x1xf32>
    %158 = vector.broadcast %157 : vector<2x16x1xf32> to vector<2x16x16xf32>
    %159 = arith.mulf %154, %158 : vector<2x16x16xf32>
    "tpu.trace_start"() <{level = 10 : i32, message = "bqk,bkd->bqd"}> : () -> ()
    %cst_48 = arith.constant dense<0.000000e+00> : vector<2x16x32xf32>
    %160 = tpu.matmul %159, %102, %cst_48 {dimension_numbers = #tpu.dot_dimension_numbers<[2], [1], [1], [2], [0, 0, 0, 1, 1, 2], [0], [0]>} : vector<2x16x16xf32>, vector<2x16x32xf32>, vector<2x16x32xf32> -> vector<2x16x32xf32>
    "tpu.trace_stop"() : () -> ()
    %161 = vector.broadcast %83 : vector<1x1x32xf32> to vector<2x16x32xf32>
    %162 = arith.mulf %160, %161 : vector<2x16x32xf32>
    %163 = arith.addf %143, %162 : vector<2x16x32xf32>
    %164 = vector.broadcast %91 : vector<1x1x32xf32> to vector<2x16x32xf32>
    %165 = arith.mulf %98, %164 : vector<2x16x32xf32>
    "tpu.trace_start"() <{level = 10 : i32, message = "bqd,bkd->bqk"}> : () -> ()
    %cst_49 = arith.constant dense<0.000000e+00> : vector<2x16x16xf32>
    %166 = tpu.matmul %165, %100, %cst_49 {dimension_numbers = #tpu.dot_dimension_numbers<[2], [2], [1], [1], [0, 0, 0, 1, 1, 1], [0], [0]>} : vector<2x16x32xf32>, vector<2x16x32xf32>, vector<2x16x16xf32> -> vector<2x16x16xf32>
    "tpu.trace_stop"() : () -> ()
    %cst_50 = arith.constant 0.353553385 : f32
    %167 = vector.broadcast %cst_50 : f32 to vector<2x16x16xf32>
    %168 = arith.mulf %166, %167 : vector<2x16x16xf32>
    %169 = arith.addf %168, %58 : vector<2x16x16xf32>
    %cst_51 = arith.constant dense<0xFF800000> : vector<2x16xf32>
    %170 = vector.multi_reduction <maximumf>, %169, %cst_51 [2] : vector<2x16x16xf32> to vector<2x16xf32>
    %171 = vector.shape_cast %170 : vector<2x16xf32> to vector<2x16x1xf32>
    %172 = vector.broadcast %171 : vector<2x16x1xf32> to vector<2x16x16xf32>
    %173 = arith.subf %169, %172 : vector<2x16x16xf32>
    %174 = math.exp %173 : vector<2x16x16xf32>
    %cst_52 = arith.constant dense<0.000000e+00> : vector<2x16xf32>
    %175 = vector.multi_reduction <add>, %174, %cst_52 [2] : vector<2x16x16xf32> to vector<2x16xf32>
    %176 = vector.shape_cast %175 : vector<2x16xf32> to vector<2x16x1xf32>
    %177 = tpu.reciprocal %176 : vector<2x16x1xf32> -> vector<2x16x1xf32>
    %178 = vector.broadcast %177 : vector<2x16x1xf32> to vector<2x16x16xf32>
    %179 = arith.mulf %174, %178 : vector<2x16x16xf32>
    "tpu.trace_start"() <{level = 10 : i32, message = "bqk,bkd->bqd"}> : () -> ()
    %cst_53 = arith.constant dense<0.000000e+00> : vector<2x16x32xf32>
    %180 = tpu.matmul %179, %102, %cst_53 {dimension_numbers = #tpu.dot_dimension_numbers<[2], [1], [1], [2], [0, 0, 0, 1, 1, 2], [0], [0]>} : vector<2x16x16xf32>, vector<2x16x32xf32>, vector<2x16x32xf32> -> vector<2x16x32xf32>
    "tpu.trace_stop"() : () -> ()
    %181 = vector.broadcast %91 : vector<1x1x32xf32> to vector<2x16x32xf32>
    %182 = arith.mulf %180, %181 : vector<2x16x32xf32>
    %183 = arith.addf %163, %182 : vector<2x16x32xf32>
    %184 = vector.shape_cast %183 : vector<2x16x32xf32> to vector<32x32xf32>
    %c136 = arith.constant 136 : index
    %c0_54 = arith.constant 0 : index
    %185 = vector.load %arg2[%c136, %c0_54] : memref<624x128xf32, #tpu.memory_space<vmem>>, vector<32x32xf32>
    %cst_55 = arith.constant dense<0.000000e+00> : vector<32x32xf32>
    %186 = tpu.matmul %184, %185, %cst_55 {dimension_numbers = #tpu.dot_dimension_numbers<[1], [0], [0], [1], [0, 0, 1, 1], [], []>} : vector<32x32xf32>, vector<32x32xf32>, vector<32x32xf32> -> vector<32x32xf32>
    %c168 = arith.constant 168 : index
    %c0_56 = arith.constant 0 : index
    %187 = vector.load %arg2[%c168, %c0_56] : memref<624x128xf32, #tpu.memory_space<vmem>>, vector<1x32xf32>
    %188 = vector.broadcast %187 : vector<1x32xf32> to vector<32x32xf32>
    %189 = arith.addf %186, %188 : vector<32x32xf32>
    %190 = arith.addf %189, %54 : vector<32x32xf32>
    %c176 = arith.constant 176 : index
    %c0_57 = arith.constant 0 : index
    %191 = vector.load %arg2[%c176, %c0_57] : memref<624x128xf32, #tpu.memory_space<vmem>>, vector<1x32xf32>
    %c184 = arith.constant 184 : index
    %c0_58 = arith.constant 0 : index
    %192 = vector.load %arg2[%c184, %c0_58] : memref<624x128xf32, #tpu.memory_space<vmem>>, vector<1x32xf32>
    %cst_59 = arith.constant dense<0.000000e+00> : vector<32xf32>
    %193 = vector.multi_reduction <add>, %190, %cst_59 [1] : vector<32x32xf32> to vector<32xf32>
    %194 = vector.shape_cast %193 : vector<32xf32> to vector<32x1xf32>
    %cst_60 = arith.constant 3.200000e+01 : f32
    %195 = vector.broadcast %cst_60 : f32 to vector<32x1xf32>
    %196 = arith.divf %194, %195 : vector<32x1xf32>
    %197 = vector.broadcast %196 : vector<32x1xf32> to vector<32x32xf32>
    %198 = arith.subf %190, %197 : vector<32x32xf32>
    %199 = arith.mulf %198, %198 : vector<32x32xf32>
    %cst_61 = arith.constant dense<0.000000e+00> : vector<32xf32>
    %200 = vector.multi_reduction <add>, %199, %cst_61 [1] : vector<32x32xf32> to vector<32xf32>
    %201 = vector.shape_cast %200 : vector<32xf32> to vector<32x1xf32>
    %cst_62 = arith.constant 3.200000e+01 : f32
    %202 = vector.broadcast %cst_62 : f32 to vector<32x1xf32>
    %203 = arith.divf %201, %202 : vector<32x1xf32>
    %204 = vector.broadcast %196 : vector<32x1xf32> to vector<32x32xf32>
    %205 = arith.subf %190, %204 : vector<32x32xf32>
    %cst_63 = arith.constant 9.99999996E-13 : f32
    %206 = vector.broadcast %cst_63 : f32 to vector<32x1xf32>
    %207 = arith.addf %203, %206 : vector<32x1xf32>
    %208 = math.rsqrt %207 : vector<32x1xf32>
    %209 = vector.broadcast %208 : vector<32x1xf32> to vector<32x32xf32>
    %210 = arith.mulf %205, %209 : vector<32x32xf32>
    %211 = vector.broadcast %191 : vector<1x32xf32> to vector<32x32xf32>
    %212 = arith.mulf %210, %211 : vector<32x32xf32>
    %213 = vector.broadcast %192 : vector<1x32xf32> to vector<32x32xf32>
    %214 = arith.addf %212, %213 : vector<32x32xf32>
    %c192 = arith.constant 192 : index
    %c0_64 = arith.constant 0 : index
    %215 = vector.load %arg2[%c192, %c0_64] : memref<624x128xf32, #tpu.memory_space<vmem>>, vector<32x64xf32>
    %cst_65 = arith.constant dense<0.000000e+00> : vector<32x64xf32>
    %216 = tpu.matmul %214, %215, %cst_65 {dimension_numbers = #tpu.dot_dimension_numbers<[1], [0], [0], [1], [0, 0, 1, 1], [], []>} : vector<32x32xf32>, vector<32x64xf32>, vector<32x64xf32> -> vector<32x64xf32>
    %c224 = arith.constant 224 : index
    %c0_66 = arith.constant 0 : index
    %217 = vector.load %arg2[%c224, %c0_66] : memref<624x128xf32, #tpu.memory_space<vmem>>, vector<1x64xf32>
    %218 = vector.broadcast %217 : vector<1x64xf32> to vector<32x64xf32>
    %219 = arith.addf %216, %218 : vector<32x64xf32>
    %cst_67 = arith.constant 5.000000e-01 : f32
    %220 = vector.broadcast %cst_67 : f32 to vector<32x64xf32>
    %221 = arith.mulf %220, %219 : vector<32x64xf32>
    %cst_68 = arith.constant 0.707106769 : f32
    %222 = vector.broadcast %cst_68 : f32 to vector<32x64xf32>
    %223 = arith.mulf %219, %222 : vector<32x64xf32>
    %224 = math.erf %223 : vector<32x64xf32>
    %cst_69 = arith.constant 1.000000e+00 : f32
    %225 = vector.broadcast %cst_69 : f32 to vector<32x64xf32>
    %226 = arith.addf %225, %224 : vector<32x64xf32>
    %227 = arith.mulf %221, %226 : vector<32x64xf32>
    %c232 = arith.constant 232 : index
    %c0_70 = arith.constant 0 : index
    %228 = vector.load %arg2[%c232, %c0_70] : memref<624x128xf32, #tpu.memory_space<vmem>>, vector<64x32xf32>
    %cst_71 = arith.constant dense<0.000000e+00> : vector<32x32xf32>
    %229 = tpu.matmul %227, %228, %cst_71 {dimension_numbers = #tpu.dot_dimension_numbers<[1], [0], [0], [1], [0, 0, 1, 1], [], []>} : vector<32x64xf32>, vector<64x32xf32>, vector<32x32xf32> -> vector<32x32xf32>
    %c296 = arith.constant 296 : index
    %c0_72 = arith.constant 0 : index
    %230 = vector.load %arg2[%c296, %c0_72] : memref<624x128xf32, #tpu.memory_space<vmem>>, vector<1x32xf32>
    %231 = vector.broadcast %230 : vector<1x32xf32> to vector<32x32xf32>
    %232 = arith.addf %229, %231 : vector<32x32xf32>
    %233 = arith.addf %232, %214 : vector<32x32xf32>
    %c304 = arith.constant 304 : index
    %c0_73 = arith.constant 0 : index
    %234 = vector.load %arg2[%c304, %c0_73] : memref<624x128xf32, #tpu.memory_space<vmem>>, vector<1x32xf32>
    %c312 = arith.constant 312 : index
    %c0_74 = arith.constant 0 : index
    %235 = vector.load %arg2[%c312, %c0_74] : memref<624x128xf32, #tpu.memory_space<vmem>>, vector<1x32xf32>
    %cst_75 = arith.constant dense<0.000000e+00> : vector<32xf32>
    %236 = vector.multi_reduction <add>, %233, %cst_75 [1] : vector<32x32xf32> to vector<32xf32>
    %237 = vector.shape_cast %236 : vector<32xf32> to vector<32x1xf32>
    %cst_76 = arith.constant 3.200000e+01 : f32
    %238 = vector.broadcast %cst_76 : f32 to vector<32x1xf32>
    %239 = arith.divf %237, %238 : vector<32x1xf32>
    %240 = vector.broadcast %239 : vector<32x1xf32> to vector<32x32xf32>
    %241 = arith.subf %233, %240 : vector<32x32xf32>
    %242 = arith.mulf %241, %241 : vector<32x32xf32>
    %cst_77 = arith.constant dense<0.000000e+00> : vector<32xf32>
    %243 = vector.multi_reduction <add>, %242, %cst_77 [1] : vector<32x32xf32> to vector<32xf32>
    %244 = vector.shape_cast %243 : vector<32xf32> to vector<32x1xf32>
    %cst_78 = arith.constant 3.200000e+01 : f32
    %245 = vector.broadcast %cst_78 : f32 to vector<32x1xf32>
    %246 = arith.divf %244, %245 : vector<32x1xf32>
    %247 = vector.broadcast %239 : vector<32x1xf32> to vector<32x32xf32>
    %248 = arith.subf %233, %247 : vector<32x32xf32>
    %cst_79 = arith.constant 9.99999996E-13 : f32
    %249 = vector.broadcast %cst_79 : f32 to vector<32x1xf32>
    %250 = arith.addf %246, %249 : vector<32x1xf32>
    %251 = math.rsqrt %250 : vector<32x1xf32>
    %252 = vector.broadcast %251 : vector<32x1xf32> to vector<32x32xf32>
    %253 = arith.mulf %248, %252 : vector<32x32xf32>
    %254 = vector.broadcast %234 : vector<1x32xf32> to vector<32x32xf32>
    %255 = arith.mulf %253, %254 : vector<32x32xf32>
    %256 = vector.broadcast %235 : vector<1x32xf32> to vector<32x32xf32>
    %257 = arith.addf %255, %256 : vector<32x32xf32>
    %c320 = arith.constant 320 : index
    %c0_80 = arith.constant 0 : index
    %258 = vector.load %arg2[%c320, %c0_80] : memref<624x128xf32, #tpu.memory_space<vmem>>, vector<32x96xf32>
    %cst_81 = arith.constant dense<0.000000e+00> : vector<32x96xf32>
    %259 = tpu.matmul %257, %258, %cst_81 {dimension_numbers = #tpu.dot_dimension_numbers<[1], [0], [0], [1], [0, 0, 1, 1], [], []>} : vector<32x32xf32>, vector<32x96xf32>, vector<32x96xf32> -> vector<32x96xf32>
    %c352 = arith.constant 352 : index
    %c0_82 = arith.constant 0 : index
    %260 = vector.load %arg2[%c352, %c0_82] : memref<624x128xf32, #tpu.memory_space<vmem>>, vector<1x96xf32>
    %261 = vector.broadcast %260 : vector<1x96xf32> to vector<32x96xf32>
    %262 = arith.addf %259, %261 : vector<32x96xf32>
    %263 = vector.extract_strided_slice %262 {offsets = [0, 0], sizes = [32, 32], strides = [1, 1]} : vector<32x96xf32> to vector<32x32xf32>
    %264 = vector.shape_cast %263 : vector<32x32xf32> to vector<2x16x32xf32>
    %265 = vector.extract_strided_slice %262 {offsets = [0, 32], sizes = [32, 32], strides = [1, 1]} : vector<32x96xf32> to vector<32x32xf32>
    %266 = vector.shape_cast %265 : vector<32x32xf32> to vector<2x16x32xf32>
    %267 = vector.extract_strided_slice %262 {offsets = [0, 64], sizes = [32, 32], strides = [1, 1]} : vector<32x96xf32> to vector<32x32xf32>
    %268 = vector.shape_cast %267 : vector<32x32xf32> to vector<2x16x32xf32>
    %cst_83 = arith.constant 0.000000e+00 : f32
    %269 = vector.broadcast %cst_83 : f32 to vector<2x16x32xf32>
    %270 = vector.broadcast %67 : vector<1x1x32xf32> to vector<2x16x32xf32>
    %271 = arith.mulf %264, %270 : vector<2x16x32xf32>
    "tpu.trace_start"() <{level = 10 : i32, message = "bqd,bkd->bqk"}> : () -> ()
    %cst_84 = arith.constant dense<0.000000e+00> : vector<2x16x16xf32>
    %272 = tpu.matmul %271, %266, %cst_84 {dimension_numbers = #tpu.dot_dimension_numbers<[2], [2], [1], [1], [0, 0, 0, 1, 1, 1], [0], [0]>} : vector<2x16x32xf32>, vector<2x16x32xf32>, vector<2x16x16xf32> -> vector<2x16x16xf32>
    "tpu.trace_stop"() : () -> ()
    %cst_85 = arith.constant 0.353553385 : f32
    %273 = vector.broadcast %cst_85 : f32 to vector<2x16x16xf32>
    %274 = arith.mulf %272, %273 : vector<2x16x16xf32>
    %275 = arith.addf %274, %58 : vector<2x16x16xf32>
    %cst_86 = arith.constant dense<0xFF800000> : vector<2x16xf32>
    %276 = vector.multi_reduction <maximumf>, %275, %cst_86 [2] : vector<2x16x16xf32> to vector<2x16xf32>
    %277 = vector.shape_cast %276 : vector<2x16xf32> to vector<2x16x1xf32>
    %278 = vector.broadcast %277 : vector<2x16x1xf32> to vector<2x16x16xf32>
    %279 = arith.subf %275, %278 : vector<2x16x16xf32>
    %280 = math.exp %279 : vector<2x16x16xf32>
    %cst_87 = arith.constant dense<0.000000e+00> : vector<2x16xf32>
    %281 = vector.multi_reduction <add>, %280, %cst_87 [2] : vector<2x16x16xf32> to vector<2x16xf32>
    %282 = vector.shape_cast %281 : vector<2x16xf32> to vector<2x16x1xf32>
    %283 = tpu.reciprocal %282 : vector<2x16x1xf32> -> vector<2x16x1xf32>
    %284 = vector.broadcast %283 : vector<2x16x1xf32> to vector<2x16x16xf32>
    %285 = arith.mulf %280, %284 : vector<2x16x16xf32>
    "tpu.trace_start"() <{level = 10 : i32, message = "bqk,bkd->bqd"}> : () -> ()
    %cst_88 = arith.constant dense<0.000000e+00> : vector<2x16x32xf32>
    %286 = tpu.matmul %285, %268, %cst_88 {dimension_numbers = #tpu.dot_dimension_numbers<[2], [1], [1], [2], [0, 0, 0, 1, 1, 2], [0], [0]>} : vector<2x16x16xf32>, vector<2x16x32xf32>, vector<2x16x32xf32> -> vector<2x16x32xf32>
    "tpu.trace_stop"() : () -> ()
    %287 = vector.broadcast %67 : vector<1x1x32xf32> to vector<2x16x32xf32>
    %288 = arith.mulf %286, %287 : vector<2x16x32xf32>
    %289 = arith.addf %269, %288 : vector<2x16x32xf32>
    %290 = vector.broadcast %75 : vector<1x1x32xf32> to vector<2x16x32xf32>
    %291 = arith.mulf %264, %290 : vector<2x16x32xf32>
    "tpu.trace_start"() <{level = 10 : i32, message = "bqd,bkd->bqk"}> : () -> ()
    %cst_89 = arith.constant dense<0.000000e+00> : vector<2x16x16xf32>
    %292 = tpu.matmul %291, %266, %cst_89 {dimension_numbers = #tpu.dot_dimension_numbers<[2], [2], [1], [1], [0, 0, 0, 1, 1, 1], [0], [0]>} : vector<2x16x32xf32>, vector<2x16x32xf32>, vector<2x16x16xf32> -> vector<2x16x16xf32>
    "tpu.trace_stop"() : () -> ()
    %cst_90 = arith.constant 0.353553385 : f32
    %293 = vector.broadcast %cst_90 : f32 to vector<2x16x16xf32>
    %294 = arith.mulf %292, %293 : vector<2x16x16xf32>
    %295 = arith.addf %294, %58 : vector<2x16x16xf32>
    %cst_91 = arith.constant dense<0xFF800000> : vector<2x16xf32>
    %296 = vector.multi_reduction <maximumf>, %295, %cst_91 [2] : vector<2x16x16xf32> to vector<2x16xf32>
    %297 = vector.shape_cast %296 : vector<2x16xf32> to vector<2x16x1xf32>
    %298 = vector.broadcast %297 : vector<2x16x1xf32> to vector<2x16x16xf32>
    %299 = arith.subf %295, %298 : vector<2x16x16xf32>
    %300 = math.exp %299 : vector<2x16x16xf32>
    %cst_92 = arith.constant dense<0.000000e+00> : vector<2x16xf32>
    %301 = vector.multi_reduction <add>, %300, %cst_92 [2] : vector<2x16x16xf32> to vector<2x16xf32>
    %302 = vector.shape_cast %301 : vector<2x16xf32> to vector<2x16x1xf32>
    %303 = tpu.reciprocal %302 : vector<2x16x1xf32> -> vector<2x16x1xf32>
    %304 = vector.broadcast %303 : vector<2x16x1xf32> to vector<2x16x16xf32>
    %305 = arith.mulf %300, %304 : vector<2x16x16xf32>
    "tpu.trace_start"() <{level = 10 : i32, message = "bqk,bkd->bqd"}> : () -> ()
    %cst_93 = arith.constant dense<0.000000e+00> : vector<2x16x32xf32>
    %306 = tpu.matmul %305, %268, %cst_93 {dimension_numbers = #tpu.dot_dimension_numbers<[2], [1], [1], [2], [0, 0, 0, 1, 1, 2], [0], [0]>} : vector<2x16x16xf32>, vector<2x16x32xf32>, vector<2x16x32xf32> -> vector<2x16x32xf32>
    "tpu.trace_stop"() : () -> ()
    %307 = vector.broadcast %75 : vector<1x1x32xf32> to vector<2x16x32xf32>
    %308 = arith.mulf %306, %307 : vector<2x16x32xf32>
    %309 = arith.addf %289, %308 : vector<2x16x32xf32>
    %310 = vector.broadcast %83 : vector<1x1x32xf32> to vector<2x16x32xf32>
    %311 = arith.mulf %264, %310 : vector<2x16x32xf32>
    "tpu.trace_start"() <{level = 10 : i32, message = "bqd,bkd->bqk"}> : () -> ()
    %cst_94 = arith.constant dense<0.000000e+00> : vector<2x16x16xf32>
    %312 = tpu.matmul %311, %266, %cst_94 {dimension_numbers = #tpu.dot_dimension_numbers<[2], [2], [1], [1], [0, 0, 0, 1, 1, 1], [0], [0]>} : vector<2x16x32xf32>, vector<2x16x32xf32>, vector<2x16x16xf32> -> vector<2x16x16xf32>
    "tpu.trace_stop"() : () -> ()
    %cst_95 = arith.constant 0.353553385 : f32
    %313 = vector.broadcast %cst_95 : f32 to vector<2x16x16xf32>
    %314 = arith.mulf %312, %313 : vector<2x16x16xf32>
    %315 = arith.addf %314, %58 : vector<2x16x16xf32>
    %cst_96 = arith.constant dense<0xFF800000> : vector<2x16xf32>
    %316 = vector.multi_reduction <maximumf>, %315, %cst_96 [2] : vector<2x16x16xf32> to vector<2x16xf32>
    %317 = vector.shape_cast %316 : vector<2x16xf32> to vector<2x16x1xf32>
    %318 = vector.broadcast %317 : vector<2x16x1xf32> to vector<2x16x16xf32>
    %319 = arith.subf %315, %318 : vector<2x16x16xf32>
    %320 = math.exp %319 : vector<2x16x16xf32>
    %cst_97 = arith.constant dense<0.000000e+00> : vector<2x16xf32>
    %321 = vector.multi_reduction <add>, %320, %cst_97 [2] : vector<2x16x16xf32> to vector<2x16xf32>
    %322 = vector.shape_cast %321 : vector<2x16xf32> to vector<2x16x1xf32>
    %323 = tpu.reciprocal %322 : vector<2x16x1xf32> -> vector<2x16x1xf32>
    %324 = vector.broadcast %323 : vector<2x16x1xf32> to vector<2x16x16xf32>
    %325 = arith.mulf %320, %324 : vector<2x16x16xf32>
    "tpu.trace_start"() <{level = 10 : i32, message = "bqk,bkd->bqd"}> : () -> ()
    %cst_98 = arith.constant dense<0.000000e+00> : vector<2x16x32xf32>
    %326 = tpu.matmul %325, %268, %cst_98 {dimension_numbers = #tpu.dot_dimension_numbers<[2], [1], [1], [2], [0, 0, 0, 1, 1, 2], [0], [0]>} : vector<2x16x16xf32>, vector<2x16x32xf32>, vector<2x16x32xf32> -> vector<2x16x32xf32>
    "tpu.trace_stop"() : () -> ()
    %327 = vector.broadcast %83 : vector<1x1x32xf32> to vector<2x16x32xf32>
    %328 = arith.mulf %326, %327 : vector<2x16x32xf32>
    %329 = arith.addf %309, %328 : vector<2x16x32xf32>
    %330 = vector.broadcast %91 : vector<1x1x32xf32> to vector<2x16x32xf32>
    %331 = arith.mulf %264, %330 : vector<2x16x32xf32>
    "tpu.trace_start"() <{level = 10 : i32, message = "bqd,bkd->bqk"}> : () -> ()
    %cst_99 = arith.constant dense<0.000000e+00> : vector<2x16x16xf32>
    %332 = tpu.matmul %331, %266, %cst_99 {dimension_numbers = #tpu.dot_dimension_numbers<[2], [2], [1], [1], [0, 0, 0, 1, 1, 1], [0], [0]>} : vector<2x16x32xf32>, vector<2x16x32xf32>, vector<2x16x16xf32> -> vector<2x16x16xf32>
    "tpu.trace_stop"() : () -> ()
    %cst_100 = arith.constant 0.353553385 : f32
    %333 = vector.broadcast %cst_100 : f32 to vector<2x16x16xf32>
    %334 = arith.mulf %332, %333 : vector<2x16x16xf32>
    %335 = arith.addf %334, %58 : vector<2x16x16xf32>
    %cst_101 = arith.constant dense<0xFF800000> : vector<2x16xf32>
    %336 = vector.multi_reduction <maximumf>, %335, %cst_101 [2] : vector<2x16x16xf32> to vector<2x16xf32>
    %337 = vector.shape_cast %336 : vector<2x16xf32> to vector<2x16x1xf32>
    %338 = vector.broadcast %337 : vector<2x16x1xf32> to vector<2x16x16xf32>
    %339 = arith.subf %335, %338 : vector<2x16x16xf32>
    %340 = math.exp %339 : vector<2x16x16xf32>
    %cst_102 = arith.constant dense<0.000000e+00> : vector<2x16xf32>
    %341 = vector.multi_reduction <add>, %340, %cst_102 [2] : vector<2x16x16xf32> to vector<2x16xf32>
    %342 = vector.shape_cast %341 : vector<2x16xf32> to vector<2x16x1xf32>
    %343 = tpu.reciprocal %342 : vector<2x16x1xf32> -> vector<2x16x1xf32>
    %344 = vector.broadcast %343 : vector<2x16x1xf32> to vector<2x16x16xf32>
    %345 = arith.mulf %340, %344 : vector<2x16x16xf32>
    "tpu.trace_start"() <{level = 10 : i32, message = "bqk,bkd->bqd"}> : () -> ()
    %cst_103 = arith.constant dense<0.000000e+00> : vector<2x16x32xf32>
    %346 = tpu.matmul %345, %268, %cst_103 {dimension_numbers = #tpu.dot_dimension_numbers<[2], [1], [1], [2], [0, 0, 0, 1, 1, 2], [0], [0]>} : vector<2x16x16xf32>, vector<2x16x32xf32>, vector<2x16x32xf32> -> vector<2x16x32xf32>
    "tpu.trace_stop"() : () -> ()
    %347 = vector.broadcast %91 : vector<1x1x32xf32> to vector<2x16x32xf32>
    %348 = arith.mulf %346, %347 : vector<2x16x32xf32>
    %349 = arith.addf %329, %348 : vector<2x16x32xf32>
    %350 = vector.shape_cast %349 : vector<2x16x32xf32> to vector<32x32xf32>
    %c360 = arith.constant 360 : index
    %c0_104 = arith.constant 0 : index
    %351 = vector.load %arg2[%c360, %c0_104] : memref<624x128xf32, #tpu.memory_space<vmem>>, vector<32x32xf32>
    %cst_105 = arith.constant dense<0.000000e+00> : vector<32x32xf32>
    %352 = tpu.matmul %350, %351, %cst_105 {dimension_numbers = #tpu.dot_dimension_numbers<[1], [0], [0], [1], [0, 0, 1, 1], [], []>} : vector<32x32xf32>, vector<32x32xf32>, vector<32x32xf32> -> vector<32x32xf32>
    %c392 = arith.constant 392 : index
    %c0_106 = arith.constant 0 : index
    %353 = vector.load %arg2[%c392, %c0_106] : memref<624x128xf32, #tpu.memory_space<vmem>>, vector<1x32xf32>
    %354 = vector.broadcast %353 : vector<1x32xf32> to vector<32x32xf32>
    %355 = arith.addf %352, %354 : vector<32x32xf32>
    %356 = arith.addf %355, %257 : vector<32x32xf32>
    %c400 = arith.constant 400 : index
    %c0_107 = arith.constant 0 : index
    %357 = vector.load %arg2[%c400, %c0_107] : memref<624x128xf32, #tpu.memory_space<vmem>>, vector<1x32xf32>
    %c408 = arith.constant 408 : index
    %c0_108 = arith.constant 0 : index
    %358 = vector.load %arg2[%c408, %c0_108] : memref<624x128xf32, #tpu.memory_space<vmem>>, vector<1x32xf32>
    %cst_109 = arith.constant dense<0.000000e+00> : vector<32xf32>
    %359 = vector.multi_reduction <add>, %356, %cst_109 [1] : vector<32x32xf32> to vector<32xf32>
    %360 = vector.shape_cast %359 : vector<32xf32> to vector<32x1xf32>
    %cst_110 = arith.constant 3.200000e+01 : f32
    %361 = vector.broadcast %cst_110 : f32 to vector<32x1xf32>
    %362 = arith.divf %360, %361 : vector<32x1xf32>
    %363 = vector.broadcast %362 : vector<32x1xf32> to vector<32x32xf32>
    %364 = arith.subf %356, %363 : vector<32x32xf32>
    %365 = arith.mulf %364, %364 : vector<32x32xf32>
    %cst_111 = arith.constant dense<0.000000e+00> : vector<32xf32>
    %366 = vector.multi_reduction <add>, %365, %cst_111 [1] : vector<32x32xf32> to vector<32xf32>
    %367 = vector.shape_cast %366 : vector<32xf32> to vector<32x1xf32>
    %cst_112 = arith.constant 3.200000e+01 : f32
    %368 = vector.broadcast %cst_112 : f32 to vector<32x1xf32>
    %369 = arith.divf %367, %368 : vector<32x1xf32>
    %370 = vector.broadcast %362 : vector<32x1xf32> to vector<32x32xf32>
    %371 = arith.subf %356, %370 : vector<32x32xf32>
    %cst_113 = arith.constant 9.99999996E-13 : f32
    %372 = vector.broadcast %cst_113 : f32 to vector<32x1xf32>
    %373 = arith.addf %369, %372 : vector<32x1xf32>
    %374 = math.rsqrt %373 : vector<32x1xf32>
    %375 = vector.broadcast %374 : vector<32x1xf32> to vector<32x32xf32>
    %376 = arith.mulf %371, %375 : vector<32x32xf32>
    %377 = vector.broadcast %357 : vector<1x32xf32> to vector<32x32xf32>
    %378 = arith.mulf %376, %377 : vector<32x32xf32>
    %379 = vector.broadcast %358 : vector<1x32xf32> to vector<32x32xf32>
    %380 = arith.addf %378, %379 : vector<32x32xf32>
    %c416 = arith.constant 416 : index
    %c0_114 = arith.constant 0 : index
    %381 = vector.load %arg2[%c416, %c0_114] : memref<624x128xf32, #tpu.memory_space<vmem>>, vector<32x64xf32>
    %cst_115 = arith.constant dense<0.000000e+00> : vector<32x64xf32>
    %382 = tpu.matmul %380, %381, %cst_115 {dimension_numbers = #tpu.dot_dimension_numbers<[1], [0], [0], [1], [0, 0, 1, 1], [], []>} : vector<32x32xf32>, vector<32x64xf32>, vector<32x64xf32> -> vector<32x64xf32>
    %c448 = arith.constant 448 : index
    %c0_116 = arith.constant 0 : index
    %383 = vector.load %arg2[%c448, %c0_116] : memref<624x128xf32, #tpu.memory_space<vmem>>, vector<1x64xf32>
    %384 = vector.broadcast %383 : vector<1x64xf32> to vector<32x64xf32>
    %385 = arith.addf %382, %384 : vector<32x64xf32>
    %cst_117 = arith.constant 5.000000e-01 : f32
    %386 = vector.broadcast %cst_117 : f32 to vector<32x64xf32>
    %387 = arith.mulf %386, %385 : vector<32x64xf32>
    %cst_118 = arith.constant 0.707106769 : f32
    %388 = vector.broadcast %cst_118 : f32 to vector<32x64xf32>
    %389 = arith.mulf %385, %388 : vector<32x64xf32>
    %390 = math.erf %389 : vector<32x64xf32>
    %cst_119 = arith.constant 1.000000e+00 : f32
    %391 = vector.broadcast %cst_119 : f32 to vector<32x64xf32>
    %392 = arith.addf %391, %390 : vector<32x64xf32>
    %393 = arith.mulf %387, %392 : vector<32x64xf32>
    %c456 = arith.constant 456 : index
    %c0_120 = arith.constant 0 : index
    %394 = vector.load %arg2[%c456, %c0_120] : memref<624x128xf32, #tpu.memory_space<vmem>>, vector<64x32xf32>
    %cst_121 = arith.constant dense<0.000000e+00> : vector<32x32xf32>
    %395 = tpu.matmul %393, %394, %cst_121 {dimension_numbers = #tpu.dot_dimension_numbers<[1], [0], [0], [1], [0, 0, 1, 1], [], []>} : vector<32x64xf32>, vector<64x32xf32>, vector<32x32xf32> -> vector<32x32xf32>
    %c520 = arith.constant 520 : index
    %c0_122 = arith.constant 0 : index
    %396 = vector.load %arg2[%c520, %c0_122] : memref<624x128xf32, #tpu.memory_space<vmem>>, vector<1x32xf32>
    %397 = vector.broadcast %396 : vector<1x32xf32> to vector<32x32xf32>
    %398 = arith.addf %395, %397 : vector<32x32xf32>
    %399 = arith.addf %398, %380 : vector<32x32xf32>
    %c528 = arith.constant 528 : index
    %c0_123 = arith.constant 0 : index
    %400 = vector.load %arg2[%c528, %c0_123] : memref<624x128xf32, #tpu.memory_space<vmem>>, vector<1x32xf32>
    %c536 = arith.constant 536 : index
    %c0_124 = arith.constant 0 : index
    %401 = vector.load %arg2[%c536, %c0_124] : memref<624x128xf32, #tpu.memory_space<vmem>>, vector<1x32xf32>
    %cst_125 = arith.constant dense<0.000000e+00> : vector<32xf32>
    %402 = vector.multi_reduction <add>, %399, %cst_125 [1] : vector<32x32xf32> to vector<32xf32>
    %403 = vector.shape_cast %402 : vector<32xf32> to vector<32x1xf32>
    %cst_126 = arith.constant 3.200000e+01 : f32
    %404 = vector.broadcast %cst_126 : f32 to vector<32x1xf32>
    %405 = arith.divf %403, %404 : vector<32x1xf32>
    %406 = vector.broadcast %405 : vector<32x1xf32> to vector<32x32xf32>
    %407 = arith.subf %399, %406 : vector<32x32xf32>
    %408 = arith.mulf %407, %407 : vector<32x32xf32>
    %cst_127 = arith.constant dense<0.000000e+00> : vector<32xf32>
    %409 = vector.multi_reduction <add>, %408, %cst_127 [1] : vector<32x32xf32> to vector<32xf32>
    %410 = vector.shape_cast %409 : vector<32xf32> to vector<32x1xf32>
    %cst_128 = arith.constant 3.200000e+01 : f32
    %411 = vector.broadcast %cst_128 : f32 to vector<32x1xf32>
    %412 = arith.divf %410, %411 : vector<32x1xf32>
    %413 = vector.broadcast %405 : vector<32x1xf32> to vector<32x32xf32>
    %414 = arith.subf %399, %413 : vector<32x32xf32>
    %cst_129 = arith.constant 9.99999996E-13 : f32
    %415 = vector.broadcast %cst_129 : f32 to vector<32x1xf32>
    %416 = arith.addf %412, %415 : vector<32x1xf32>
    %417 = math.rsqrt %416 : vector<32x1xf32>
    %418 = vector.broadcast %417 : vector<32x1xf32> to vector<32x32xf32>
    %419 = arith.mulf %414, %418 : vector<32x32xf32>
    %420 = vector.broadcast %400 : vector<1x32xf32> to vector<32x32xf32>
    %421 = arith.mulf %419, %420 : vector<32x32xf32>
    %422 = vector.broadcast %401 : vector<1x32xf32> to vector<32x32xf32>
    %423 = arith.addf %421, %422 : vector<32x32xf32>
    %424 = tpu.iota {dimensions = array<i32: 1>} : vector<8x32xi32>
    %425 = vector.broadcast %3 : vector<8x1xi32> to vector<8x32xi32>
    %426 = arith.cmpi eq, %424, %425 : vector<8x32xi32>
    %cst_130 = arith.constant 1.000000e+00 : f32
    %cst_131 = arith.constant 0.000000e+00 : f32
    %427 = vector.broadcast %cst_130 : f32 to vector<8x32xf32>
    %428 = vector.broadcast %cst_131 : f32 to vector<8x32xf32>
    %429 = arith.select %426, %427, %428 : vector<8x32xi1>, vector<8x32xf32>
    %cst_132 = arith.constant dense<0.000000e+00> : vector<8x32xf32>
    %430 = tpu.matmul %429, %423, %cst_132 {dimension_numbers = #tpu.dot_dimension_numbers<[1], [0], [0], [1], [0, 0, 1, 1], [], []>} : vector<8x32xf32>, vector<32x32xf32>, vector<8x32xf32> -> vector<8x32xf32>
    %c544 = arith.constant 544 : index
    %c0_133 = arith.constant 0 : index
    %431 = vector.load %arg2[%c544, %c0_133] : memref<624x128xf32, #tpu.memory_space<vmem>>, vector<32x32xf32>
    %cst_134 = arith.constant dense<0.000000e+00> : vector<8x32xf32>
    %432 = tpu.matmul %430, %431, %cst_134 {dimension_numbers = #tpu.dot_dimension_numbers<[1], [0], [0], [1], [0, 0, 1, 1], [], []>} : vector<8x32xf32>, vector<32x32xf32>, vector<8x32xf32> -> vector<8x32xf32>
    %c576 = arith.constant 576 : index
    %c0_135 = arith.constant 0 : index
    %433 = vector.load %arg2[%c576, %c0_135] : memref<624x128xf32, #tpu.memory_space<vmem>>, vector<1x32xf32>
    %434 = vector.broadcast %433 : vector<1x32xf32> to vector<8x32xf32>
    %435 = arith.addf %432, %434 : vector<8x32xf32>
    %436 = math.tanh %435 : vector<8x32xf32>
    %c584 = arith.constant 584 : index
    %c0_136 = arith.constant 0 : index
    %437 = vector.load %arg2[%c584, %c0_136] : memref<624x128xf32, #tpu.memory_space<vmem>>, vector<32x32xf32>
    %cst_137 = arith.constant dense<0.000000e+00> : vector<8x32xf32>
    %438 = tpu.matmul %430, %437, %cst_137 {dimension_numbers = #tpu.dot_dimension_numbers<[1], [0], [0], [1], [0, 0, 1, 1], [], []>} : vector<8x32xf32>, vector<32x32xf32>, vector<8x32xf32> -> vector<8x32xf32>
    %c616 = arith.constant 616 : index
    %c0_138 = arith.constant 0 : index
    %439 = vector.load %arg2[%c616, %c0_138] : memref<624x128xf32, #tpu.memory_space<vmem>>, vector<1x32xf32>
    %440 = vector.broadcast %439 : vector<1x32xf32> to vector<8x32xf32>
    %441 = arith.addf %438, %440 : vector<8x32xf32>
    %442 = tpu.iota {dimensions = array<i32: 0>} : vector<8x32xi32>
    %c6_i32 = arith.constant 6 : i32
    %443 = vector.broadcast %c6_i32 : i32 to vector<8x32xi32>
    %444 = arith.cmpi slt, %442, %443 : vector<8x32xi32>
    %445 = arith.select %444, %430, %436 : vector<8x32xi1>, vector<8x32xf32>
    %cst_139 = arith.constant 0.000000e+00 : f32
    %446 = vector.broadcast %cst_139 : f32 to vector<8x64xf32>
    %447 = tpu.concatenate %445, %441, %446 in 1 : vector<8x32xf32>, vector<8x32xf32>, vector<8x64xf32> -> vector<8x128xf32>
    %c0_140 = arith.constant 0 : index
    %c0_141 = arith.constant 0 : index
    %448 = vector.load %arg3[%c0_140, %c0_141] : memref<8x128xf32, #tpu.memory_space<vmem>>, vector<8x128xf32>
    tpu.vector_store %arg3[%c0_140, %c0_141], %447 {strides = array<i32>} : memref<8x128xf32, #tpu.memory_space<vmem>>, vector<8x128xf32>,
    return
  }
}

</mosaic_0001>

<llo_original>
// kernel: encoder_forward.1
$region0: #{encoder_forward.1}
  #allocation0 [shape = 'u32[]', space=smem, size = 0x4, offset = 0x4, fixed_abs, tag = 'smem constant byte address 0x4 - core index']
  #allocation1 [shape = 'u32[144,128]{1,0:T(1,128)}', space=vmem, size = 0x12000, scoped, tag = 'internal scratch']
  %s0 = inlined_call_operand.vmem [shape: s32[32,4], index: 0, kind: input, shape index: {}]
  %s1 = inlined_call_operand.vmem [shape: f32[2,16], index: 1, kind: input, shape index: {}]
  %s2 = inlined_call_operand.hbm [shape: f32[624,128], index: 2, kind: input, shape index: {}]
  %s3 = inlined_call_operand.vmem [shape: f32[8,128], index: 3, kind: output, shape index: {}]
  %s4 = sld [smem:[#allocation0]]
  $region26: #{encoder_forward.1} parent=0
    _
  %s6 = ssub.s32 1, %s4
  %s7 = scalar_select 0, %s6, %s4
  $region1: #{encoder_forward.1} parent=0
    #allocation2 [shape = 'u8[319488]{0}', space=vmem, size = 0x4e000, scoped, tag = 'input window, operand 2, single buffered']
    #allocation3 [shape = 's32[1]{0}', space=sflag, size = 0x4, scoped, tag = 'scoped memory for encoder_forward.1']
    %8 = vsyncpa [#allocation3], 0
    // Predicated region
    $region2: #{encoder_forward.1} parent=1 // pred_check
      _
    $region3: #{encoder_forward.1} parent=1 // pred_check_branch
      %10 = sbr.rel (0) target = $region5
    $region4: #{encoder_forward.1} parent=1 // pred_region
      _
    $region5: #{encoder_forward.1} parent=1 // pred_fallthru
      _
    // Predicated region
    $region6: #{encoder_forward.1} parent=1 // pred_check
      _
    $region7: #{encoder_forward.1} parent=1 // pred_check_branch
      %12 = sbr.rel (0) target = $region9
    $region8: #{encoder_forward.1} parent=1 // pred_region
      _
    $region9: #{encoder_forward.1} parent=1 // pred_fallthru
      _
    // Predicated region
    $region10: #{encoder_forward.1} parent=1 // pred_check
      _
    $region11: #{encoder_forward.1} parent=1 // pred_check_branch
      %14 = sbr.rel (0) target = $region13
    $region12: #{encoder_forward.1} parent=1 // pred_region
      %s16 = ssub.s32 9984, 9984
      %17 = vsyncadd [#allocation3], %s16
      %s18 = sshll.u32 [#allocation2], 4
      %s19 = int_to_ptr.vmem [resolvable:$true] %s18
      %24 = dma.hbm_to_vmem [thread:$0]  %s2, 9984, %s19, [#allocation3], 128, 128, 8
    $region13: #{encoder_forward.1} parent=1 // pred_fallthru
      _
    // Predicated region
    $region14: #{encoder_forward.1} parent=1 // pred_check
      _
    $region15: #{encoder_forward.1} parent=1 // pred_check_branch
      %26 = sbr.rel (0) target = $region17
    $region16: #{encoder_forward.1} parent=1 // pred_region
      %27 = dma.done [#allocation3], 9984
    $region17: #{encoder_forward.1} parent=1 // pred_fallthru
      _
    %v28 = vld [vmem:[%s0] sm:$0xff]
    %v29 = vld [vmem:[%s0 + $0x8] sm:$0xff]
    %v30 = vld [vmem:[%s0 + $0x10] sm:$0xff]
    %v31 = vld [vmem:[%s0 + $0x18] sm:$0xff]
    %v32 = vlaneseq
    %v33 = vand.u32 %v32, 127
    %34 = vset.pattern.permute.xlu0 0
    %35 = vperm.xlu0 %34, %v28
    %v36 = vpop.permute.xlu0 %35
    %37 = vset.pattern.permute.xlu0 0
    %38 = vperm.xlu0 %37, %v29
    %v39 = vpop.permute.xlu0 %38
    %40 = vset.pattern.permute.xlu0 0
    %41 = vperm.xlu0 %40, %v30
    %v42 = vpop.permute.xlu0 %41
    %43 = vset.pattern.permute.xlu0 0
    %44 = vperm.xlu0 %43, %v31
    %v45 = vpop.permute.xlu0 %44
    %vm46 = vcmp.eq.s32.totalorder %v33, %v36
    %vm47 = vcmp.eq.s32.totalorder %v33, %v39
    %vm48 = vcmp.eq.s32.totalorder %v33, %v42
    %vm49 = vcmp.eq.s32.totalorder %v33, %v45
    %v50 = vsel %vm46, 1.0, 0.0
    %v51 = vsel %vm47, 1.0, 0.0
    %v52 = vsel %vm48, 1.0, 0.0
    %v53 = vsel %vm49, 1.0, 0.0
    %v54 = vadd.s32 %v28, 56
    %v55 = vadd.s32 %v29, 56
    %v56 = vadd.s32 %v30, 56
    %v57 = vadd.s32 %v31, 56
    %58 = vset.pattern.permute.xlu0 3
    %59 = vperm.xlu0 %58, %v54
    %v60 = vpop.permute.xlu0 %59
    %61 = vset.pattern.permute.xlu0 3
    %62 = vperm.xlu0 %61, %v55
    %v63 = vpop.permute.xlu0 %62
    %64 = vset.pattern.permute.xlu0 3
    %65 = vperm.xlu0 %64, %v56
    %v66 = vpop.permute.xlu0 %65
    %67 = vset.pattern.permute.xlu0 3
    %68 = vperm.xlu0 %67, %v57
    %v69 = vpop.permute.xlu0 %68
    %vm70 = vcmp.eq.s32.totalorder %v33, %v60
    %vm71 = vcmp.eq.s32.totalorder %v33, %v63
    %vm72 = vcmp.eq.s32.totalorder %v33, %v66
    %vm73 = vcmp.eq.s32.totalorder %v33, %v69
    %v74 = vsel %vm70, 1.0, 0.0
    %v75 = vsel %vm71, 1.0, 0.0
    %v76 = vsel %vm72, 1.0, 0.0
    %v77 = vsel %vm73, 1.0, 0.0
    %v78 = vadd.f32 %v50, %v74
    %v79 = vadd.f32 %v51, %v75
    %v80 = vadd.f32 %v52, %v76
    %v81 = vadd.f32 %v53, %v77
    %v82 = vadd.s32 %v28, 72
    %v83 = vadd.s32 %v29, 72
    %v84 = vadd.s32 %v30, 72
    %v85 = vadd.s32 %v31, 72
    %86 = vset.pattern.permute.xlu0 1
    %87 = vperm.xlu0 %86, %v82
    %v88 = vpop.permute.xlu0 %87
    %89 = vset.pattern.permute.xlu0 1
    %90 = vperm.xlu0 %89, %v83
    %v91 = vpop.permute.xlu0 %90
    %92 = vset.pattern.permute.xlu0 1
    %93 = vperm.xlu0 %92, %v84
    %v94 = vpop.permute.xlu0 %93
    %95 = vset.pattern.permute.xlu0 1
    %96 = vperm.xlu0 %95, %v85
    %v97 = vpop.permute.xlu0 %96
    %vm98 = vcmp.eq.s32.totalorder %v33, %v88
    %vm99 = vcmp.eq.s32.totalorder %v33, %v91
    %vm100 = vcmp.eq.s32.totalorder %v33, %v94
    %vm101 = vcmp.eq.s32.totalorder %v33, %v97
    %v102 = vsel %vm98, 1.0, 0.0
    %v103 = vsel %vm99, 1.0, 0.0
    %v104 = vsel %vm100, 1.0, 0.0
    %v105 = vsel %vm101, 1.0, 0.0
    %v106 = vadd.f32 %v78, %v102
    %v107 = vadd.f32 %v79, %v103
    %v108 = vadd.f32 %v80, %v104
    %v109 = vadd.f32 %v81, %v105
    %v110 = vld [vmem:[#allocation2] sm:$0xff]
    %v111 = vld [vmem:[#allocation2 + $0x8] sm:$0xff]
    %v112 = vld [vmem:[#allocation2 + $0x10] sm:$0xff]
    %v113 = vld [vmem:[#allocation2 + $0x18] sm:$0xff]
    %v114 = vld [vmem:[#allocation2 + $0x20] sm:$0xff]
    %v115 = vld [vmem:[#allocation2 + $0x28] sm:$0xff]
    %v116 = vld [vmem:[#allocation2 + $0x30] sm:$0xff]
    %v117 = vld [vmem:[#allocation2 + $0x38] sm:$0xff]
    %v118 = vld [vmem:[#allocation2 + $0x40] sm:$0xff]
    %v119 = vld [vmem:[#allocation2 + $0x48] sm:$0xff]
    %vm120 = vcmask 654336
    %v122 = vsel %vm120, %v106, 0
    %v125 = vsel %vm120, %v107, 0
    %v128 = vsel %vm120, %v108, 0
    %v131 = vsel %vm120, %v109, 0
    %133 = vmatprep.subr.mxu0 0.0
    %134 = vmatpush1.msra.mxu0 %v110
    %135 = vmatprep.subr.mxu0 0.0
    %136 = vmatpush1.msra.mxu0 %v111
    %137 = vmatprep.subr.mxu0 0.0
    %138 = vmatpush1.msra.mxu0 %v112
    %139 = vmatprep.subr.mxu0 0.0
    %140 = vmatpush1.msra.mxu0 %v113
    %141 = vmatprep.subr.mxu0 0.0
    %142 = vmatpush1.msra.mxu0 %v114
    %143 = vmatprep.subr.mxu0 0.0
    %144 = vmatpush1.msra.mxu0 %v115
    %145 = vmatprep.subr.mxu0 0.0
    %146 = vmatpush1.msra.mxu0 %v116
    %147 = vmatprep.subr.mxu0 0.0
    %148 = vmatpush1.msra.mxu0 %v117
    %149 = vmatprep.subr.mxu0 0.0
    %150 = vmatpush1.msra.mxu0 %v118
    %151 = vmatprep.subr.mxu0 0.0
    %152 = vmatpush1.msra.mxu0 %v119
    %153 = vmatprep.subr.mxu0 0.0
    %154 = vmatpush1.msra.mxu0 0.0
    %155 = vmatprep.subr.mxu0 0.0
    %156 = vmatpush1.msra.mxu0 0.0
    %157 = vmatprep.subr.mxu0 0.0
    %158 = vmatpush1.msra.mxu0 0.0
    %159 = vmatprep.subr.mxu0 0.0
    %160 = vmatpush1.msra.mxu0 0.0
    %161 = vmatprep.subr.mxu0 0.0
    %162 = vmatpush1.msra.mxu0 0.0
    %163 = vmatprep.subr.mxu0 0.0
    %164 = vmatpush1.msra.mxu0 0.0
    %165 = vmatprep.subr.mxu0 0.0
    %166 = vmatpush1.msra.mxu0 0.0
    %167 = vmatprep.subr.mxu0 0.0
    %168 = vmatpush1.msra.mxu0 0.0
    %169 = vmatprep.subr.mxu0 0.0
    %170 = vmatpush1.msra.mxu0 0.0
    %171 = vmatprep.subr.mxu0 0.0
    %172 = vmatpush1.msra.mxu0 0.0
    %173 = vmatprep.subr.mxu0 0.0
    %174 = vmatpush1.msra.mxu0 0.0
    %175 = vmatprep.subr.mxu0 0.0
    %176 = vmatpush1.msra.mxu0 0.0
    %177 = vmatprep.subr.mxu0 0.0
    %178 = vmatpush1.msra.mxu0 0.0
    %179 = vmatprep.subr.mxu0 0.0
    %180 = vmatpush1.msra.mxu0 0.0
    %181 = vmatprep.subr.mxu0 0.0
    %182 = vmatpush1.msra.mxu0 0.0
    %183 = vmatprep.subr.mxu0 0.0
    %184 = vmatpush1.msra.mxu0 0.0
    %185 = vmatprep.subr.mxu0 0.0
    %186 = vmatpush1.msra.mxu0 0.0
    %187 = vmatprep.subr.mxu0 0.0
    %188 = vmatpush1.msra.mxu0 0.0
    %189 = vmatprep.subr.mxu0 0.0
    %190 = vmatpush1.msra.mxu0 0.0
    %191 = vmatprep.subr.mxu0 0.0
    %192 = vmatpush1.msra.mxu0 0.0
    %193 = vmatprep.subr.mxu0 0.0
    %194 = vmatpush1.msra.mxu0 0.0
    %195 = vmatprep.subr.mxu0 0.0
    %196 = vmatpush1.msra.mxu0 0.0
    %197 = vmatprep.mubr.f32.mxu0 0.0
    %198 = vmatmul.mubr.f32.gmra.mrb[0].mxu0 %v122
    %v199 = vpop.f32.mrb[0].mxu0
    %v200 = vadd.f32 0.0, %v199
    %v201 = vpop.f32.mrb[0].mxu0
    %202 = vmatprep.mubr.f32.mxu0 0.0
    %203 = vmatmul.mubr.f32.gmra.mrb[0].mxu0 %v125
    %v204 = vpop.f32.mrb[0].mxu0
    %v205 = vadd.f32 0.0, %v204
    %v206 = vpop.f32.mrb[0].mxu0
    %207 = vmatprep.mubr.f32.mxu0 0.0
    %208 = vmatmul.mubr.f32.gmra.mrb[0].mxu0 %v128
    %v209 = vpop.f32.mrb[0].mxu0
    %v210 = vadd.f32 0.0, %v209
    %v211 = vpop.f32.mrb[0].mxu0
    %212 = vmatprep.mubr.f32.mxu0 0.0
    %213 = vmatmul.mubr.f32.gmra.mrb[0].mxu0 %v131
    %v214 = vpop.f32.mrb[0].mxu0
    %v215 = vadd.f32 0.0, %v214
    %v216 = vpop.f32.mrb[0].mxu0
    %217 = vdwg.mxu0
    %v218 = vld [vmem:[#allocation2 + $0x50] sm:$0x1]
    %v219 = vld [vmem:[#allocation2 + $0x58] sm:$0x1]
    %vm220 = vcmask 261120
    %v221 = vsel %vm220, %v200, 0.0
    %222 = vadd.xlane.f32.xlu0 %v221
    %v223 = vpop.xlane.xlu0 %222
    %v224 = vsel %vm220, %v205, 0.0
    %225 = vadd.xlane.f32.xlu0 %v224
    %v226 = vpop.xlane.xlu0 %225
    %v227 = vsel %vm220, %v210, 0.0
    %228 = vadd.xlane.f32.xlu0 %v227
    %v229 = vpop.xlane.xlu0 %228
    %v230 = vsel %vm220, %v215, 0.0
    %231 = vadd.xlane.f32.xlu0 %v230
    %v232 = vpop.xlane.xlu0 %231
    %v233 = vrcp.pop 32.0
    %v234 = vmul.f32 %v223, %v233
    %v235 = vmul.f32 %v226, %v233
    %v236 = vmul.f32 %v229, %v233
    %v237 = vmul.f32 %v232, %v233
    %v238 = vsub.f32 %v200, %v234
    %v239 = vsub.f32 %v205, %v235
    %v240 = vsub.f32 %v210, %v236
    %v241 = vsub.f32 %v215, %v237
    %v242 = vmul.f32 %v238, %v238
    %v243 = vmul.f32 %v239, %v239
    %v244 = vmul.f32 %v240, %v240
    %v245 = vmul.f32 %v241, %v241
    %v246 = vsel %vm220, %v242, 0.0
    %247 = vadd.xlane.f32.xlu0 %v246
    %v248 = vpop.xlane.xlu0 %247
    %v249 = vsel %vm220, %v243, 0.0
    %250 = vadd.xlane.f32.xlu0 %v249
    %v251 = vpop.xlane.xlu0 %250
    %v252 = vsel %vm220, %v244, 0.0
    %253 = vadd.xlane.f32.xlu0 %v252
    %v254 = vpop.xlane.xlu0 %253
    %v255 = vsel %vm220, %v245, 0.0
    %256 = vadd.xlane.f32.xlu0 %v255
    %v257 = vpop.xlane.xlu0 %256
    %v258 = vmul.f32 %v248, %v233
    %v259 = vmul.f32 %v251, %v233
    %v260 = vmul.f32 %v254, %v233
    %v261 = vmul.f32 %v257, %v233
    %v262 = vadd.f32 %v258, 1e-12
    %v263 = vadd.f32 %v259, 1e-12
    %v264 = vadd.f32 %v260, 1e-12
    %v265 = vadd.f32 %v261, 1e-12
    %v266 = vrsqrt.pop %v262
    %v267 = vrsqrt.pop %v263
    %v268 = vrsqrt.pop %v264
    %v269 = vrsqrt.pop %v265
    %v270 = vmul.f32 %v238, %v266
    %v271 = vmul.f32 %v239, %v267
    %v272 = vmul.f32 %v240, %v268
    %v273 = vmul.f32 %v241, %v269
    %v274 = vlaneseq
    %v275 = vshrl.u32 %v274, 7
    %v276 = vsub.s32 0, %v275
    %v277 = vrot.slane %v218, %v276
    %v278 = vmul.f32 %v270, %v277
    %v279 = vmul.f32 %v271, %v277
    %v280 = vmul.f32 %v272, %v277
    %v281 = vmul.f32 %v273, %v277
    %v282 = vlaneseq
    %v283 = vshrl.u32 %v282, 7
    %v284 = vsub.s32 0, %v283
    %v285 = vrot.slane %v219, %v284
    %v286 = vadd.f32 %v278, %v285
    %v287 = vadd.f32 %v279, %v285
    %v288 = vadd.f32 %v280, %v285
    %v289 = vadd.f32 %v281, %v285
    %v290 = vld [vmem:[%s1] sm:$0x3]
    %v293 = vunpack.c.l.s4 1966171168
    %v294 = vunpack.c.0.s8 %v293
    %v295 = vlaneseq
    %v296 = vshrl.u32 %v295, 7
    %v297 = vsub.s32 %v294, %v296
    %v298 = vrot.slane %v290, %v297
    %v299 = vcombine.high %v298, %v298
    %v301 = vunpack.c.l.s4 1966171168
    %v302 = vunpack.c.0.s8 %v301
    %v303 = vlaneseq
    %v304 = vshrl.u32 %v303, 7
    %v305 = vsub.s32 %v302, %v304
    %v306 = vrot.slane %v298, %v305
    %v308 = vunpack.c.l.s4 1966171168
    %v309 = vunpack.c.0.s8 %v308
    %v310 = vlaneseq
    %v311 = vshrl.u32 %v310, 7
    %v312 = vsub.s32 %v309, %v311
    %v313 = vrot.slane %v299, %v312
    %v314 = vlaneseq
    %v315 = vshrl.u32 %v314, 7
    %v316 = vsub.s32 0, %v315
    %v317 = vrot.slane %v306, %v316
    %v318 = vlaneseq
    %v319 = vshrl.u32 %v318, 7
    %v320 = vsub.s32 0, %v319
    %v321 = vrot.slane %v313, %v320
    %vm324 = vcmp.ge.s32.totalorder %v33, 0
    %vm325 = vcmp.lt.s32.totalorder %v33, 8
    %vm326 = vmand %vm324, %vm325
    %v327 = vsel %vm326, 1.0, 0.0
    %vm328 = vcmp.ge.s32.totalorder %v33, 8
    %vm329 = vcmp.lt.s32.totalorder %v33, 16
    %vm330 = vmand %vm328, %vm329
    %v331 = vsel %vm330, 1.0, 0.0
    %vm332 = vcmp.ge.s32.totalorder %v33, 16
    %vm333 = vcmp.lt.s32.totalorder %v33, 24
    %vm334 = vmand %vm332, %vm333
    %v335 = vsel %vm334, 1.0, 0.0
    %vm336 = vcmp.ge.s32.totalorder %v33, 24
    %vm337 = vcmp.lt.s32.totalorder %v33, 32
    %vm338 = vmand %vm336, %vm337
    %v339 = vsel %vm338, 1.0, 0.0
    %v340 = vld [vmem:[#allocation2 + $0x60] sm:$0xff]
    %v341 = vld [vmem:[#allocation2 + $0x68] sm:$0xff]
    %v342 = vld [vmem:[#allocation2 + $0x70] sm:$0xff]
    %v343 = vld [vmem:[#allocation2 + $0x78] sm:$0xff]
    %v344 = vld [vmem:[#allocation2 + $0x80] sm:$0x1]
    %v345 = vlaneseq
    %v346 = vshrl.u32 %v345, 7
    %v347 = vsub.s32 0, %v346
    %v348 = vrot.slane %v344, %v347
    %v350 = vsel %vm220, %v286, 0
    %v353 = vsel %vm220, %v287, 0
    %v356 = vsel %vm220, %v288, 0
    %v359 = vsel %vm220, %v289, 0
    %361 = vmatprep.subr.mxu0 0.0
    %362 = vmatpush1.msra.mxu0 %v340
    %363 = vmatprep.subr.mxu0 0.0
    %364 = vmatpush1.msra.mxu0 %v341
    %365 = vmatprep.subr.mxu0 0.0
    %366 = vmatpush1.msra.mxu0 %v342
    %367 = vmatprep.subr.mxu0 0.0
    %368 = vmatpush1.msra.mxu0 %v343
    %369 = vmatprep.subr.mxu0 0.0
    %370 = vmatpush1.msra.mxu0 0.0
    %371 = vmatprep.subr.mxu0 0.0
    %372 = vmatpush1.msra.mxu0 0.0
    %373 = vmatprep.subr.mxu0 0.0
    %374 = vmatpush1.msra.mxu0 0.0
    %375 = vmatprep.subr.mxu0 0.0
    %376 = vmatpush1.msra.mxu0 0.0
    %377 = vmatprep.subr.mxu0 0.0
    %378 = vmatpush1.msra.mxu0 0.0
    %379 = vmatprep.subr.mxu0 0.0
    %380 = vmatpush1.msra.mxu0 0.0
    %381 = vmatprep.subr.mxu0 0.0
    %382 = vmatpush1.msra.mxu0 0.0
    %383 = vmatprep.subr.mxu0 0.0
    %384 = vmatpush1.msra.mxu0 0.0
    %385 = vmatprep.subr.mxu0 0.0
    %386 = vmatpush1.msra.mxu0 0.0
    %387 = vmatprep.subr.mxu0 0.0
    %388 = vmatpush1.msra.mxu0 0.0
    %389 = vmatprep.subr.mxu0 0.0
    %390 = vmatpush1.msra.mxu0 0.0
    %391 = vmatprep.subr.mxu0 0.0
    %392 = vmatpush1.msra.mxu0 0.0
    %393 = vmatprep.subr.mxu0 0.0
    %394 = vmatpush1.msra.mxu0 0.0
    %395 = vmatprep.subr.mxu0 0.0
    %396 = vmatpush1.msra.mxu0 0.0
    %397 = vmatprep.subr.mxu0 0.0
    %398 = vmatpush1.msra.mxu0 0.0
    %399 = vmatprep.subr.mxu0 0.0
    %400 = vmatpush1.msra.mxu0 0.0
    %401 = vmatprep.subr.mxu0 0.0
    %402 = vmatpush1.msra.mxu0 0.0
    %403 = vmatprep.subr.mxu0 0.0
    %404 = vmatpush1.msra.mxu0 0.0
    %405 = vmatprep.subr.mxu0 0.0
    %406 = vmatpush1.msra.mxu0 0.0
    %407 = vmatprep.subr.mxu0 0.0
    %408 = vmatpush1.msra.mxu0 0.0
    %409 = vmatprep.subr.mxu0 0.0
    %410 = vmatpush1.msra.mxu0 0.0
    %411 = vmatprep.subr.mxu0 0.0
    %412 = vmatpush1.msra.mxu0 0.0
    %413 = vmatprep.subr.mxu0 0.0
    %414 = vmatpush1.msra.mxu0 0.0
    %415 = vmatprep.subr.mxu0 0.0
    %416 = vmatpush1.msra.mxu0 0.0
    %417 = vmatprep.subr.mxu0 0.0
    %418 = vmatpush1.msra.mxu0 0.0
    %419 = vmatprep.subr.mxu0 0.0
    %420 = vmatpush1.msra.mxu0 0.0
    %421 = vmatprep.subr.mxu0 0.0
    %422 = vmatpush1.msra.mxu0 0.0
    %423 = vmatprep.subr.mxu0 0.0
    %424 = vmatpush1.msra.mxu0 0.0
    %425 = vmatprep.mubr.f32.mxu0 0.0
    %426 = vmatmul.mubr.f32.gmra.mrb[0].mxu0 %v350
    %v427 = vpop.f32.mrb[0].mxu0
    %v428 = vadd.f32 %v348, %v427
    %v429 = vpop.f32.mrb[0].mxu0
    %430 = vmatprep.mubr.f32.mxu0 0.0
    %431 = vmatmul.mubr.f32.gmra.mrb[0].mxu0 %v353
    %v432 = vpop.f32.mrb[0].mxu0
    %v433 = vadd.f32 %v348, %v432
    %v434 = vpop.f32.mrb[0].mxu0
    %435 = vmatprep.mubr.f32.mxu0 0.0
    %436 = vmatmul.mubr.f32.gmra.mrb[0].mxu0 %v356
    %v437 = vpop.f32.mrb[0].mxu0
    %v438 = vadd.f32 %v348, %v437
    %v439 = vpop.f32.mrb[0].mxu0
    %440 = vmatprep.mubr.f32.mxu0 0.0
    %441 = vmatmul.mubr.f32.gmra.mrb[0].mxu0 %v359
    %v442 = vpop.f32.mrb[0].mxu0
    %v443 = vadd.f32 %v348, %v442
    %v444 = vpop.f32.mrb[0].mxu0
    %445 = vdwg.mxu0
    %v446 = vmul.f32 %v428, %v327
    %v447 = vmul.f32 %v433, %v327
    %v448 = vmul.f32 %v438, %v327
    %v449 = vmul.f32 %v443, %v327
    %452 = vrot.lane.b32.xlu0 %v428, 96
    %v453 = vpop.permute.xlu0 %452
    %454 = vrot.lane.b32.xlu0 %v433, 96
    %v455 = vpop.permute.xlu0 %454
    %v457 = vsel %vm220, %v446, 0
    %v460 = vsel %vm220, %v447, 0
    %v462 = vsel %vm220, %v453, 0
    %v464 = vsel %vm220, %v455, 0
    %466 = vmatprep.subr.mxu0 0.0
    %467 = vmatpush1.xpose.msra.mxu0 %v462
    %468 = vmatprep.subr.mxu0 0.0
    %469 = vmatpush1.xpose.msra.mxu0 %v464
    %470 = vmatprep.subr.mxu0 0.0
    %471 = vmatpush1.xpose.msra.mxu0 0.0
    %472 = vmatprep.subr.mxu0 0.0
    %473 = vmatpush1.xpose.msra.mxu0 0.0
    %474 = vmatprep.subr.mxu0 0.0
    %475 = vmatpush1.xpose.msra.mxu0 0.0
    %476 = vmatprep.subr.mxu0 0.0
    %477 = vmatpush1.xpose.msra.mxu0 0.0
    %478 = vmatprep.subr.mxu0 0.0
    %479 = vmatpush1.xpose.msra.mxu0 0.0
    %480 = vmatprep.subr.mxu0 0.0
    %481 = vmatpush1.xpose.msra.mxu0 0.0
    %482 = vmatprep.subr.mxu0 0.0
    %483 = vmatpush1.xpose.msra.mxu0 0.0
    %484 = vmatprep.subr.mxu0 0.0
    %485 = vmatpush1.xpose.msra.mxu0 0.0
    %486 = vmatprep.subr.mxu0 0.0
    %487 = vmatpush1.xpose.msra.mxu0 0.0
    %488 = vmatprep.subr.mxu0 0.0
    %489 = vmatpush1.xpose.msra.mxu0 0.0
    %490 = vmatprep.subr.mxu0 0.0
    %491 = vmatpush1.xpose.msra.mxu0 0.0
    %492 = vmatprep.subr.mxu0 0.0
    %493 = vmatpush1.xpose.msra.mxu0 0.0
    %494 = vmatprep.subr.mxu0 0.0
    %495 = vmatpush1.xpose.msra.mxu0 0.0
    %496 = vmatprep.subr.mxu0 0.0
    %497 = vmatpush1.xpose.msra.mxu0 0.0
    %498 = vmatprep.subr.mxu0 0.0
    %499 = vmatpush1.xpose.msra.mxu0 0.0
    %500 = vmatprep.subr.mxu0 0.0
    %501 = vmatpush1.xpose.msra.mxu0 0.0
    %502 = vmatprep.subr.mxu0 0.0
    %503 = vmatpush1.xpose.msra.mxu0 0.0
    %504 = vmatprep.subr.mxu0 0.0
    %505 = vmatpush1.xpose.msra.mxu0 0.0
    %506 = vmatprep.subr.mxu0 0.0
    %507 = vmatpush1.xpose.msra.mxu0 0.0
    %508 = vmatprep.subr.mxu0 0.0
    %509 = vmatpush1.xpose.msra.mxu0 0.0
    %510 = vmatprep.subr.mxu0 0.0
    %511 = vmatpush1.xpose.msra.mxu0 0.0
    %512 = vmatprep.subr.mxu0 0.0
    %513 = vmatpush1.xpose.msra.mxu0 0.0
    %514 = vmatprep.subr.mxu0 0.0
    %515 = vmatpush1.xpose.msra.mxu0 0.0
    %516 = vmatprep.subr.mxu0 0.0
    %517 = vmatpush1.xpose.msra.mxu0 0.0
    %518 = vmatprep.subr.mxu0 0.0
    %519 = vmatpush1.xpose.msra.mxu0 0.0
    %520 = vmatprep.subr.mxu0 0.0
    %521 = vmatpush1.xpose.msra.mxu0 0.0
    %522 = vmatprep.subr.mxu0 0.0
    %523 = vmatpush1.xpose.msra.mxu0 0.0
    %524 = vmatprep.subr.mxu0 0.0
    %525 = vmatpush1.xpose.msra.mxu0 0.0
    %526 = vmatprep.subr.mxu0 0.0
    %527 = vmatpush1.xpose.msra.mxu0 0.0
    %528 = vmatprep.subr.mxu0 0.0
    %529 = vmatpush1.xpose.msra.mxu0 0.0
    %530 = vmatprep.mubr.f32.mxu0 0.0
    %531 = vmatmul.mubr.f32.gmra.mrb[0].mxu0 %v457
    %v532 = vpop.f32.mrb[0].mxu0
    %v533 = vadd.f32 0.0, %v532
    %v534 = vpop.f32.mrb[0].mxu0
    %535 = vmatprep.mubr.f32.mxu0 0.0
    %536 = vmatmul.mubr.f32.gmra.mrb[0].mxu0 %v460
    %v537 = vpop.f32.mrb[0].mxu0
    %v538 = vadd.f32 0.0, %v537
    %v539 = vpop.f32.mrb[0].mxu0
    %540 = vdwg.mxu0
    %543 = vrot.lane.b32.xlu0 %v438, 96
    %v544 = vpop.permute.xlu0 %543
    %545 = vrot.lane.b32.xlu0 %v443, 96
    %v546 = vpop.permute.xlu0 %545
    %v548 = vsel %vm220, %v448, 0
    %v551 = vsel %vm220, %v449, 0
    %v553 = vsel %vm220, %v544, 0
    %v555 = vsel %vm220, %v546, 0
    %557 = vmatprep.subr.mxu0 0.0
    %558 = vmatpush1.xpose.msra.mxu0 %v553
    %559 = vmatprep.subr.mxu0 0.0
    %560 = vmatpush1.xpose.msra.mxu0 %v555
    %561 = vmatprep.subr.mxu0 0.0
    %562 = vmatpush1.xpose.msra.mxu0 0.0
    %563 = vmatprep.subr.mxu0 0.0
    %564 = vmatpush1.xpose.msra.mxu0 0.0
    %565 = vmatprep.subr.mxu0 0.0
    %566 = vmatpush1.xpose.msra.mxu0 0.0
    %567 = vmatprep.subr.mxu0 0.0
    %568 = vmatpush1.xpose.msra.mxu0 0.0
    %569 = vmatprep.subr.mxu0 0.0
    %570 = vmatpush1.xpose.msra.mxu0 0.0
    %571 = vmatprep.subr.mxu0 0.0
    %572 = vmatpush1.xpose.msra.mxu0 0.0
    %573 = vmatprep.subr.mxu0 0.0
    %574 = vmatpush1.xpose.msra.mxu0 0.0
    %575 = vmatprep.subr.mxu0 0.0
    %576 = vmatpush1.xpose.msra.mxu0 0.0
    %577 = vmatprep.subr.mxu0 0.0
    %578 = vmatpush1.xpose.msra.mxu0 0.0
    %579 = vmatprep.subr.mxu0 0.0
    %580 = vmatpush1.xpose.msra.mxu0 0.0
    %581 = vmatprep.subr.mxu0 0.0
    %582 = vmatpush1.xpose.msra.mxu0 0.0
    %583 = vmatprep.subr.mxu0 0.0
    %584 = vmatpush1.xpose.msra.mxu0 0.0
    %585 = vmatprep.subr.mxu0 0.0
    %586 = vmatpush1.xpose.msra.mxu0 0.0
    %587 = vmatprep.subr.mxu0 0.0
    %588 = vmatpush1.xpose.msra.mxu0 0.0
    %589 = vmatprep.subr.mxu0 0.0
    %590 = vmatpush1.xpose.msra.mxu0 0.0
    %591 = vmatprep.subr.mxu0 0.0
    %592 = vmatpush1.xpose.msra.mxu0 0.0
    %593 = vmatprep.subr.mxu0 0.0
    %594 = vmatpush1.xpose.msra.mxu0 0.0
    %595 = vmatprep.subr.mxu0 0.0
    %596 = vmatpush1.xpose.msra.mxu0 0.0
    %597 = vmatprep.subr.mxu0 0.0
    %598 = vmatpush1.xpose.msra.mxu0 0.0
    %599 = vmatprep.subr.mxu0 0.0
    %600 = vmatpush1.xpose.msra.mxu0 0.0
    %601 = vmatprep.subr.mxu0 0.0
    %602 = vmatpush1.xpose.msra.mxu0 0.0
    %603 = vmatprep.subr.mxu0 0.0
    %604 = vmatpush1.xpose.msra.mxu0 0.0
    %605 = vmatprep.subr.mxu0 0.0
    %606 = vmatpush1.xpose.msra.mxu0 0.0
    %607 = vmatprep.subr.mxu0 0.0
    %608 = vmatpush1.xpose.msra.mxu0 0.0
    %609 = vmatprep.subr.mxu0 0.0
    %610 = vmatpush1.xpose.msra.mxu0 0.0
    %611 = vmatprep.subr.mxu0 0.0
    %612 = vmatpush1.xpose.msra.mxu0 0.0
    %613 = vmatprep.subr.mxu0 0.0
    %614 = vmatpush1.xpose.msra.mxu0 0.0
    %615 = vmatprep.subr.mxu0 0.0
    %616 = vmatpush1.xpose.msra.mxu0 0.0
    %617 = vmatprep.subr.mxu0 0.0
    %618 = vmatpush1.xpose.msra.mxu0 0.0
    %619 = vmatprep.subr.mxu0 0.0
    %620 = vmatpush1.xpose.msra.mxu0 0.0
    %621 = vmatprep.mubr.f32.mxu0 0.0
    %622 = vmatmul.mubr.f32.gmra.mrb[0].mxu0 %v548
    %v623 = vpop.f32.mrb[0].mxu0
    %v624 = vadd.f32 0.0, %v623
    %v625 = vpop.f32.mrb[0].mxu0
    %626 = vmatprep.mubr.f32.mxu0 0.0
    %627 = vmatmul.mubr.f32.gmra.mrb[0].mxu0 %v551
    %v628 = vpop.f32.mrb[0].mxu0
    %v629 = vadd.f32 0.0, %v628
    %v630 = vpop.f32.mrb[0].mxu0
    %631 = vdwg.mxu0
    %v632 = vmul.f32 %v533, 0.35355338
    %v633 = vmul.f32 %v538, 0.35355338
    %v634 = vmul.f32 %v624, 0.35355338
    %v635 = vmul.f32 %v629, 0.35355338
    %v636 = vadd.f32 %v632, %v317
    %v637 = vadd.f32 %v633, %v317
    %v638 = vadd.f32 %v634, %v321
    %v639 = vadd.f32 %v635, %v321
    %vm640 = vcmask 130048
    %v641 = vsel %vm640, %v636, -inf
    %642 = vmax.xlane.f32.xlu0 %v641
    %v643 = vpop.xlane.xlu0 %642
    %v644 = vsel %vm640, %v637, -inf
    %645 = vmax.xlane.f32.xlu0 %v644
    %v646 = vpop.xlane.xlu0 %645
    %v647 = vsel %vm640, %v638, -inf
    %648 = vmax.xlane.f32.xlu0 %v647
    %v649 = vpop.xlane.xlu0 %648
    %v650 = vsel %vm640, %v639, -inf
    %651 = vmax.xlane.f32.xlu0 %v650
    %v652 = vpop.xlane.xlu0 %651
    %v653 = vsub.f32 %v636, %v643
    %v654 = vsub.f32 %v637, %v646
    %v655 = vsub.f32 %v638, %v649
    %v656 = vsub.f32 %v639, %v652
    %v657 = vmul.f32 %v653, 1.442695
    %v658 = vpow.pop %v657
    %v659 = vmul.f32 %v654, 1.442695
    %v660 = vpow.pop %v659
    %v661 = vmul.f32 %v655, 1.442695
    %v662 = vpow.pop %v661
    %v663 = vmul.f32 %v656, 1.442695
    %v664 = vpow.pop %v663
    %v665 = vsel %vm640, %v658, 0.0
    %666 = vadd.xlane.f32.xlu0 %v665
    %v667 = vpop.xlane.xlu0 %666
    %v668 = vsel %vm640, %v660, 0.0
    %669 = vadd.xlane.f32.xlu0 %v668
    %v670 = vpop.xlane.xlu0 %669
    %v671 = vsel %vm640, %v662, 0.0
    %672 = vadd.xlane.f32.xlu0 %v671
    %v673 = vpop.xlane.xlu0 %672
    %v674 = vsel %vm640, %v664, 0.0
    %675 = vadd.xlane.f32.xlu0 %v674
    %v676 = vpop.xlane.xlu0 %675
    %v677 = vrcp.pop %v667
    %v678 = vrcp.pop %v670
    %v679 = vrcp.pop %v673
    %v680 = vrcp.pop %v676
    %v681 = vmul.f32 %v658, %v677
    %v682 = vmul.f32 %v660, %v678
    %v683 = vmul.f32 %v662, %v679
    %v684 = vmul.f32 %v664, %v680
    %685 = vrot.lane.b32.xlu0 %v428, 64
    %v686 = vpop.permute.xlu0 %685
    %687 = vrot.lane.b32.xlu0 %v433, 64
    %v688 = vpop.permute.xlu0 %687
    %v692 = vsel %vm640, %v681, 0
    %v695 = vsel %vm640, %v682, 0
    %697 = vmatprep.subr.mxu0 0.0
    %698 = vmatpush1.msra.mxu0 %v686
    %699 = vmatprep.subr.mxu0 0.0
    %700 = vmatpush1.msra.mxu0 %v688
    %701 = vmatprep.subr.mxu0 0.0
    %702 = vmatpush1.msra.mxu0 0.0
    %703 = vmatprep.subr.mxu0 0.0
    %704 = vmatpush1.msra.mxu0 0.0
    %705 = vmatprep.subr.mxu0 0.0
    %706 = vmatpush1.msra.mxu0 0.0
    %707 = vmatprep.subr.mxu0 0.0
    %708 = vmatpush1.msra.mxu0 0.0
    %709 = vmatprep.subr.mxu0 0.0
    %710 = vmatpush1.msra.mxu0 0.0
    %711 = vmatprep.subr.mxu0 0.0
    %712 = vmatpush1.msra.mxu0 0.0
    %713 = vmatprep.subr.mxu0 0.0
    %714 = vmatpush1.msra.mxu0 0.0
    %715 = vmatprep.subr.mxu0 0.0
    %716 = vmatpush1.msra.mxu0 0.0
    %717 = vmatprep.subr.mxu0 0.0
    %718 = vmatpush1.msra.mxu0 0.0
    %719 = vmatprep.subr.mxu0 0.0
    %720 = vmatpush1.msra.mxu0 0.0
    %721 = vmatprep.subr.mxu0 0.0
    %722 = vmatpush1.msra.mxu0 0.0
    %723 = vmatprep.subr.mxu0 0.0
    %724 = vmatpush1.msra.mxu0 0.0
    %725 = vmatprep.subr.mxu0 0.0
    %726 = vmatpush1.msra.mxu0 0.0
    %727 = vmatprep.subr.mxu0 0.0
    %728 = vmatpush1.msra.mxu0 0.0
    %729 = vmatprep.subr.mxu0 0.0
    %730 = vmatpush1.msra.mxu0 0.0
    %731 = vmatprep.subr.mxu0 0.0
    %732 = vmatpush1.msra.mxu0 0.0
    %733 = vmatprep.subr.mxu0 0.0
    %734 = vmatpush1.msra.mxu0 0.0
    %735 = vmatprep.subr.mxu0 0.0
    %736 = vmatpush1.msra.mxu0 0.0
    %737 = vmatprep.subr.mxu0 0.0
    %738 = vmatpush1.msra.mxu0 0.0
    %739 = vmatprep.subr.mxu0 0.0
    %740 = vmatpush1.msra.mxu0 0.0
    %741 = vmatprep.subr.mxu0 0.0
    %742 = vmatpush1.msra.mxu0 0.0
    %743 = vmatprep.subr.mxu0 0.0
    %744 = vmatpush1.msra.mxu0 0.0
    %745 = vmatprep.subr.mxu0 0.0
    %746 = vmatpush1.msra.mxu0 0.0
    %747 = vmatprep.subr.mxu0 0.0
    %748 = vmatpush1.msra.mxu0 0.0
    %749 = vmatprep.subr.mxu0 0.0
    %750 = vmatpush1.msra.mxu0 0.0
    %751 = vmatprep.subr.mxu0 0.0
    %752 = vmatpush1.msra.mxu0 0.0
    %753 = vmatprep.subr.mxu0 0.0
    %754 = vmatpush1.msra.mxu0 0.0
    %755 = vmatprep.subr.mxu0 0.0
    %756 = vmatpush1.msra.mxu0 0.0
    %757 = vmatprep.subr.mxu0 0.0
    %758 = vmatpush1.msra.mxu0 0.0
    %759 = vmatprep.subr.mxu0 0.0
    %760 = vmatpush1.msra.mxu0 0.0
    %761 = vmatprep.mubr.f32.mxu0 0.0
    %762 = vmatmul.mubr.f32.gmra.mrb[0].mxu0 %v692
    %v763 = vpop.f32.mrb[0].mxu0
    %v764 = vadd.f32 0.0, %v763
    %v765 = vpop.f32.mrb[0].mxu0
    %766 = vmatprep.mubr.f32.mxu0 0.0
    %767 = vmatmul.mubr.f32.gmra.mrb[0].mxu0 %v695
    %v768 = vpop.f32.mrb[0].mxu0
    %v769 = vadd.f32 0.0, %v768
    %v770 = vpop.f32.mrb[0].mxu0
    %771 = vdwg.mxu0
    %772 = vrot.lane.b32.xlu0 %v438, 64
    %v773 = vpop.permute.xlu0 %772
    %774 = vrot.lane.b32.xlu0 %v443, 64
    %v775 = vpop.permute.xlu0 %774
    %v779 = vsel %vm640, %v683, 0
    %v782 = vsel %vm640, %v684, 0
    %784 = vmatprep.subr.mxu0 0.0
    %785 = vmatpush1.msra.mxu0 %v773
    %786 = vmatprep.subr.mxu0 0.0
    %787 = vmatpush1.msra.mxu0 %v775
    %788 = vmatprep.subr.mxu0 0.0
    %789 = vmatpush1.msra.mxu0 0.0
    %790 = vmatprep.subr.mxu0 0.0
    %791 = vmatpush1.msra.mxu0 0.0
    %792 = vmatprep.subr.mxu0 0.0
    %793 = vmatpush1.msra.mxu0 0.0
    %794 = vmatprep.subr.mxu0 0.0
    %795 = vmatpush1.msra.mxu0 0.0
    %796 = vmatprep.subr.mxu0 0.0
    %797 = vmatpush1.msra.mxu0 0.0
    %798 = vmatprep.subr.mxu0 0.0
    %799 = vmatpush1.msra.mxu0 0.0
    %800 = vmatprep.subr.mxu0 0.0
    %801 = vmatpush1.msra.mxu0 0.0
    %802 = vmatprep.subr.mxu0 0.0
    %803 = vmatpush1.msra.mxu0 0.0
    %804 = vmatprep.subr.mxu0 0.0
    %805 = vmatpush1.msra.mxu0 0.0
    %806 = vmatprep.subr.mxu0 0.0
    %807 = vmatpush1.msra.mxu0 0.0
    %808 = vmatprep.subr.mxu0 0.0
    %809 = vmatpush1.msra.mxu0 0.0
    %810 = vmatprep.subr.mxu0 0.0
    %811 = vmatpush1.msra.mxu0 0.0
    %812 = vmatprep.subr.mxu0 0.0
    %813 = vmatpush1.msra.mxu0 0.0
    %814 = vmatprep.subr.mxu0 0.0
    %815 = vmatpush1.msra.mxu0 0.0
    %816 = vmatprep.subr.mxu0 0.0
    %817 = vmatpush1.msra.mxu0 0.0
    %818 = vmatprep.subr.mxu0 0.0
    %819 = vmatpush1.msra.mxu0 0.0
    %820 = vmatprep.subr.mxu0 0.0
    %821 = vmatpush1.msra.mxu0 0.0
    %822 = vmatprep.subr.mxu0 0.0
    %823 = vmatpush1.msra.mxu0 0.0
    %824 = vmatprep.subr.mxu0 0.0
    %825 = vmatpush1.msra.mxu0 0.0
    %826 = vmatprep.subr.mxu0 0.0
    %827 = vmatpush1.msra.mxu0 0.0
    %828 = vmatprep.subr.mxu0 0.0
    %829 = vmatpush1.msra.mxu0 0.0
    %830 = vmatprep.subr.mxu0 0.0
    %831 = vmatpush1.msra.mxu0 0.0
    %832 = vmatprep.subr.mxu0 0.0
    %833 = vmatpush1.msra.mxu0 0.0
    %834 = vmatprep.subr.mxu0 0.0
    %835 = vmatpush1.msra.mxu0 0.0
    %836 = vmatprep.subr.mxu0 0.0
    %837 = vmatpush1.msra.mxu0 0.0
    %838 = vmatprep.subr.mxu0 0.0
    %839 = vmatpush1.msra.mxu0 0.0
    %840 = vmatprep.subr.mxu0 0.0
    %841 = vmatpush1.msra.mxu0 0.0
    %842 = vmatprep.subr.mxu0 0.0
    %843 = vmatpush1.msra.mxu0 0.0
    %844 = vmatprep.subr.mxu0 0.0
    %845 = vmatpush1.msra.mxu0 0.0
    %846 = vmatprep.subr.mxu0 0.0
    %847 = vmatpush1.msra.mxu0 0.0
    %848 = vmatprep.mubr.f32.mxu0 0.0
    %849 = vmatmul.mubr.f32.gmra.mrb[0].mxu0 %v779
    %v850 = vpop.f32.mrb[0].mxu0
    %v851 = vadd.f32 0.0, %v850
    %v852 = vpop.f32.mrb[0].mxu0
    %853 = vmatprep.mubr.f32.mxu0 0.0
    %854 = vmatmul.mubr.f32.gmra.mrb[0].mxu0 %v782
    %v855 = vpop.f32.mrb[0].mxu0
    %v856 = vadd.f32 0.0, %v855
    %v857 = vpop.f32.mrb[0].mxu0
    %858 = vdwg.mxu0
    %v859 = vmul.f32 %v764, %v327
    %v860 = vmul.f32 %v769, %v327
    %v861 = vmul.f32 %v851, %v327
    %v862 = vmul.f32 %v856, %v327
    %v863 = vadd.f32 %v859, 0.0
    %v864 = vadd.f32 %v860, 0.0
    %v865 = vadd.f32 %v861, 0.0
    %v866 = vadd.f32 %v862, 0.0
    %v867 = vmul.f32 %v428, %v331
    %v868 = vmul.f32 %v433, %v331
    %v869 = vmul.f32 %v438, %v331
    %v870 = vmul.f32 %v443, %v331
    %v872 = vsel %vm220, %v867, 0
    %v875 = vsel %vm220, %v868, 0
    %877 = vmatprep.subr.mxu0 0.0
    %878 = vmatpush1.xpose.msra.mxu0 %v462
    %879 = vmatprep.subr.mxu0 0.0
    %880 = vmatpush1.xpose.msra.mxu0 %v464
    %881 = vmatprep.subr.mxu0 0.0
    %882 = vmatpush1.xpose.msra.mxu0 0.0
    %883 = vmatprep.subr.mxu0 0.0
    %884 = vmatpush1.xpose.msra.mxu0 0.0
    %885 = vmatprep.subr.mxu0 0.0
    %886 = vmatpush1.xpose.msra.mxu0 0.0
    %887 = vmatprep.subr.mxu0 0.0
    %888 = vmatpush1.xpose.msra.mxu0 0.0
    %889 = vmatprep.subr.mxu0 0.0
    %890 = vmatpush1.xpose.msra.mxu0 0.0
    %891 = vmatprep.subr.mxu0 0.0
    %892 = vmatpush1.xpose.msra.mxu0 0.0
    %893 = vmatprep.subr.mxu0 0.0
    %894 = vmatpush1.xpose.msra.mxu0 0.0
    %895 = vmatprep.subr.mxu0 0.0
    %896 = vmatpush1.xpose.msra.mxu0 0.0
    %897 = vmatprep.subr.mxu0 0.0
    %898 = vmatpush1.xpose.msra.mxu0 0.0
    %899 = vmatprep.subr.mxu0 0.0
    %900 = vmatpush1.xpose.msra.mxu0 0.0
    %901 = vmatprep.subr.mxu0 0.0
    %902 = vmatpush1.xpose.msra.mxu0 0.0
    %903 = vmatprep.subr.mxu0 0.0
    %904 = vmatpush1.xpose.msra.mxu0 0.0
    %905 = vmatprep.subr.mxu0 0.0
    %906 = vmatpush1.xpose.msra.mxu0 0.0
    %907 = vmatprep.subr.mxu0 0.0
    %908 = vmatpush1.xpose.msra.mxu0 0.0
    %909 = vmatprep.subr.mxu0 0.0
    %910 = vmatpush1.xpose.msra.mxu0 0.0
    %911 = vmatprep.subr.mxu0 0.0
    %912 = vmatpush1.xpose.msra.mxu0 0.0
    %913 = vmatprep.subr.mxu0 0.0
    %914 = vmatpush1.xpose.msra.mxu0 0.0
    %915 = vmatprep.subr.mxu0 0.0
    %916 = vmatpush1.xpose.msra.mxu0 0.0
    %917 = vmatprep.subr.mxu0 0.0
    %918 = vmatpush1.xpose.msra.mxu0 0.0
    %919 = vmatprep.subr.mxu0 0.0
    %920 = vmatpush1.xpose.msra.mxu0 0.0
    %921 = vmatprep.subr.mxu0 0.0
    %922 = vmatpush1.xpose.msra.mxu0 0.0
    %923 = vmatprep.subr.mxu0 0.0
    %924 = vmatpush1.xpose.msra.mxu0 0.0
    %925 = vmatprep.subr.mxu0 0.0
    %926 = vmatpush1.xpose.msra.mxu0 0.0
    %927 = vmatprep.subr.mxu0 0.0
    %928 = vmatpush1.xpose.msra.mxu0 0.0
    %929 = vmatprep.subr.mxu0 0.0
    %930 = vmatpush1.xpose.msra.mxu0 0.0
    %931 = vmatprep.subr.mxu0 0.0
    %932 = vmatpush1.xpose.msra.mxu0 0.0
    %933 = vmatprep.subr.mxu0 0.0
    %934 = vmatpush1.xpose.msra.mxu0 0.0
    %935 = vmatprep.subr.mxu0 0.0
    %936 = vmatpush1.xpose.msra.mxu0 0.0
    %937 = vmatprep.subr.mxu0 0.0
    %938 = vmatpush1.xpose.msra.mxu0 0.0
    %939 = vmatprep.subr.mxu0 0.0
    %940 = vmatpush1.xpose.msra.mxu0 0.0
    %941 = vmatprep.mubr.f32.mxu0 0.0
    %942 = vmatmul.mubr.f32.gmra.mrb[0].mxu0 %v872
    %v943 = vpop.f32.mrb[0].mxu0
    %v944 = vadd.f32 0.0, %v943
    %v945 = vpop.f32.mrb[0].mxu0
    %946 = vmatprep.mubr.f32.mxu0 0.0
    %947 = vmatmul.mubr.f32.gmra.mrb[0].mxu0 %v875
    %v948 = vpop.f32.mrb[0].mxu0
    %v949 = vadd.f32 0.0, %v948
    %v950 = vpop.f32.mrb[0].mxu0
    %951 = vdwg.mxu0
    %v953 = vsel %vm220, %v869, 0
    %v956 = vsel %vm220, %v870, 0
    %958 = vmatprep.subr.mxu0 0.0
    %959 = vmatpush1.xpose.msra.mxu0 %v553
    %960 = vmatprep.subr.mxu0 0.0
    %961 = vmatpush1.xpose.msra.mxu0 %v555
    %962 = vmatprep.subr.mxu0 0.0
    %963 = vmatpush1.xpose.msra.mxu0 0.0
    %964 = vmatprep.subr.mxu0 0.0
    %965 = vmatpush1.xpose.msra.mxu0 0.0
    %966 = vmatprep.subr.mxu0 0.0
    %967 = vmatpush1.xpose.msra.mxu0 0.0
    %968 = vmatprep.subr.mxu0 0.0
    %969 = vmatpush1.xpose.msra.mxu0 0.0
    %970 = vmatprep.subr.mxu0 0.0
    %971 = vmatpush1.xpose.msra.mxu0 0.0
    %972 = vmatprep.subr.mxu0 0.0
    %973 = vmatpush1.xpose.msra.mxu0 0.0
    %974 = vmatprep.subr.mxu0 0.0
    %975 = vmatpush1.xpose.msra.mxu0 0.0
    %976 = vmatprep.subr.mxu0 0.0
    %977 = vmatpush1.xpose.msra.mxu0 0.0
    %978 = vmatprep.subr.mxu0 0.0
    %979 = vmatpush1.xpose.msra.mxu0 0.0
    %980 = vmatprep.subr.mxu0 0.0
    %981 = vmatpush1.xpose.msra.mxu0 0.0
    %982 = vmatprep.subr.mxu0 0.0
    %983 = vmatpush1.xpose.msra.mxu0 0.0
    %984 = vmatprep.subr.mxu0 0.0
    %985 = vmatpush1.xpose.msra.mxu0 0.0
    %986 = vmatprep.subr.mxu0 0.0
    %987 = vmatpush1.xpose.msra.mxu0 0.0
    %988 = vmatprep.subr.mxu0 0.0
    %989 = vmatpush1.xpose.msra.mxu0 0.0
    %990 = vmatprep.subr.mxu0 0.0
    %991 = vmatpush1.xpose.msra.mxu0 0.0
    %992 = vmatprep.subr.mxu0 0.0
    %993 = vmatpush1.xpose.msra.mxu0 0.0
    %994 = vmatprep.subr.mxu0 0.0
    %995 = vmatpush1.xpose.msra.mxu0 0.0
    %996 = vmatprep.subr.mxu0 0.0
    %997 = vmatpush1.xpose.msra.mxu0 0.0
    %998 = vmatprep.subr.mxu0 0.0
    %999 = vmatpush1.xpose.msra.mxu0 0.0
    %1000 = vmatprep.subr.mxu0 0.0
    %1001 = vmatpush1.xpose.msra.mxu0 0.0
    %1002 = vmatprep.subr.mxu0 0.0
    %1003 = vmatpush1.xpose.msra.mxu0 0.0
    %1004 = vmatprep.subr.mxu0 0.0
    %1005 = vmatpush1.xpose.msra.mxu0 0.0
    %1006 = vmatprep.subr.mxu0 0.0
    %1007 = vmatpush1.xpose.msra.mxu0 0.0
    %1008 = vmatprep.subr.mxu0 0.0
    %1009 = vmatpush1.xpose.msra.mxu0 0.0
    %1010 = vmatprep.subr.mxu0 0.0
    %1011 = vmatpush1.xpose.msra.mxu0 0.0
    %1012 = vmatprep.subr.mxu0 0.0
    %1013 = vmatpush1.xpose.msra.mxu0 0.0
    %1014 = vmatprep.subr.mxu0 0.0
    %1015 = vmatpush1.xpose.msra.mxu0 0.0
    %1016 = vmatprep.subr.mxu0 0.0
    %1017 = vmatpush1.xpose.msra.mxu0 0.0
    %1018 = vmatprep.subr.mxu0 0.0
    %1019 = vmatpush1.xpose.msra.mxu0 0.0
    %1020 = vmatprep.subr.mxu0 0.0
    %1021 = vmatpush1.xpose.msra.mxu0 0.0
    %1022 = vmatprep.mubr.f32.mxu0 0.0
    %1023 = vmatmul.mubr.f32.gmra.mrb[0].mxu0 %v953
    %v1024 = vpop.f32.mrb[0].mxu0
    %v1025 = vadd.f32 0.0, %v1024
    %v1026 = vpop.f32.mrb[0].mxu0
    %1027 = vmatprep.mubr.f32.mxu0 0.0
    %1028 = vmatmul.mubr.f32.gmra.mrb[0].mxu0 %v956
    %v1029 = vpop.f32.mrb[0].mxu0
    %v1030 = vadd.f32 0.0, %v1029
    %v1031 = vpop.f32.mrb[0].mxu0
    %1032 = vdwg.mxu0
    %v1033 = vmul.f32 %v944, 0.35355338
    %v1034 = vmul.f32 %v949, 0.35355338
    %v1035 = vmul.f32 %v1025, 0.35355338
    %v1036 = vmul.f32 %v1030, 0.35355338
    %v1037 = vadd.f32 %v1033, %v317
    %v1038 = vadd.f32 %v1034, %v317
    %v1039 = vadd.f32 %v1035, %v321
    %v1040 = vadd.f32 %v1036, %v321
    %v1041 = vsel %vm640, %v1037, -inf
    %1042 = vmax.xlane.f32.xlu0 %v1041
    %v1043 = vpop.xlane.xlu0 %1042
    %v1044 = vsel %vm640, %v1038, -inf
    %1045 = vmax.xlane.f32.xlu0 %v1044
    %v1046 = vpop.xlane.xlu0 %1045
    %v1047 = vsel %vm640, %v1039, -inf
    %1048 = vmax.xlane.f32.xlu0 %v1047
    %v1049 = vpop.xlane.xlu0 %1048
    %v1050 = vsel %vm640, %v1040, -inf
    %1051 = vmax.xlane.f32.xlu0 %v1050
    %v1052 = vpop.xlane.xlu0 %1051
    %v1053 = vsub.f32 %v1037, %v1043
    %v1054 = vsub.f32 %v1038, %v1046
    %v1055 = vsub.f32 %v1039, %v1049
    %v1056 = vsub.f32 %v1040, %v1052
    %v1057 = vmul.f32 %v1053, 1.442695
    %v1058 = vpow.pop %v1057
    %v1059 = vmul.f32 %v1054, 1.442695
    %v1060 = vpow.pop %v1059
    %v1061 = vmul.f32 %v1055, 1.442695
    %v1062 = vpow.pop %v1061
    %v1063 = vmul.f32 %v1056, 1.442695
    %v1064 = vpow.pop %v1063
    %v1065 = vsel %vm640, %v1058, 0.0
    %1066 = vadd.xlane.f32.xlu0 %v1065
    %v1067 = vpop.xlane.xlu0 %1066
    %v1068 = vsel %vm640, %v1060, 0.0
    %1069 = vadd.xlane.f32.xlu0 %v1068
    %v1070 = vpop.xlane.xlu0 %1069
    %v1071 = vsel %vm640, %v1062, 0.0
    %1072 = vadd.xlane.f32.xlu0 %v1071
    %v1073 = vpop.xlane.xlu0 %1072
    %v1074 = vsel %vm640, %v1064, 0.0
    %1075 = vadd.xlane.f32.xlu0 %v1074
    %v1076 = vpop.xlane.xlu0 %1075
    %v1077 = vrcp.pop %v1067
    %v1078 = vrcp.pop %v1070
    %v1079 = vrcp.pop %v1073
    %v1080 = vrcp.pop %v1076
    %v1081 = vmul.f32 %v1058, %v1077
    %v1082 = vmul.f32 %v1060, %v1078
    %v1083 = vmul.f32 %v1062, %v1079
    %v1084 = vmul.f32 %v1064, %v1080
    %v1086 = vsel %vm640, %v1081, 0
    %v1089 = vsel %vm640, %v1082, 0
    %1091 = vmatprep.subr.mxu0 0.0
    %1092 = vmatpush1.msra.mxu0 %v686
    %1093 = vmatprep.subr.mxu0 0.0
    %1094 = vmatpush1.msra.mxu0 %v688
    %1095 = vmatprep.subr.mxu0 0.0
    %1096 = vmatpush1.msra.mxu0 0.0
    %1097 = vmatprep.subr.mxu0 0.0
    %1098 = vmatpush1.msra.mxu0 0.0
    %1099 = vmatprep.subr.mxu0 0.0
    %1100 = vmatpush1.msra.mxu0 0.0
    %1101 = vmatprep.subr.mxu0 0.0
    %1102 = vmatpush1.msra.mxu0 0.0
    %1103 = vmatprep.subr.mxu0 0.0
    %1104 = vmatpush1.msra.mxu0 0.0
    %1105 = vmatprep.subr.mxu0 0.0
    %1106 = vmatpush1.msra.mxu0 0.0
    %1107 = vmatprep.subr.mxu0 0.0
    %1108 = vmatpush1.msra.mxu0 0.0
    %1109 = vmatprep.subr.mxu0 0.0
    %1110 = vmatpush1.msra.mxu0 0.0
    %1111 = vmatprep.subr.mxu0 0.0
    %1112 = vmatpush1.msra.mxu0 0.0
    %1113 = vmatprep.subr.mxu0 0.0
    %1114 = vmatpush1.msra.mxu0 0.0
    %1115 = vmatprep.subr.mxu0 0.0
    %1116 = vmatpush1.msra.mxu0 0.0
    %1117 = vmatprep.subr.mxu0 0.0
    %1118 = vmatpush1.msra.mxu0 0.0
    %1119 = vmatprep.subr.mxu0 0.0
    %1120 = vmatpush1.msra.mxu0 0.0
    %1121 = vmatprep.subr.mxu0 0.0
    %1122 = vmatpush1.msra.mxu0 0.0
    %1123 = vmatprep.subr.mxu0 0.0
    %1124 = vmatpush1.msra.mxu0 0.0
    %1125 = vmatprep.subr.mxu0 0.0
    %1126 = vmatpush1.msra.mxu0 0.0
    %1127 = vmatprep.subr.mxu0 0.0
    %1128 = vmatpush1.msra.mxu0 0.0
    %1129 = vmatprep.subr.mxu0 0.0
    %1130 = vmatpush1.msra.mxu0 0.0
    %1131 = vmatprep.subr.mxu0 0.0
    %1132 = vmatpush1.msra.mxu0 0.0
    %1133 = vmatprep.subr.mxu0 0.0
    %1134 = vmatpush1.msra.mxu0 0.0
    %1135 = vmatprep.subr.mxu0 0.0
    %1136 = vmatpush1.msra.mxu0 0.0
    %1137 = vmatprep.subr.mxu0 0.0
    %1138 = vmatpush1.msra.mxu0 0.0
    %1139 = vmatprep.subr.mxu0 0.0
    %1140 = vmatpush1.msra.mxu0 0.0
    %1141 = vmatprep.subr.mxu0 0.0
    %1142 = vmatpush1.msra.mxu0 0.0
    %1143 = vmatprep.subr.mxu0 0.0
    %1144 = vmatpush1.msra.mxu0 0.0
    %1145 = vmatprep.subr.mxu0 0.0
    %1146 = vmatpush1.msra.mxu0 0.0
    %1147 = vmatprep.subr.mxu0 0.0
    %1148 = vmatpush1.msra.mxu0 0.0
    %1149 = vmatprep.subr.mxu0 0.0
    %1150 = vmatpush1.msra.mxu0 0.0
    %1151 = vmatprep.subr.mxu0 0.0
    %1152 = vmatpush1.msra.mxu0 0.0
    %1153 = vmatprep.subr.mxu0 0.0
    %1154 = vmatpush1.msra.mxu0 0.0
    %1155 = vmatprep.mubr.f32.mxu0 0.0
    %1156 = vmatmul.mubr.f32.gmra.mrb[0].mxu0 %v1086
    %v1157 = vpop.f32.mrb[0].mxu0
    %v1158 = vadd.f32 0.0, %v1157
    %v1159 = vpop.f32.mrb[0].mxu0
    %1160 = vmatprep.mubr.f32.mxu0 0.0
    %1161 = vmatmul.mubr.f32.gmra.mrb[0].mxu0 %v1089
    %v1162 = vpop.f32.mrb[0].mxu0
    %v1163 = vadd.f32 0.0, %v1162
    %v1164 = vpop.f32.mrb[0].mxu0
    %1165 = vdwg.mxu0
    %v1167 = vsel %vm640, %v1083, 0
    %v1170 = vsel %vm640, %v1084, 0
    %1172 = vmatprep.subr.mxu0 0.0
    %1173 = vmatpush1.msra.mxu0 %v773
    %1174 = vmatprep.subr.mxu0 0.0
    %1175 = vmatpush1.msra.mxu0 %v775
    %1176 = vmatprep.subr.mxu0 0.0
    %1177 = vmatpush1.msra.mxu0 0.0
    %1178 = vmatprep.subr.mxu0 0.0
    %1179 = vmatpush1.msra.mxu0 0.0
    %1180 = vmatprep.subr.mxu0 0.0
    %1181 = vmatpush1.msra.mxu0 0.0
    %1182 = vmatprep.subr.mxu0 0.0
    %1183 = vmatpush1.msra.mxu0 0.0
    %1184 = vmatprep.subr.mxu0 0.0
    %1185 = vmatpush1.msra.mxu0 0.0
    %1186 = vmatprep.subr.mxu0 0.0
    %1187 = vmatpush1.msra.mxu0 0.0
    %1188 = vmatprep.subr.mxu0 0.0
    %1189 = vmatpush1.msra.mxu0 0.0
    %1190 = vmatprep.subr.mxu0 0.0
    %1191 = vmatpush1.msra.mxu0 0.0
    %1192 = vmatprep.subr.mxu0 0.0
    %1193 = vmatpush1.msra.mxu0 0.0
    %1194 = vmatprep.subr.mxu0 0.0
    %1195 = vmatpush1.msra.mxu0 0.0
    %1196 = vmatprep.subr.mxu0 0.0
    %1197 = vmatpush1.msra.mxu0 0.0
    %1198 = vmatprep.subr.mxu0 0.0
    %1199 = vmatpush1.msra.mxu0 0.0
    %1200 = vmatprep.subr.mxu0 0.0
    %1201 = vmatpush1.msra.mxu0 0.0
    %1202 = vmatprep.subr.mxu0 0.0
    %1203 = vmatpush1.msra.mxu0 0.0
    %1204 = vmatprep.subr.mxu0 0.0
    %1205 = vmatpush1.msra.mxu0 0.0
    %1206 = vmatprep.subr.mxu0 0.0
    %1207 = vmatpush1.msra.mxu0 0.0
    %1208 = vmatprep.subr.mxu0 0.0
    %1209 = vmatpush1.msra.mxu0 0.0
    %1210 = vmatprep.subr.mxu0 0.0
    %1211 = vmatpush1.msra.mxu0 0.0
    %1212 = vmatprep.subr.mxu0 0.0
    %1213 = vmatpush1.msra.mxu0 0.0
    %1214 = vmatprep.subr.mxu0 0.0
    %1215 = vmatpush1.msra.mxu0 0.0
    %1216 = vmatprep.subr.mxu0 0.0
    %1217 = vmatpush1.msra.mxu0 0.0
    %1218 = vmatprep.subr.mxu0 0.0
    %1219 = vmatpush1.msra.mxu0 0.0
    %1220 = vmatprep.subr.mxu0 0.0
    %1221 = vmatpush1.msra.mxu0 0.0
    %1222 = vmatprep.subr.mxu0 0.0
    %1223 = vmatpush1.msra.mxu0 0.0
    %1224 = vmatprep.subr.mxu0 0.0
    %1225 = vmatpush1.msra.mxu0 0.0
    %1226 = vmatprep.subr.mxu0 0.0
    %1227 = vmatpush1.msra.mxu0 0.0
    %1228 = vmatprep.subr.mxu0 0.0
    %1229 = vmatpush1.msra.mxu0 0.0
    %1230 = vmatprep.subr.mxu0 0.0
    %1231 = vmatpush1.msra.mxu0 0.0
    %1232 = vmatprep.subr.mxu0 0.0
    %1233 = vmatpush1.msra.mxu0 0.0
    %1234 = vmatprep.subr.mxu0 0.0
    %1235 = vmatpush1.msra.mxu0 0.0
    %1236 = vmatprep.mubr.f32.mxu0 0.0
    %1237 = vmatmul.mubr.f32.gmra.mrb[0].mxu0 %v1167
    %v1238 = vpop.f32.mrb[0].mxu0
    %v1239 = vadd.f32 0.0, %v1238
    %v1240 = vpop.f32.mrb[0].mxu0
    %1241 = vmatprep.mubr.f32.mxu0 0.0
    %1242 = vmatmul.mubr.f32.gmra.mrb[0].mxu0 %v1170
    %v1243 = vpop.f32.mrb[0].mxu0
    %v1244 = vadd.f32 0.0, %v1243
    %v1245 = vpop.f32.mrb[0].mxu0
    %1246 = vdwg.mxu0
    %v1247 = vmul.f32 %v1158, %v331
    %v1248 = vmul.f32 %v1163, %v331
    %v1249 = vmul.f32 %v1239, %v331
    %v1250 = vmul.f32 %v1244, %v331
    %v1251 = vadd.f32 %v863, %v1247
    %v1252 = vadd.f32 %v864, %v1248
    %v1253 = vadd.f32 %v865, %v1249
    %v1254 = vadd.f32 %v866, %v1250
    %v1255 = vmul.f32 %v428, %v335
    %v1256 = vmul.f32 %v433, %v335
    %v1257 = vmul.f32 %v438, %v335
    %v1258 = vmul.f32 %v443, %v335
    %v1260 = vsel %vm220, %v1255, 0
    %v1263 = vsel %vm220, %v1256, 0
    %1265 = vmatprep.subr.mxu0 0.0
    %1266 = vmatpush1.xpose.msra.mxu0 %v462
    %1267 = vmatprep.subr.mxu0 0.0
    %1268 = vmatpush1.xpose.msra.mxu0 %v464
    %1269 = vmatprep.subr.mxu0 0.0
    %1270 = vmatpush1.xpose.msra.mxu0 0.0
    %1271 = vmatprep.subr.mxu0 0.0
    %1272 = vmatpush1.xpose.msra.mxu0 0.0
    %1273 = vmatprep.subr.mxu0 0.0
    %1274 = vmatpush1.xpose.msra.mxu0 0.0
    %1275 = vmatprep.subr.mxu0 0.0
    %1276 = vmatpush1.xpose.msra.mxu0 0.0
    %1277 = vmatprep.subr.mxu0 0.0
    %1278 = vmatpush1.xpose.msra.mxu0 0.0
    %1279 = vmatprep.subr.mxu0 0.0
    %1280 = vmatpush1.xpose.msra.mxu0 0.0
    %1281 = vmatprep.subr.mxu0 0.0
    %1282 = vmatpush1.xpose.msra.mxu0 0.0
    %1283 = vmatprep.subr.mxu0 0.0
    %1284 = vmatpush1.xpose.msra.mxu0 0.0
    %1285 = vmatprep.subr.mxu0 0.0
    %1286 = vmatpush1.xpose.msra.mxu0 0.0
    %1287 = vmatprep.subr.mxu0 0.0
    %1288 = vmatpush1.xpose.msra.mxu0 0.0
    %1289 = vmatprep.subr.mxu0 0.0
    %1290 = vmatpush1.xpose.msra.mxu0 0.0
    %1291 = vmatprep.subr.mxu0 0.0
    %1292 = vmatpush1.xpose.msra.mxu0 0.0
    %1293 = vmatprep.subr.mxu0 0.0
    %1294 = vmatpush1.xpose.msra.mxu0 0.0
    %1295 = vmatprep.subr.mxu0 0.0
    %1296 = vmatpush1.xpose.msra.mxu0 0.0
    %1297 = vmatprep.subr.mxu0 0.0
    %1298 = vmatpush1.xpose.msra.mxu0 0.0
    %1299 = vmatprep.subr.mxu0 0.0
    %1300 = vmatpush1.xpose.msra.mxu0 0.0
    %1301 = vmatprep.subr.mxu0 0.0
    %1302 = vmatpush1.xpose.msra.mxu0 0.0
    %1303 = vmatprep.subr.mxu0 0.0
    %1304 = vmatpush1.xpose.msra.mxu0 0.0
    %1305 = vmatprep.subr.mxu0 0.0
    %1306 = vmatpush1.xpose.msra.mxu0 0.0
    %1307 = vmatprep.subr.mxu0 0.0
    %1308 = vmatpush1.xpose.msra.mxu0 0.0
    %1309 = vmatprep.subr.mxu0 0.0
    %1310 = vmatpush1.xpose.msra.mxu0 0.0
    %1311 = vmatprep.subr.mxu0 0.0
    %1312 = vmatpush1.xpose.msra.mxu0 0.0
    %1313 = vmatprep.subr.mxu0 0.0
    %1314 = vmatpush1.xpose.msra.mxu0 0.0
    %1315 = vmatprep.subr.mxu0 0.0
    %1316 = vmatpush1.xpose.msra.mxu0 0.0
    %1317 = vmatprep.subr.mxu0 0.0
    %1318 = vmatpush1.xpose.msra.mxu0 0.0
    %1319 = vmatprep.subr.mxu0 0.0
    %1320 = vmatpush1.xpose.msra.mxu0 0.0
    %1321 = vmatprep.subr.mxu0 0.0
    %1322 = vmatpush1.xpose.msra.mxu0 0.0
    %1323 = vmatprep.subr.mxu0 0.0
    %1324 = vmatpush1.xpose.msra.mxu0 0.0
    %1325 = vmatprep.subr.mxu0 0.0
    %1326 = vmatpush1.xpose.msra.mxu0 0.0
    %1327 = vmatprep.subr.mxu0 0.0
    %1328 = vmatpush1.xpose.msra.mxu0 0.0
    %1329 = vmatprep.mubr.f32.mxu0 0.0
    %1330 = vmatmul.mubr.f32.gmra.mrb[0].mxu0 %v1260
    %v1331 = vpop.f32.mrb[0].mxu0
    %v1332 = vadd.f32 0.0, %v1331
    %v1333 = vpop.f32.mrb[0].mxu0
    %1334 = vmatprep.mubr.f32.mxu0 0.0
    %1335 = vmatmul.mubr.f32.gmra.mrb[0].mxu0 %v1263
    %v1336 = vpop.f32.mrb[0].mxu0
    %v1337 = vadd.f32 0.0, %v1336
    %v1338 = vpop.f32.mrb[0].mxu0
    %1339 = vdwg.mxu0
    %v1341 = vsel %vm220, %v1257, 0
    %v1344 = vsel %vm220, %v1258, 0
    %1346 = vmatprep.subr.mxu0 0.0
    %1347 = vmatpush1.xpose.msra.mxu0 %v553
    %1348 = vmatprep.subr.mxu0 0.0
    %1349 = vmatpush1.xpose.msra.mxu0 %v555
    %1350 = vmatprep.subr.mxu0 0.0
    %1351 = vmatpush1.xpose.msra.mxu0 0.0
    %1352 = vmatprep.subr.mxu0 0.0
    %1353 = vmatpush1.xpose.msra.mxu0 0.0
    %1354 = vmatprep.subr.mxu0 0.0
    %1355 = vmatpush1.xpose.msra.mxu0 0.0
    %1356 = vmatprep.subr.mxu0 0.0
    %1357 = vmatpush1.xpose.msra.mxu0 0.0
    %1358 = vmatprep.subr.mxu0 0.0
    %1359 = vmatpush1.xpose.msra.mxu0 0.0
    %1360 = vmatprep.subr.mxu0 0.0
    %1361 = vmatpush1.xpose.msra.mxu0 0.0
    %1362 = vmatprep.subr.mxu0 0.0
    %1363 = vmatpush1.xpose.msra.mxu0 0.0
    %1364 = vmatprep.subr.mxu0 0.0
    %1365 = vmatpush1.xpose.msra.mxu0 0.0
    %1366 = vmatprep.subr.mxu0 0.0
    %1367 = vmatpush1.xpose.msra.mxu0 0.0
    %1368 = vmatprep.subr.mxu0 0.0
    %1369 = vmatpush1.xpose.msra.mxu0 0.0
    %1370 = vmatprep.subr.mxu0 0.0
    %1371 = vmatpush1.xpose.msra.mxu0 0.0
    %1372 = vmatprep.subr.mxu0 0.0
    %1373 = vmatpush1.xpose.msra.mxu0 0.0
    %1374 = vmatprep.subr.mxu0 0.0
    %1375 = vmatpush1.xpose.msra.mxu0 0.0
    %1376 = vmatprep.subr.mxu0 0.0
    %1377 = vmatpush1.xpose.msra.mxu0 0.0
    %1378 = vmatprep.subr.mxu0 0.0
    %1379 = vmatpush1.xpose.msra.mxu0 0.0
    %1380 = vmatprep.subr.mxu0 0.0
    %1381 = vmatpush1.xpose.msra.mxu0 0.0
    %1382 = vmatprep.subr.mxu0 0.0
    %1383 = vmatpush1.xpose.msra.mxu0 0.0
    %1384 = vmatprep.subr.mxu0 0.0
    %1385 = vmatpush1.xpose.msra.mxu0 0.0
    %1386 = vmatprep.subr.mxu0 0.0
    %1387 = vmatpush1.xpose.msra.mxu0 0.0
    %1388 = vmatprep.subr.mxu0 0.0
    %1389 = vmatpush1.xpose.msra.mxu0 0.0
    %1390 = vmatprep.subr.mxu0 0.0
    %1391 = vmatpush1.xpose.msra.mxu0 0.0
    %1392 = vmatprep.subr.mxu0 0.0
    %1393 = vmatpush1.xpose.msra.mxu0 0.0
    %1394 = vmatprep.subr.mxu0 0.0
    %1395 = vmatpush1.xpose.msra.mxu0 0.0
    %1396 = vmatprep.subr.mxu0 0.0
    %1397 = vmatpush1.xpose.msra.mxu0 0.0
    %1398 = vmatprep.subr.mxu0 0.0
    %1399 = vmatpush1.xpose.msra.mxu0 0.0
    %1400 = vmatprep.subr.mxu0 0.0
    %1401 = vmatpush1.xpose.msra.mxu0 0.0
    %1402 = vmatprep.subr.mxu0 0.0
    %1403 = vmatpush1.xpose.msra.mxu0 0.0
    %1404 = vmatprep.subr.mxu0 0.0
    %1405 = vmatpush1.xpose.msra.mxu0 0.0
    %1406 = vmatprep.subr.mxu0 0.0
    %1407 = vmatpush1.xpose.msra.mxu0 0.0
    %1408 = vmatprep.subr.mxu0 0.0
    %1409 = vmatpush1.xpose.msra.mxu0 0.0
    %1410 = vmatprep.mubr.f32.mxu0 0.0
    %1411 = vmatmul.mubr.f32.gmra.mrb[0].mxu0 %v1341
    %v1412 = vpop.f32.mrb[0].mxu0
    %v1413 = vadd.f32 0.0, %v1412
    %v1414 = vpop.f32.mrb[0].mxu0
    %1415 = vmatprep.mubr.f32.mxu0 0.0
    %1416 = vmatmul.mubr.f32.gmra.mrb[0].mxu0 %v1344
    %v1417 = vpop.f32.mrb[0].mxu0
    %v1418 = vadd.f32 0.0, %v1417
    %v1419 = vpop.f32.mrb[0].mxu0
    %1420 = vdwg.mxu0
    %v1421 = vmul.f32 %v1332, 0.35355338
    %v1422 = vmul.f32 %v1337, 0.35355338
    %v1423 = vmul.f32 %v1413, 0.35355338
    %v1424 = vmul.f32 %v1418, 0.35355338
    %v1425 = vadd.f32 %v1421, %v317
    %v1426 = vadd.f32 %v1422, %v317
    %v1427 = vadd.f32 %v1423, %v321
    %v1428 = vadd.f32 %v1424, %v321
    %v1429 = vsel %vm640, %v1425, -inf
    %1430 = vmax.xlane.f32.xlu0 %v1429
    %v1431 = vpop.xlane.xlu0 %1430
    %v1432 = vsel %vm640, %v1426, -inf
    %1433 = vmax.xlane.f32.xlu0 %v1432
    %v1434 = vpop.xlane.xlu0 %1433
    %v1435 = vsel %vm640, %v1427, -inf
    %1436 = vmax.xlane.f32.xlu0 %v1435
    %v1437 = vpop.xlane.xlu0 %1436
    %v1438 = vsel %vm640, %v1428, -inf
    %1439 = vmax.xlane.f32.xlu0 %v1438
    %v1440 = vpop.xlane.xlu0 %1439
    %v1441 = vsub.f32 %v1425, %v1431
    %v1442 = vsub.f32 %v1426, %v1434
    %v1443 = vsub.f32 %v1427, %v1437
    %v1444 = vsub.f32 %v1428, %v1440
    %v1445 = vmul.f32 %v1441, 1.442695
    %v1446 = vpow.pop %v1445
    %v1447 = vmul.f32 %v1442, 1.442695
    %v1448 = vpow.pop %v1447
    %v1449 = vmul.f32 %v1443, 1.442695
    %v1450 = vpow.pop %v1449
    %v1451 = vmul.f32 %v1444, 1.442695
    %v1452 = vpow.pop %v1451
    %v1453 = vsel %vm640, %v1446, 0.0
    %1454 = vadd.xlane.f32.xlu0 %v1453
    %v1455 = vpop.xlane.xlu0 %1454
    %v1456 = vsel %vm640, %v1448, 0.0
    %1457 = vadd.xlane.f32.xlu0 %v1456
    %v1458 = vpop.xlane.xlu0 %1457
    %v1459 = vsel %vm640, %v1450, 0.0
    %1460 = vadd.xlane.f32.xlu0 %v1459
    %v1461 = vpop.xlane.xlu0 %1460
    %v1462 = vsel %vm640, %v1452, 0.0
    %1463 = vadd.xlane.f32.xlu0 %v1462
    %v1464 = vpop.xlane.xlu0 %1463
    %v1465 = vrcp.pop %v1455
    %v1466 = vrcp.pop %v1458
    %v1467 = vrcp.pop %v1461
    %v1468 = vrcp.pop %v1464
    %v1469 = vmul.f32 %v1446, %v1465
    %v1470 = vmul.f32 %v1448, %v1466
    %v1471 = vmul.f32 %v1450, %v1467
    %v1472 = vmul.f32 %v1452, %v1468
    %v1474 = vsel %vm640, %v1469, 0
    %v1477 = vsel %vm640, %v1470, 0
    %1479 = vmatprep.subr.mxu0 0.0
    %1480 = vmatpush1.msra.mxu0 %v686
    %1481 = vmatprep.subr.mxu0 0.0
    %1482 = vmatpush1.msra.mxu0 %v688
    %1483 = vmatprep.subr.mxu0 0.0
    %1484 = vmatpush1.msra.mxu0 0.0
    %1485 = vmatprep.subr.mxu0 0.0
    %1486 = vmatpush1.msra.mxu0 0.0
    %1487 = vmatprep.subr.mxu0 0.0
    %1488 = vmatpush1.msra.mxu0 0.0
    %1489 = vmatprep.subr.mxu0 0.0
    %1490 = vmatpush1.msra.mxu0 0.0
    %1491 = vmatprep.subr.mxu0 0.0
    %1492 = vmatpush1.msra.mxu0 0.0
    %1493 = vmatprep.subr.mxu0 0.0
    %1494 = vmatpush1.msra.mxu0 0.0
    %1495 = vmatprep.subr.mxu0 0.0
    %1496 = vmatpush1.msra.mxu0 0.0
    %1497 = vmatprep.subr.mxu0 0.0
    %1498 = vmatpush1.msra.mxu0 0.0
    %1499 = vmatprep.subr.mxu0 0.0
    %1500 = vmatpush1.msra.mxu0 0.0
    %1501 = vmatprep.subr.mxu0 0.0
    %1502 = vmatpush1.msra.mxu0 0.0
    %1503 = vmatprep.subr.mxu0 0.0
    %1504 = vmatpush1.msra.mxu0 0.0
    %1505 = vmatprep.subr.mxu0 0.0
    %1506 = vmatpush1.msra.mxu0 0.0
    %1507 = vmatprep.subr.mxu0 0.0
    %1508 = vmatpush1.msra.mxu0 0.0
    %1509 = vmatprep.subr.mxu0 0.0
    %1510 = vmatpush1.msra.mxu0 0.0
    %1511 = vmatprep.subr.mxu0 0.0
    %1512 = vmatpush1.msra.mxu0 0.0
    %1513 = vmatprep.subr.mxu0 0.0
    %1514 = vmatpush1.msra.mxu0 0.0
    %1515 = vmatprep.subr.mxu0 0.0
    %1516 = vmatpush1.msra.mxu0 0.0
    %1517 = vmatprep.subr.mxu0 0.0
    %1518 = vmatpush1.msra.mxu0 0.0
    %1519 = vmatprep.subr.mxu0 0.0
    %1520 = vmatpush1.msra.mxu0 0.0
    %1521 = vmatprep.subr.mxu0 0.0
    %1522 = vmatpush1.msra.mxu0 0.0
    %1523 = vmatprep.subr.mxu0 0.0
    %1524 = vmatpush1.msra.mxu0 0.0
    %1525 = vmatprep.subr.mxu0 0.0
    %1526 = vmatpush1.msra.mxu0 0.0
    %1527 = vmatprep.subr.mxu0 0.0
    %1528 = vmatpush1.msra.mxu0 0.0
    %1529 = vmatprep.subr.mxu0 0.0
    %1530 = vmatpush1.msra.mxu0 0.0
    %1531 = vmatprep.subr.mxu0 0.0
    %1532 = vmatpush1.msra.mxu0 0.0
    %1533 = vmatprep.subr.mxu0 0.0
    %1534 = vmatpush1.msra.mxu0 0.0
    %1535 = vmatprep.subr.mxu0 0.0
    %1536 = vmatpush1.msra.mxu0 0.0
    %1537 = vmatprep.subr.mxu0 0.0
    %1538 = vmatpush1.msra.mxu0 0.0
    %1539 = vmatprep.subr.mxu0 0.0
    %1540 = vmatpush1.msra.mxu0 0.0
    %1541 = vmatprep.subr.mxu0 0.0
    %1542 = vmatpush1.msra.mxu0 0.0
    %1543 = vmatprep.mubr.f32.mxu0 0.0
    %1544 = vmatmul.mubr.f32.gmra.mrb[0].mxu0 %v1474
    %v1545 = vpop.f32.mrb[0].mxu0
    %v1546 = vadd.f32 0.0, %v1545
    %v1547 = vpop.f32.mrb[0].mxu0
    %1548 = vmatprep.mubr.f32.mxu0 0.0
    %1549 = vmatmul.mubr.f32.gmra.mrb[0].mxu0 %v1477
    %v1550 = vpop.f32.mrb[0].mxu0
    %v1551 = vadd.f32 0.0, %v1550
    %v1552 = vpop.f32.mrb[0].mxu0
    %1553 = vdwg.mxu0
    %v1555 = vsel %vm640, %v1471, 0
    %v1558 = vsel %vm640, %v1472, 0
    %1560 = vmatprep.subr.mxu0 0.0
    %1561 = vmatpush1.msra.mxu0 %v773
    %1562 = vmatprep.subr.mxu0 0.0
    %1563 = vmatpush1.msra.mxu0 %v775
    %1564 = vmatprep.subr.mxu0 0.0
    %1565 = vmatpush1.msra.mxu0 0.0
    %1566 = vmatprep.subr.mxu0 0.0
    %1567 = vmatpush1.msra.mxu0 0.0
    %1568 = vmatprep.subr.mxu0 0.0
    %1569 = vmatpush1.msra.mxu0 0.0
    %1570 = vmatprep.subr.mxu0 0.0
    %1571 = vmatpush1.msra.mxu0 0.0
    %1572 = vmatprep.subr.mxu0 0.0
    %1573 = vmatpush1.msra.mxu0 0.0
    %1574 = vmatprep.subr.mxu0 0.0
    %1575 = vmatpush1.msra.mxu0 0.0
    %1576 = vmatprep.subr.mxu0 0.0
    %1577 = vmatpush1.msra.mxu0 0.0
    %1578 = vmatprep.subr.mxu0 0.0
    %1579 = vmatpush1.msra.mxu0 0.0
    %1580 = vmatprep.subr.mxu0 0.0
    %1581 = vmatpush1.msra.mxu0 0.0
    %1582 = vmatprep.subr.mxu0 0.0
    %1583 = vmatpush1.msra.mxu0 0.0
    %1584 = vmatprep.subr.mxu0 0.0
    %1585 = vmatpush1.msra.mxu0 0.0
    %1586 = vmatprep.subr.mxu0 0.0
    %1587 = vmatpush1.msra.mxu0 0.0
    %1588 = vmatprep.subr.mxu0 0.0
    %1589 = vmatpush1.msra.mxu0 0.0
    %1590 = vmatprep.subr.mxu0 0.0
    %1591 = vmatpush1.msra.mxu0 0.0
    %1592 = vmatprep.subr.mxu0 0.0
    %1593 = vmatpush1.msra.mxu0 0.0
    %1594 = vmatprep.subr.mxu0 0.0
    %1595 = vmatpush1.msra.mxu0 0.0
    %1596 = vmatprep.subr.mxu0 0.0
    %1597 = vmatpush1.msra.mxu0 0.0
    %1598 = vmatprep.subr.mxu0 0.0
    %1599 = vmatpush1.msra.mxu0 0.0
    %1600 = vmatprep.subr.mxu0 0.0
    %1601 = vmatpush1.msra.mxu0 0.0
    %1602 = vmatprep.subr.mxu0 0.0
    %1603 = vmatpush1.msra.mxu0 0.0
    %1604 = vmatprep.subr.mxu0 0.0
    %1605 = vmatpush1.msra.mxu0 0.0
    %1606 = vmatprep.subr.mxu0 0.0
    %1607 = vmatpush1.msra.mxu0 0.0
    %1608 = vmatprep.subr.mxu0 0.0
    %1609 = vmatpush1.msra.mxu0 0.0
    %1610 = vmatprep.subr.mxu0 0.0
    %1611 = vmatpush1.msra.mxu0 0.0
    %1612 = vmatprep.subr.mxu0 0.0
    %1613 = vmatpush1.msra.mxu0 0.0
    %1614 = vmatprep.subr.mxu0 0.0
    %1615 = vmatpush1.msra.mxu0 0.0
    %1616 = vmatprep.subr.mxu0 0.0
    %1617 = vmatpush1.msra.mxu0 0.0
    %1618 = vmatprep.subr.mxu0 0.0
    %1619 = vmatpush1.msra.mxu0 0.0
    %1620 = vmatprep.subr.mxu0 0.0
    %1621 = vmatpush1.msra.mxu0 0.0
    %1622 = vmatprep.subr.mxu0 0.0
    %1623 = vmatpush1.msra.mxu0 0.0
    %1624 = vmatprep.mubr.f32.mxu0 0.0
    %1625 = vmatmul.mubr.f32.gmra.mrb[0].mxu0 %v1555
    %v1626 = vpop.f32.mrb[0].mxu0
    %v1627 = vadd.f32 0.0, %v1626
    %v1628 = vpop.f32.mrb[0].mxu0
    %1629 = vmatprep.mubr.f32.mxu0 0.0
    %1630 = vmatmul.mubr.f32.gmra.mrb[0].mxu0 %v1558
    %v1631 = vpop.f32.mrb[0].mxu0
    %v1632 = vadd.f32 0.0, %v1631
    %v1633 = vpop.f32.mrb[0].mxu0
    %1634 = vdwg.mxu0
    %v1635 = vmul.f32 %v1546, %v335
    %v1636 = vmul.f32 %v1551, %v335
    %v1637 = vmul.f32 %v1627, %v335
    %v1638 = vmul.f32 %v1632, %v335
    %v1639 = vadd.f32 %v1251, %v1635
    %v1640 = vadd.f32 %v1252, %v1636
    %v1641 = vadd.f32 %v1253, %v1637
    %v1642 = vadd.f32 %v1254, %v1638
    %v1643 = vmul.f32 %v428, %v339
    %v1644 = vmul.f32 %v433, %v339
    %v1645 = vmul.f32 %v438, %v339
    %v1646 = vmul.f32 %v443, %v339
    %v1648 = vsel %vm220, %v1643, 0
    %v1651 = vsel %vm220, %v1644, 0
    %1653 = vmatprep.subr.mxu0 0.0
    %1654 = vmatpush1.xpose.msra.mxu0 %v462
    %1655 = vmatprep.subr.mxu0 0.0
    %1656 = vmatpush1.xpose.msra.mxu0 %v464
    %1657 = vmatprep.subr.mxu0 0.0
    %1658 = vmatpush1.xpose.msra.mxu0 0.0
    %1659 = vmatprep.subr.mxu0 0.0
    %1660 = vmatpush1.xpose.msra.mxu0 0.0
    %1661 = vmatprep.subr.mxu0 0.0
    %1662 = vmatpush1.xpose.msra.mxu0 0.0
    %1663 = vmatprep.subr.mxu0 0.0
    %1664 = vmatpush1.xpose.msra.mxu0 0.0
    %1665 = vmatprep.subr.mxu0 0.0
    %1666 = vmatpush1.xpose.msra.mxu0 0.0
    %1667 = vmatprep.subr.mxu0 0.0
    %1668 = vmatpush1.xpose.msra.mxu0 0.0
    %1669 = vmatprep.subr.mxu0 0.0
    %1670 = vmatpush1.xpose.msra.mxu0 0.0
    %1671 = vmatprep.subr.mxu0 0.0
    %1672 = vmatpush1.xpose.msra.mxu0 0.0
    %1673 = vmatprep.subr.mxu0 0.0
    %1674 = vmatpush1.xpose.msra.mxu0 0.0
    %1675 = vmatprep.subr.mxu0 0.0
    %1676 = vmatpush1.xpose.msra.mxu0 0.0
    %1677 = vmatprep.subr.mxu0 0.0
    %1678 = vmatpush1.xpose.msra.mxu0 0.0
    %1679 = vmatprep.subr.mxu0 0.0
    %1680 = vmatpush1.xpose.msra.mxu0 0.0
    %1681 = vmatprep.subr.mxu0 0.0
    %1682 = vmatpush1.xpose.msra.mxu0 0.0
    %1683 = vmatprep.subr.mxu0 0.0
    %1684 = vmatpush1.xpose.msra.mxu0 0.0
    %1685 = vmatprep.subr.mxu0 0.0
    %1686 = vmatpush1.xpose.msra.mxu0 0.0
    %1687 = vmatprep.subr.mxu0 0.0
    %1688 = vmatpush1.xpose.msra.mxu0 0.0
    %1689 = vmatprep.subr.mxu0 0.0
    %1690 = vmatpush1.xpose.msra.mxu0 0.0
    %1691 = vmatprep.subr.mxu0 0.0
    %1692 = vmatpush1.xpose.msra.mxu0 0.0
    %1693 = vmatprep.subr.mxu0 0.0
    %1694 = vmatpush1.xpose.msra.mxu0 0.0
    %1695 = vmatprep.subr.mxu0 0.0
    %1696 = vmatpush1.xpose.msra.mxu0 0.0
    %1697 = vmatprep.subr.mxu0 0.0
    %1698 = vmatpush1.xpose.msra.mxu0 0.0
    %1699 = vmatprep.subr.mxu0 0.0
    %1700 = vmatpush1.xpose.msra.mxu0 0.0
    %1701 = vmatprep.subr.mxu0 0.0
    %1702 = vmatpush1.xpose.msra.mxu0 0.0
    %1703 = vmatprep.subr.mxu0 0.0
    %1704 = vmatpush1.xpose.msra.mxu0 0.0
    %1705 = vmatprep.subr.mxu0 0.0
    %1706 = vmatpush1.xpose.msra.mxu0 0.0
    %1707 = vmatprep.subr.mxu0 0.0
    %1708 = vmatpush1.xpose.msra.mxu0 0.0
    %1709 = vmatprep.subr.mxu0 0.0
    %1710 = vmatpush1.xpose.msra.mxu0 0.0
    %1711 = vmatprep.subr.mxu0 0.0
    %1712 = vmatpush1.xpose.msra.mxu0 0.0
    %1713 = vmatprep.subr.mxu0 0.0
    %1714 = vmatpush1.xpose.msra.mxu0 0.0
    %1715 = vmatprep.subr.mxu0 0.0
    %1716 = vmatpush1.xpose.msra.mxu0 0.0
    %1717 = vmatprep.mubr.f32.mxu0 0.0
    %1718 = vmatmul.mubr.f32.gmra.mrb[0].mxu0 %v1648
    %v1719 = vpop.f32.mrb[0].mxu0
    %v1720 = vadd.f32 0.0, %v1719
    %v1721 = vpop.f32.mrb[0].mxu0
    %1722 = vmatprep.mubr.f32.mxu0 0.0
    %1723 = vmatmul.mubr.f32.gmra.mrb[0].mxu0 %v1651
    %v1724 = vpop.f32.mrb[0].mxu0
    %v1725 = vadd.f32 0.0, %v1724
    %v1726 = vpop.f32.mrb[0].mxu0
    %1727 = vdwg.mxu0
    %v1729 = vsel %vm220, %v1645, 0
    %v1732 = vsel %vm220, %v1646, 0
    %1734 = vmatprep.subr.mxu0 0.0
    %1735 = vmatpush1.xpose.msra.mxu0 %v553
    %1736 = vmatprep.subr.mxu0 0.0
    %1737 = vmatpush1.xpose.msra.mxu0 %v555
    %1738 = vmatprep.subr.mxu0 0.0
    %1739 = vmatpush1.xpose.msra.mxu0 0.0
    %1740 = vmatprep.subr.mxu0 0.0
    %1741 = vmatpush1.xpose.msra.mxu0 0.0
    %1742 = vmatprep.subr.mxu0 0.0
    %1743 = vmatpush1.xpose.msra.mxu0 0.0
    %1744 = vmatprep.subr.mxu0 0.0
    %1745 = vmatpush1.xpose.msra.mxu0 0.0
    %1746 = vmatprep.subr.mxu0 0.0
    %1747 = vmatpush1.xpose.msra.mxu0 0.0
    %1748 = vmatprep.subr.mxu0 0.0
    %1749 = vmatpush1.xpose.msra.mxu0 0.0
    %1750 = vmatprep.subr.mxu0 0.0
    %1751 = vmatpush1.xpose.msra.mxu0 0.0
    %1752 = vmatprep.subr.mxu0 0.0
    %1753 = vmatpush1.xpose.msra.mxu0 0.0
    %1754 = vmatprep.subr.mxu0 0.0
    %1755 = vmatpush1.xpose.msra.mxu0 0.0
    %1756 = vmatprep.subr.mxu0 0.0
    %1757 = vmatpush1.xpose.msra.mxu0 0.0
    %1758 = vmatprep.subr.mxu0 0.0
    %1759 = vmatpush1.xpose.msra.mxu0 0.0
    %1760 = vmatprep.subr.mxu0 0.0
    %1761 = vmatpush1.xpose.msra.mxu0 0.0
    %1762 = vmatprep.subr.mxu0 0.0
    %1763 = vmatpush1.xpose.msra.mxu0 0.0
    %1764 = vmatprep.subr.mxu0 0.0
    %1765 = vmatpush1.xpose.msra.mxu0 0.0
    %1766 = vmatprep.subr.mxu0 0.0
    %1767 = vmatpush1.xpose.msra.mxu0 0.0
    %1768 = vmatprep.subr.mxu0 0.0
    %1769 = vmatpush1.xpose.msra.mxu0 0.0
    %1770 = vmatprep.subr.mxu0 0.0
    %1771 = vmatpush1.xpose.msra.mxu0 0.0
    %1772 = vmatprep.subr.mxu0 0.0
    %1773 = vmatpush1.xpose.msra.mxu0 0.0
    %1774 = vmatprep.subr.mxu0 0.0
    %1775 = vmatpush1.xpose.msra.mxu0 0.0
    %1776 = vmatprep.subr.mxu0 0.0
    %1777 = vmatpush1.xpose.msra.mxu0 0.0
    %1778 = vmatprep.subr.mxu0 0.0
    %1779 = vmatpush1.xpose.msra.mxu0 0.0
    %1780 = vmatprep.subr.mxu0 0.0
    %1781 = vmatpush1.xpose.msra.mxu0 0.0
    %1782 = vmatprep.subr.mxu0 0.0
    %1783 = vmatpush1.xpose.msra.mxu0 0.0
    %1784 = vmatprep.subr.mxu0 0.0
    %1785 = vmatpush1.xpose.msra.mxu0 0.0
    %1786 = vmatprep.subr.mxu0 0.0
    %1787 = vmatpush1.xpose.msra.mxu0 0.0
    %1788 = vmatprep.subr.mxu0 0.0
    %1789 = vmatpush1.xpose.msra.mxu0 0.0
    %1790 = vmatprep.subr.mxu0 0.0
    %1791 = vmatpush1.xpose.msra.mxu0 0.0
    %1792 = vmatprep.subr.mxu0 0.0
    %1793 = vmatpush1.xpose.msra.mxu0 0.0
    %1794 = vmatprep.subr.mxu0 0.0
    %1795 = vmatpush1.xpose.msra.mxu0 0.0
    %1796 = vmatprep.subr.mxu0 0.0
    %1797 = vmatpush1.xpose.msra.mxu0 0.0
    %1798 = vmatprep.mubr.f32.mxu0 0.0
    %1799 = vmatmul.mubr.f32.gmra.mrb[0].mxu0 %v1729
    %v1800 = vpop.f32.mrb[0].mxu0
    %v1801 = vadd.f32 0.0, %v1800
    %v1802 = vpop.f32.mrb[0].mxu0
    %1803 = vmatprep.mubr.f32.mxu0 0.0
    %1804 = vmatmul.mubr.f32.gmra.mrb[0].mxu0 %v1732
    %v1805 = vpop.f32.mrb[0].mxu0
    %v1806 = vadd.f32 0.0, %v1805
    %v1807 = vpop.f32.mrb[0].mxu0
    %1808 = vdwg.mxu0
    %v1809 = vmul.f32 %v1720, 0.35355338
    %v1810 = vmul.f32 %v1725, 0.35355338
    %v1811 = vmul.f32 %v1801, 0.35355338
    %v1812 = vmul.f32 %v1806, 0.35355338
    %v1813 = vadd.f32 %v1809, %v317
    %v1814 = vadd.f32 %v1810, %v317
    %v1815 = vadd.f32 %v1811, %v321
    %v1816 = vadd.f32 %v1812, %v321
    %v1817 = vsel %vm640, %v1813, -inf
    %1818 = vmax.xlane.f32.xlu0 %v1817
    %v1819 = vpop.xlane.xlu0 %1818
    %v1820 = vsel %vm640, %v1814, -inf
    %1821 = vmax.xlane.f32.xlu0 %v1820
    %v1822 = vpop.xlane.xlu0 %1821
    %v1823 = vsel %vm640, %v1815, -inf
    %1824 = vmax.xlane.f32.xlu0 %v1823
    %v1825 = vpop.xlane.xlu0 %1824
    %v1826 = vsel %vm640, %v1816, -inf
    %1827 = vmax.xlane.f32.xlu0 %v1826
    %v1828 = vpop.xlane.xlu0 %1827
    %v1829 = vsub.f32 %v1813, %v1819
    %v1830 = vsub.f32 %v1814, %v1822
    %v1831 = vsub.f32 %v1815, %v1825
    %v1832 = vsub.f32 %v1816, %v1828
    %v1833 = vmul.f32 %v1829, 1.442695
    %v1834 = vpow.pop %v1833
    %v1835 = vmul.f32 %v1830, 1.442695
    %v1836 = vpow.pop %v1835
    %v1837 = vmul.f32 %v1831, 1.442695
    %v1838 = vpow.pop %v1837
    %v1839 = vmul.f32 %v1832, 1.442695
    %v1840 = vpow.pop %v1839
    %v1841 = vsel %vm640, %v1834, 0.0
    %1842 = vadd.xlane.f32.xlu0 %v1841
    %v1843 = vpop.xlane.xlu0 %1842
    %v1844 = vsel %vm640, %v1836, 0.0
    %1845 = vadd.xlane.f32.xlu0 %v1844
    %v1846 = vpop.xlane.xlu0 %1845
    %v1847 = vsel %vm640, %v1838, 0.0
    %1848 = vadd.xlane.f32.xlu0 %v1847
    %v1849 = vpop.xlane.xlu0 %1848
    %v1850 = vsel %vm640, %v1840, 0.0
    %1851 = vadd.xlane.f32.xlu0 %v1850
    %v1852 = vpop.xlane.xlu0 %1851
    %v1853 = vrcp.pop %v1843
    %v1854 = vrcp.pop %v1846
    %v1855 = vrcp.pop %v1849
    %v1856 = vrcp.pop %v1852
    %v1857 = vmul.f32 %v1834, %v1853
    %v1858 = vmul.f32 %v1836, %v1854
    %v1859 = vmul.f32 %v1838, %v1855
    %v1860 = vmul.f32 %v1840, %v1856
    %v1862 = vsel %vm640, %v1857, 0
    %v1865 = vsel %vm640, %v1858, 0
    %1867 = vmatprep.subr.mxu0 0.0
    %1868 = vmatpush1.msra.mxu0 %v686
    %1869 = vmatprep.subr.mxu0 0.0
    %1870 = vmatpush1.msra.mxu0 %v688
    %1871 = vmatprep.subr.mxu0 0.0
    %1872 = vmatpush1.msra.mxu0 0.0
    %1873 = vmatprep.subr.mxu0 0.0
    %1874 = vmatpush1.msra.mxu0 0.0
    %1875 = vmatprep.subr.mxu0 0.0
    %1876 = vmatpush1.msra.mxu0 0.0
    %1877 = vmatprep.subr.mxu0 0.0
    %1878 = vmatpush1.msra.mxu0 0.0
    %1879 = vmatprep.subr.mxu0 0.0
    %1880 = vmatpush1.msra.mxu0 0.0
    %1881 = vmatprep.subr.mxu0 0.0
    %1882 = vmatpush1.msra.mxu0 0.0
    %1883 = vmatprep.subr.mxu0 0.0
    %1884 = vmatpush1.msra.mxu0 0.0
    %1885 = vmatprep.subr.mxu0 0.0
    %1886 = vmatpush1.msra.mxu0 0.0
    %1887 = vmatprep.subr.mxu0 0.0
    %1888 = vmatpush1.msra.mxu0 0.0
    %1889 = vmatprep.subr.mxu0 0.0
    %1890 = vmatpush1.msra.mxu0 0.0
    %1891 = vmatprep.subr.mxu0 0.0
    %1892 = vmatpush1.msra.mxu0 0.0
    %1893 = vmatprep.subr.mxu0 0.0
    %1894 = vmatpush1.msra.mxu0 0.0
    %1895 = vmatprep.subr.mxu0 0.0
    %1896 = vmatpush1.msra.mxu0 0.0
    %1897 = vmatprep.subr.mxu0 0.0
    %1898 = vmatpush1.msra.mxu0 0.0
    %1899 = vmatprep.subr.mxu0 0.0
    %1900 = vmatpush1.msra.mxu0 0.0
    %1901 = vmatprep.subr.mxu0 0.0
    %1902 = vmatpush1.msra.mxu0 0.0
    %1903 = vmatprep.subr.mxu0 0.0
    %1904 = vmatpush1.msra.mxu0 0.0
    %1905 = vmatprep.subr.mxu0 0.0
    %1906 = vmatpush1.msra.mxu0 0.0
    %1907 = vmatprep.subr.mxu0 0.0
    %1908 = vmatpush1.msra.mxu0 0.0
    %1909 = vmatprep.subr.mxu0 0.0
    %1910 = vmatpush1.msra.mxu0 0.0
    %1911 = vmatprep.subr.mxu0 0.0
    %1912 = vmatpush1.msra.mxu0 0.0
    %1913 = vmatprep.subr.mxu0 0.0
    %1914 = vmatpush1.msra.mxu0 0.0
    %1915 = vmatprep.subr.mxu0 0.0
    %1916 = vmatpush1.msra.mxu0 0.0
    %1917 = vmatprep.subr.mxu0 0.0
    %1918 = vmatpush1.msra.mxu0 0.0
    %1919 = vmatprep.subr.mxu0 0.0
    %1920 = vmatpush1.msra.mxu0 0.0
    %1921 = vmatprep.subr.mxu0 0.0
    %1922 = vmatpush1.msra.mxu0 0.0
    %1923 = vmatprep.subr.mxu0 0.0
    %1924 = vmatpush1.msra.mxu0 0.0
    %1925 = vmatprep.subr.mxu0 0.0
    %1926 = vmatpush1.msra.mxu0 0.0
    %1927 = vmatprep.subr.mxu0 0.0
    %1928 = vmatpush1.msra.mxu0 0.0
    %1929 = vmatprep.subr.mxu0 0.0
    %1930 = vmatpush1.msra.mxu0 0.0
    %1931 = vmatprep.mubr.f32.mxu0 0.0
    %1932 = vmatmul.mubr.f32.gmra.mrb[0].mxu0 %v1862
    %v1933 = vpop.f32.mrb[0].mxu0
    %v1934 = vadd.f32 0.0, %v1933
    %v1935 = vpop.f32.mrb[0].mxu0
    %1936 = vmatprep.mubr.f32.mxu0 0.0
    %1937 = vmatmul.mubr.f32.gmra.mrb[0].mxu0 %v1865
    %v1938 = vpop.f32.mrb[0].mxu0
    %v1939 = vadd.f32 0.0, %v1938
    %v1940 = vpop.f32.mrb[0].mxu0
    %1941 = vdwg.mxu0
    %v1943 = vsel %vm640, %v1859, 0
    %v1946 = vsel %vm640, %v1860, 0
    %1948 = vmatprep.subr.mxu0 0.0
    %1949 = vmatpush1.msra.mxu0 %v773
    %1950 = vmatprep.subr.mxu0 0.0
    %1951 = vmatpush1.msra.mxu0 %v775
    %1952 = vmatprep.subr.mxu0 0.0
    %1953 = vmatpush1.msra.mxu0 0.0
    %1954 = vmatprep.subr.mxu0 0.0
    %1955 = vmatpush1.msra.mxu0 0.0
    %1956 = vmatprep.subr.mxu0 0.0
    %1957 = vmatpush1.msra.mxu0 0.0
    %1958 = vmatprep.subr.mxu0 0.0
    %1959 = vmatpush1.msra.mxu0 0.0
    %1960 = vmatprep.subr.mxu0 0.0
    %1961 = vmatpush1.msra.mxu0 0.0
    %1962 = vmatprep.subr.mxu0 0.0
    %1963 = vmatpush1.msra.mxu0 0.0
    %1964 = vmatprep.subr.mxu0 0.0
    %1965 = vmatpush1.msra.mxu0 0.0
    %1966 = vmatprep.subr.mxu0 0.0
    %1967 = vmatpush1.msra.mxu0 0.0
    %1968 = vmatprep.subr.mxu0 0.0
    %1969 = vmatpush1.msra.mxu0 0.0
    %1970 = vmatprep.subr.mxu0 0.0
    %1971 = vmatpush1.msra.mxu0 0.0
    %1972 = vmatprep.subr.mxu0 0.0
    %1973 = vmatpush1.msra.mxu0 0.0
    %1974 = vmatprep.subr.mxu0 0.0
    %1975 = vmatpush1.msra.mxu0 0.0
    %1976 = vmatprep.subr.mxu0 0.0
    %1977 = vmatpush1.msra.mxu0 0.0
    %1978 = vmatprep.subr.mxu0 0.0
    %1979 = vmatpush1.msra.mxu0 0.0
    %1980 = vmatprep.subr.mxu0 0.0
    %1981 = vmatpush1.msra.mxu0 0.0
    %1982 = vmatprep.subr.mxu0 0.0
    %1983 = vmatpush1.msra.mxu0 0.0
    %1984 = vmatprep.subr.mxu0 0.0
    %1985 = vmatpush1.msra.mxu0 0.0
    %1986 = vmatprep.subr.mxu0 0.0
    %1987 = vmatpush1.msra.mxu0 0.0
    %1988 = vmatprep.subr.mxu0 0.0
    %1989 = vmatpush1.msra.mxu0 0.0
    %1990 = vmatprep.subr.mxu0 0.0
    %1991 = vmatpush1.msra.mxu0 0.0
    %1992 = vmatprep.subr.mxu0 0.0
    %1993 = vmatpush1.msra.mxu0 0.0
    %1994 = vmatprep.subr.mxu0 0.0
    %1995 = vmatpush1.msra.mxu0 0.0
    %1996 = vmatprep.subr.mxu0 0.0
    %1997 = vmatpush1.msra.mxu0 0.0
    %1998 = vmatprep.subr.mxu0 0.0
    %1999 = vmatpush1.msra.mxu0 0.0
    %2000 = vmatprep.subr.mxu0 0.0
    %2001 = vmatpush1.msra.mxu0 0.0
    %2002 = vmatprep.subr.mxu0 0.0
    %2003 = vmatpush1.msra.mxu0 0.0
    %2004 = vmatprep.subr.mxu0 0.0
    %2005 = vmatpush1.msra.mxu0 0.0
    %2006 = vmatprep.subr.mxu0 0.0
    %2007 = vmatpush1.msra.mxu0 0.0
    %2008 = vmatprep.subr.mxu0 0.0
    %2009 = vmatpush1.msra.mxu0 0.0
    %2010 = vmatprep.subr.mxu0 0.0
    %2011 = vmatpush1.msra.mxu0 0.0
    %2012 = vmatprep.mubr.f32.mxu0 0.0
    %2013 = vmatmul.mubr.f32.gmra.mrb[0].mxu0 %v1943
    %v2014 = vpop.f32.mrb[0].mxu0
    %v2015 = vadd.f32 0.0, %v2014
    %v2016 = vpop.f32.mrb[0].mxu0
    %2017 = vmatprep.mubr.f32.mxu0 0.0
    %2018 = vmatmul.mubr.f32.gmra.mrb[0].mxu0 %v1946
    %v2019 = vpop.f32.mrb[0].mxu0
    %v2020 = vadd.f32 0.0, %v2019
    %v2021 = vpop.f32.mrb[0].mxu0
    %2022 = vdwg.mxu0
    %v2023 = vmul.f32 %v1934, %v339
    %v2024 = vmul.f32 %v1939, %v339
    %v2025 = vmul.f32 %v2015, %v339
    %v2026 = vmul.f32 %v2020, %v339
    %v2027 = vadd.f32 %v1639, %v2023
    %v2028 = vadd.f32 %v1640, %v2024
    %v2029 = vadd.f32 %v1641, %v2025
    %v2030 = vadd.f32 %v1642, %v2026
    %v2031 = vld [vmem:[#allocation2 + $0x88] sm:$0xff]
    %v2032 = vld [vmem:[#allocation2 + $0x90] sm:$0xff]
    %v2033 = vld [vmem:[#allocation2 + $0x98] sm:$0xff]
    %v2034 = vld [vmem:[#allocation2 + $0xa0] sm:$0xff]
    %v2035 = vld [vmem:[#allocation2 + $0xa8] sm:$0x1]
    %v2036 = vlaneseq
    %v2037 = vshrl.u32 %v2036, 7
    %v2038 = vsub.s32 0, %v2037
    %v2039 = vrot.slane %v2035, %v2038
    %v2041 = vsel %vm220, %v2027, 0
    %v2044 = vsel %vm220, %v2028, 0
    %v2047 = vsel %vm220, %v2029, 0
    %v2050 = vsel %vm220, %v2030, 0
    %2052 = vmatprep.subr.mxu0 0.0
    %2053 = vmatpush1.msra.mxu0 %v2031
    %2054 = vmatprep.subr.mxu0 0.0
    %2055 = vmatpush1.msra.mxu0 %v2032
    %2056 = vmatprep.subr.mxu0 0.0
    %2057 = vmatpush1.msra.mxu0 %v2033
    %2058 = vmatprep.subr.mxu0 0.0
    %2059 = vmatpush1.msra.mxu0 %v2034
    %2060 = vmatprep.subr.mxu0 0.0
    %2061 = vmatpush1.msra.mxu0 0.0
    %2062 = vmatprep.subr.mxu0 0.0
    %2063 = vmatpush1.msra.mxu0 0.0
    %2064 = vmatprep.subr.mxu0 0.0
    %2065 = vmatpush1.msra.mxu0 0.0
    %2066 = vmatprep.subr.mxu0 0.0
    %2067 = vmatpush1.msra.mxu0 0.0
    %2068 = vmatprep.subr.mxu0 0.0
    %2069 = vmatpush1.msra.mxu0 0.0
    %2070 = vmatprep.subr.mxu0 0.0
    %2071 = vmatpush1.msra.mxu0 0.0
    %2072 = vmatprep.subr.mxu0 0.0
    %2073 = vmatpush1.msra.mxu0 0.0
    %2074 = vmatprep.subr.mxu0 0.0
    %2075 = vmatpush1.msra.mxu0 0.0
    %2076 = vmatprep.subr.mxu0 0.0
    %2077 = vmatpush1.msra.mxu0 0.0
    %2078 = vmatprep.subr.mxu0 0.0
    %2079 = vmatpush1.msra.mxu0 0.0
    %2080 = vmatprep.subr.mxu0 0.0
    %2081 = vmatpush1.msra.mxu0 0.0
    %2082 = vmatprep.subr.mxu0 0.0
    %2083 = vmatpush1.msra.mxu0 0.0
    %2084 = vmatprep.subr.mxu0 0.0
    %2085 = vmatpush1.msra.mxu0 0.0
    %2086 = vmatprep.subr.mxu0 0.0
    %2087 = vmatpush1.msra.mxu0 0.0
    %2088 = vmatprep.subr.mxu0 0.0
    %2089 = vmatpush1.msra.mxu0 0.0
    %2090 = vmatprep.subr.mxu0 0.0
    %2091 = vmatpush1.msra.mxu0 0.0
    %2092 = vmatprep.subr.mxu0 0.0
    %2093 = vmatpush1.msra.mxu0 0.0
    %2094 = vmatprep.subr.mxu0 0.0
    %2095 = vmatpush1.msra.mxu0 0.0
    %2096 = vmatprep.subr.mxu0 0.0
    %2097 = vmatpush1.msra.mxu0 0.0
    %2098 = vmatprep.subr.mxu0 0.0
    %2099 = vmatpush1.msra.mxu0 0.0
    %2100 = vmatprep.subr.mxu0 0.0
    %2101 = vmatpush1.msra.mxu0 0.0
    %2102 = vmatprep.subr.mxu0 0.0
    %2103 = vmatpush1.msra.mxu0 0.0
    %2104 = vmatprep.subr.mxu0 0.0
    %2105 = vmatpush1.msra.mxu0 0.0
    %2106 = vmatprep.subr.mxu0 0.0
    %2107 = vmatpush1.msra.mxu0 0.0
    %2108 = vmatprep.subr.mxu0 0.0
    %2109 = vmatpush1.msra.mxu0 0.0
    %2110 = vmatprep.subr.mxu0 0.0
    %2111 = vmatpush1.msra.mxu0 0.0
    %2112 = vmatprep.subr.mxu0 0.0
    %2113 = vmatpush1.msra.mxu0 0.0
    %2114 = vmatprep.subr.mxu0 0.0
    %2115 = vmatpush1.msra.mxu0 0.0
    %2116 = vmatprep.mubr.f32.mxu0 0.0
    %2117 = vmatmul.mubr.f32.gmra.mrb[0].mxu0 %v2041
    %v2118 = vpop.f32.mrb[0].mxu0
    %v2119 = vadd.f32 %v2039, %v2118
    %v2120 = vpop.f32.mrb[0].mxu0
    %2121 = vmatprep.mubr.f32.mxu0 0.0
    %2122 = vmatmul.mubr.f32.gmra.mrb[0].mxu0 %v2044
    %v2123 = vpop.f32.mrb[0].mxu0
    %v2124 = vadd.f32 %v2039, %v2123
    %v2125 = vpop.f32.mrb[0].mxu0
    %2126 = vmatprep.mubr.f32.mxu0 0.0
    %2127 = vmatmul.mubr.f32.gmra.mrb[0].mxu0 %v2047
    %v2128 = vpop.f32.mrb[0].mxu0
    %v2129 = vadd.f32 %v2039, %v2128
    %v2130 = vpop.f32.mrb[0].mxu0
    %2131 = vmatprep.mubr.f32.mxu0 0.0
    %2132 = vmatmul.mubr.f32.gmra.mrb[0].mxu0 %v2050
    %v2133 = vpop.f32.mrb[0].mxu0
    %v2134 = vadd.f32 %v2039, %v2133
    %v2135 = vpop.f32.mrb[0].mxu0
    %2136 = vdwg.mxu0
    %v2137 = vadd.f32 %v2119, %v286
    %v2138 = vadd.f32 %v2124, %v287
    %v2139 = vadd.f32 %v2129, %v288
    %v2140 = vadd.f32 %v2134, %v289
    %v2141 = vld [vmem:[#allocation2 + $0xb0] sm:$0x1]
    %v2142 = vld [vmem:[#allocation2 + $0xb8] sm:$0x1]
    %v2143 = vsel %vm220, %v2137, 0.0
    %2144 = vadd.xlane.f32.xlu0 %v2143
    %v2145 = vpop.xlane.xlu0 %2144
    %v2146 = vsel %vm220, %v2138, 0.0
    %2147 = vadd.xlane.f32.xlu0 %v2146
    %v2148 = vpop.xlane.xlu0 %2147
    %v2149 = vsel %vm220, %v2139, 0.0
    %2150 = vadd.xlane.f32.xlu0 %v2149
    %v2151 = vpop.xlane.xlu0 %2150
    %v2152 = vsel %vm220, %v2140, 0.0
    %2153 = vadd.xlane.f32.xlu0 %v2152
    %v2154 = vpop.xlane.xlu0 %2153
    %v2155 = vmul.f32 %v2145, %v233
    %v2156 = vmul.f32 %v2148, %v233
    %v2157 = vmul.f32 %v2151, %v233
    %v2158 = vmul.f32 %v2154, %v233
    %v2159 = vsub.f32 %v2137, %v2155
    %v2160 = vsub.f32 %v2138, %v2156
    %v2161 = vsub.f32 %v2139, %v2157
    %v2162 = vsub.f32 %v2140, %v2158
    %v2163 = vmul.f32 %v2159, %v2159
    %v2164 = vmul.f32 %v2160, %v2160
    %v2165 = vmul.f32 %v2161, %v2161
    %v2166 = vmul.f32 %v2162, %v2162
    %v2167 = vsel %vm220, %v2163, 0.0
    %2168 = vadd.xlane.f32.xlu0 %v2167
    %v2169 = vpop.xlane.xlu0 %2168
    %v2170 = vsel %vm220, %v2164, 0.0
    %2171 = vadd.xlane.f32.xlu0 %v2170
    %v2172 = vpop.xlane.xlu0 %2171
    %v2173 = vsel %vm220, %v2165, 0.0
    %2174 = vadd.xlane.f32.xlu0 %v2173
    %v2175 = vpop.xlane.xlu0 %2174
    %v2176 = vsel %vm220, %v2166, 0.0
    %2177 = vadd.xlane.f32.xlu0 %v2176
    %v2178 = vpop.xlane.xlu0 %2177
    %v2179 = vmul.f32 %v2169, %v233
    %v2180 = vmul.f32 %v2172, %v233
    %v2181 = vmul.f32 %v2175, %v233
    %v2182 = vmul.f32 %v2178, %v233
    %v2183 = vadd.f32 %v2179, 1e-12
    %v2184 = vadd.f32 %v2180, 1e-12
    %v2185 = vadd.f32 %v2181, 1e-12
    %v2186 = vadd.f32 %v2182, 1e-12
    %v2187 = vrsqrt.pop %v2183
    %v2188 = vrsqrt.pop %v2184
    %v2189 = vrsqrt.pop %v2185
    %v2190 = vrsqrt.pop %v2186
    %v2191 = vmul.f32 %v2159, %v2187
    %v2192 = vmul.f32 %v2160, %v2188
    %v2193 = vmul.f32 %v2161, %v2189
    %v2194 = vmul.f32 %v2162, %v2190
    %v2195 = vlaneseq
    %v2196 = vshrl.u32 %v2195, 7
    %v2197 = vsub.s32 0, %v2196
    %v2198 = vrot.slane %v2141, %v2197
    %v2199 = vmul.f32 %v2191, %v2198
    %v2200 = vmul.f32 %v2192, %v2198
    %v2201 = vmul.f32 %v2193, %v2198
    %v2202 = vmul.f32 %v2194, %v2198
    %v2203 = vlaneseq
    %v2204 = vshrl.u32 %v2203, 7
    %v2205 = vsub.s32 0, %v2204
    %v2206 = vrot.slane %v2142, %v2205
    %v2207 = vadd.f32 %v2199, %v2206
    %v2208 = vadd.f32 %v2200, %v2206
    %v2209 = vadd.f32 %v2201, %v2206
    %v2210 = vadd.f32 %v2202, %v2206
    %v2211 = vld [vmem:[#allocation2 + $0xc0] sm:$0xff]
    %v2212 = vld [vmem:[#allocation2 + $0xc8] sm:$0xff]
    %v2213 = vld [vmem:[#allocation2 + $0xd0] sm:$0xff]
    %v2214 = vld [vmem:[#allocation2 + $0xd8] sm:$0xff]
    %v2215 = vld [vmem:[#allocation2 + $0xe0] sm:$0x1]
    %v2216 = vlaneseq
    %v2217 = vshrl.u32 %v2216, 7
    %v2218 = vsub.s32 0, %v2217
    %v2219 = vrot.slane %v2215, %v2218
    %v2221 = vsel %vm220, %v2207, 0
    %v2224 = vsel %vm220, %v2208, 0
    %v2227 = vsel %vm220, %v2209, 0
    %v2230 = vsel %vm220, %v2210, 0
    %2232 = vmatprep.subr.mxu0 0.0
    %2233 = vmatpush1.msra.mxu0 %v2211
    %2234 = vmatprep.subr.mxu0 0.0
    %2235 = vmatpush1.msra.mxu0 %v2212
    %2236 = vmatprep.subr.mxu0 0.0
    %2237 = vmatpush1.msra.mxu0 %v2213
    %2238 = vmatprep.subr.mxu0 0.0
    %2239 = vmatpush1.msra.mxu0 %v2214
    %2240 = vmatprep.subr.mxu0 0.0
    %2241 = vmatpush1.msra.mxu0 0.0
    %2242 = vmatprep.subr.mxu0 0.0
    %2243 = vmatpush1.msra.mxu0 0.0
    %2244 = vmatprep.subr.mxu0 0.0
    %2245 = vmatpush1.msra.mxu0 0.0
    %2246 = vmatprep.subr.mxu0 0.0
    %2247 = vmatpush1.msra.mxu0 0.0
    %2248 = vmatprep.subr.mxu0 0.0
    %2249 = vmatpush1.msra.mxu0 0.0
    %2250 = vmatprep.subr.mxu0 0.0
    %2251 = vmatpush1.msra.mxu0 0.0
    %2252 = vmatprep.subr.mxu0 0.0
    %2253 = vmatpush1.msra.mxu0 0.0
    %2254 = vmatprep.subr.mxu0 0.0
    %2255 = vmatpush1.msra.mxu0 0.0
    %2256 = vmatprep.subr.mxu0 0.0
    %2257 = vmatpush1.msra.mxu0 0.0
    %2258 = vmatprep.subr.mxu0 0.0
    %2259 = vmatpush1.msra.mxu0 0.0
    %2260 = vmatprep.subr.mxu0 0.0
    %2261 = vmatpush1.msra.mxu0 0.0
    %2262 = vmatprep.subr.mxu0 0.0
    %2263 = vmatpush1.msra.mxu0 0.0
    %2264 = vmatprep.subr.mxu0 0.0
    %2265 = vmatpush1.msra.mxu0 0.0
    %2266 = vmatprep.subr.mxu0 0.0
    %2267 = vmatpush1.msra.mxu0 0.0
    %2268 = vmatprep.subr.mxu0 0.0
    %2269 = vmatpush1.msra.mxu0 0.0
    %2270 = vmatprep.subr.mxu0 0.0
    %2271 = vmatpush1.msra.mxu0 0.0
    %2272 = vmatprep.subr.mxu0 0.0
    %2273 = vmatpush1.msra.mxu0 0.0
    %2274 = vmatprep.subr.mxu0 0.0
    %2275 = vmatpush1.msra.mxu0 0.0
    %2276 = vmatprep.subr.mxu0 0.0
    %2277 = vmatpush1.msra.mxu0 0.0
    %2278 = vmatprep.subr.mxu0 0.0
    %2279 = vmatpush1.msra.mxu0 0.0
    %2280 = vmatprep.subr.mxu0 0.0
    %2281 = vmatpush1.msra.mxu0 0.0
    %2282 = vmatprep.subr.mxu0 0.0
    %2283 = vmatpush1.msra.mxu0 0.0
    %2284 = vmatprep.subr.mxu0 0.0
    %2285 = vmatpush1.msra.mxu0 0.0
    %2286 = vmatprep.subr.mxu0 0.0
    %2287 = vmatpush1.msra.mxu0 0.0
    %2288 = vmatprep.subr.mxu0 0.0
    %2289 = vmatpush1.msra.mxu0 0.0
    %2290 = vmatprep.subr.mxu0 0.0
    %2291 = vmatpush1.msra.mxu0 0.0
    %2292 = vmatprep.subr.mxu0 0.0
    %2293 = vmatpush1.msra.mxu0 0.0
    %2294 = vmatprep.subr.mxu0 0.0
    %2295 = vmatpush1.msra.mxu0 0.0
    %2296 = vmatprep.mubr.f32.mxu0 0.0
    %2297 = vmatmul.mubr.f32.gmra.mrb[0].mxu0 %v2221
    %v2298 = vpop.f32.mrb[0].mxu0
    %v2299 = vadd.f32 %v2219, %v2298
    %v2300 = vpop.f32.mrb[0].mxu0
    %2301 = vmatprep.mubr.f32.mxu0 0.0
    %2302 = vmatmul.mubr.f32.gmra.mrb[0].mxu0 %v2224
    %v2303 = vpop.f32.mrb[0].mxu0
    %v2304 = vadd.f32 %v2219, %v2303
    %v2305 = vpop.f32.mrb[0].mxu0
    %2306 = vmatprep.mubr.f32.mxu0 0.0
    %2307 = vmatmul.mubr.f32.gmra.mrb[0].mxu0 %v2227
    %v2308 = vpop.f32.mrb[0].mxu0
    %v2309 = vadd.f32 %v2219, %v2308
    %v2310 = vpop.f32.mrb[0].mxu0
    %2311 = vmatprep.mubr.f32.mxu0 0.0
    %2312 = vmatmul.mubr.f32.gmra.mrb[0].mxu0 %v2230
    %v2313 = vpop.f32.mrb[0].mxu0
    %v2314 = vadd.f32 %v2219, %v2313
    %v2315 = vpop.f32.mrb[0].mxu0
    %2316 = vdwg.mxu0
    %v2317 = vmul.f32 %v2299, 0.5
    %v2318 = vmul.f32 %v2304, 0.5
    %v2319 = vmul.f32 %v2309, 0.5
    %v2320 = vmul.f32 %v2314, 0.5
    %v2321 = vmul.f32 %v2299, 0.70710677
    %v2322 = vmul.f32 %v2304, 0.70710677
    %v2323 = vmul.f32 %v2309, 0.70710677
    %v2324 = vmul.f32 %v2314, 0.70710677
    %v2325 = verf.f32.pop %v2321
    %v2326 = verf.f32.pop %v2322
    %v2327 = verf.f32.pop %v2323
    %v2328 = verf.f32.pop %v2324
    %v2329 = vadd.f32 %v2325, 1.0
    %v2330 = vadd.f32 %v2326, 1.0
    %v2331 = vadd.f32 %v2327, 1.0
    %v2332 = vadd.f32 %v2328, 1.0
    %v2333 = vmul.f32 %v2317, %v2329
    %v2334 = vmul.f32 %v2318, %v2330
    %v2335 = vmul.f32 %v2319, %v2331
    %v2336 = vmul.f32 %v2320, %v2332
    %v2337 = vld [vmem:[#allocation2 + $0xe8] sm:$0xff]
    %v2338 = vld [vmem:[#allocation2 + $0xf0] sm:$0xff]
    %v2339 = vld [vmem:[#allocation2 + $0xf8] sm:$0xff]
    %v2340 = vld [vmem:[#allocation2 + $0x100] sm:$0xff]
    %v2341 = vld [vmem:[#allocation2 + $0x108] sm:$0xff]
    %v2342 = vld [vmem:[#allocation2 + $0x110] sm:$0xff]
    %v2343 = vld [vmem:[#allocation2 + $0x118] sm:$0xff]
    %v2344 = vld [vmem:[#allocation2 + $0x120] sm:$0xff]
    %v2345 = vld [vmem:[#allocation2 + $0x128] sm:$0x1]
    %v2346 = vlaneseq
    %v2347 = vshrl.u32 %v2346, 7
    %v2348 = vsub.s32 0, %v2347
    %v2349 = vrot.slane %v2345, %v2348
    %vm2350 = vcmask 523264
    %v2352 = vsel %vm2350, %v2333, 0
    %v2355 = vsel %vm2350, %v2334, 0
    %v2358 = vsel %vm2350, %v2335, 0
    %v2361 = vsel %vm2350, %v2336, 0
    %2363 = vmatprep.subr.mxu0 0.0
    %2364 = vmatpush1.msra.mxu0 %v2337
    %2365 = vmatprep.subr.mxu0 0.0
    %2366 = vmatpush1.msra.mxu0 %v2338
    %2367 = vmatprep.subr.mxu0 0.0
    %2368 = vmatpush1.msra.mxu0 %v2339
    %2369 = vmatprep.subr.mxu0 0.0
    %2370 = vmatpush1.msra.mxu0 %v2340
    %2371 = vmatprep.subr.mxu0 0.0
    %2372 = vmatpush1.msra.mxu0 %v2341
    %2373 = vmatprep.subr.mxu0 0.0
    %2374 = vmatpush1.msra.mxu0 %v2342
    %2375 = vmatprep.subr.mxu0 0.0
    %2376 = vmatpush1.msra.mxu0 %v2343
    %2377 = vmatprep.subr.mxu0 0.0
    %2378 = vmatpush1.msra.mxu0 %v2344
    %2379 = vmatprep.subr.mxu0 0.0
    %2380 = vmatpush1.msra.mxu0 0.0
    %2381 = vmatprep.subr.mxu0 0.0
    %2382 = vmatpush1.msra.mxu0 0.0
    %2383 = vmatprep.subr.mxu0 0.0
    %2384 = vmatpush1.msra.mxu0 0.0
    %2385 = vmatprep.subr.mxu0 0.0
    %2386 = vmatpush1.msra.mxu0 0.0
    %2387 = vmatprep.subr.mxu0 0.0
    %2388 = vmatpush1.msra.mxu0 0.0
    %2389 = vmatprep.subr.mxu0 0.0
    %2390 = vmatpush1.msra.mxu0 0.0
    %2391 = vmatprep.subr.mxu0 0.0
    %2392 = vmatpush1.msra.mxu0 0.0
    %2393 = vmatprep.subr.mxu0 0.0
    %2394 = vmatpush1.msra.mxu0 0.0
    %2395 = vmatprep.subr.mxu0 0.0
    %2396 = vmatpush1.msra.mxu0 0.0
    %2397 = vmatprep.subr.mxu0 0.0
    %2398 = vmatpush1.msra.mxu0 0.0
    %2399 = vmatprep.subr.mxu0 0.0
    %2400 = vmatpush1.msra.mxu0 0.0
    %2401 = vmatprep.subr.mxu0 0.0
    %2402 = vmatpush1.msra.mxu0 0.0
    %2403 = vmatprep.subr.mxu0 0.0
    %2404 = vmatpush1.msra.mxu0 0.0
    %2405 = vmatprep.subr.mxu0 0.0
    %2406 = vmatpush1.msra.mxu0 0.0
    %2407 = vmatprep.subr.mxu0 0.0
    %2408 = vmatpush1.msra.mxu0 0.0
    %2409 = vmatprep.subr.mxu0 0.0
    %2410 = vmatpush1.msra.mxu0 0.0
    %2411 = vmatprep.subr.mxu0 0.0
    %2412 = vmatpush1.msra.mxu0 0.0
    %2413 = vmatprep.subr.mxu0 0.0
    %2414 = vmatpush1.msra.mxu0 0.0
    %2415 = vmatprep.subr.mxu0 0.0
    %2416 = vmatpush1.msra.mxu0 0.0
    %2417 = vmatprep.subr.mxu0 0.0
    %2418 = vmatpush1.msra.mxu0 0.0
    %2419 = vmatprep.subr.mxu0 0.0
    %2420 = vmatpush1.msra.mxu0 0.0
    %2421 = vmatprep.subr.mxu0 0.0
    %2422 = vmatpush1.msra.mxu0 0.0
    %2423 = vmatprep.subr.mxu0 0.0
    %2424 = vmatpush1.msra.mxu0 0.0
    %2425 = vmatprep.subr.mxu0 0.0
    %2426 = vmatpush1.msra.mxu0 0.0
    %2427 = vmatprep.mubr.f32.mxu0 0.0
    %2428 = vmatmul.mubr.f32.gmra.mrb[0].mxu0 %v2352
    %v2429 = vpop.f32.mrb[0].mxu0
    %v2430 = vadd.f32 %v2349, %v2429
    %v2431 = vpop.f32.mrb[0].mxu0
    %2432 = vmatprep.mubr.f32.mxu0 0.0
    %2433 = vmatmul.mubr.f32.gmra.mrb[0].mxu0 %v2355
    %v2434 = vpop.f32.mrb[0].mxu0
    %v2435 = vadd.f32 %v2349, %v2434
    %v2436 = vpop.f32.mrb[0].mxu0
    %2437 = vmatprep.mubr.f32.mxu0 0.0
    %2438 = vmatmul.mubr.f32.gmra.mrb[0].mxu0 %v2358
    %v2439 = vpop.f32.mrb[0].mxu0
    %v2440 = vadd.f32 %v2349, %v2439
    %v2441 = vpop.f32.mrb[0].mxu0
    %2442 = vmatprep.mubr.f32.mxu0 0.0
    %2443 = vmatmul.mubr.f32.gmra.mrb[0].mxu0 %v2361
    %v2444 = vpop.f32.mrb[0].mxu0
    %v2445 = vadd.f32 %v2349, %v2444
    %v2446 = vpop.f32.mrb[0].mxu0
    %2447 = vdwg.mxu0
    %v2448 = vadd.f32 %v2430, %v2207
    %v2449 = vadd.f32 %v2435, %v2208
    %v2450 = vadd.f32 %v2440, %v2209
    %v2451 = vadd.f32 %v2445, %v2210
    %v2452 = vld [vmem:[#allocation2 + $0x130] sm:$0x1]
    %v2453 = vld [vmem:[#allocation2 + $0x138] sm:$0x1]
    %v2454 = vsel %vm220, %v2448, 0.0
    %2455 = vadd.xlane.f32.xlu0 %v2454
    %v2456 = vpop.xlane.xlu0 %2455
    %v2457 = vsel %vm220, %v2449, 0.0
    %2458 = vadd.xlane.f32.xlu0 %v2457
    %v2459 = vpop.xlane.xlu0 %2458
    %v2460 = vsel %vm220, %v2450, 0.0
    %2461 = vadd.xlane.f32.xlu0 %v2460
    %v2462 = vpop.xlane.xlu0 %2461
    %v2463 = vsel %vm220, %v2451, 0.0
    %2464 = vadd.xlane.f32.xlu0 %v2463
    %v2465 = vpop.xlane.xlu0 %2464
    %v2466 = vmul.f32 %v2456, %v233
    %v2467 = vmul.f32 %v2459, %v233
    %v2468 = vmul.f32 %v2462, %v233
    %v2469 = vmul.f32 %v2465, %v233
    %v2470 = vsub.f32 %v2448, %v2466
    %v2471 = vsub.f32 %v2449, %v2467
    %v2472 = vsub.f32 %v2450, %v2468
    %v2473 = vsub.f32 %v2451, %v2469
    %v2474 = vmul.f32 %v2470, %v2470
    %v2475 = vmul.f32 %v2471, %v2471
    %v2476 = vmul.f32 %v2472, %v2472
    %v2477 = vmul.f32 %v2473, %v2473
    %v2478 = vsel %vm220, %v2474, 0.0
    %2479 = vadd.xlane.f32.xlu0 %v2478
    %v2480 = vpop.xlane.xlu0 %2479
    %v2481 = vsel %vm220, %v2475, 0.0
    %2482 = vadd.xlane.f32.xlu0 %v2481
    %v2483 = vpop.xlane.xlu0 %2482
    %v2484 = vsel %vm220, %v2476, 0.0
    %2485 = vadd.xlane.f32.xlu0 %v2484
    %v2486 = vpop.xlane.xlu0 %2485
    %v2487 = vsel %vm220, %v2477, 0.0
    %2488 = vadd.xlane.f32.xlu0 %v2487
    %v2489 = vpop.xlane.xlu0 %2488
    %v2490 = vmul.f32 %v2480, %v233
    %v2491 = vmul.f32 %v2483, %v233
    %v2492 = vmul.f32 %v2486, %v233
    %v2493 = vmul.f32 %v2489, %v233
    %v2494 = vadd.f32 %v2490, 1e-12
    %v2495 = vadd.f32 %v2491, 1e-12
    %v2496 = vadd.f32 %v2492, 1e-12
    %v2497 = vadd.f32 %v2493, 1e-12
    %v2498 = vrsqrt.pop %v2494
    %v2499 = vrsqrt.pop %v2495
    %v2500 = vrsqrt.pop %v2496
    %v2501 = vrsqrt.pop %v2497
    %v2502 = vmul.f32 %v2470, %v2498
    %v2503 = vmul.f32 %v2471, %v2499
    %v2504 = vmul.f32 %v2472, %v2500
    %v2505 = vmul.f32 %v2473, %v2501
    %v2506 = vlaneseq
    %v2507 = vshrl.u32 %v2506, 7
    %v2508 = vsub.s32 0, %v2507
    %v2509 = vrot.slane %v2452, %v2508
    %v2510 = vmul.f32 %v2502, %v2509
    %v2511 = vmul.f32 %v2503, %v2509
    %v2512 = vmul.f32 %v2504, %v2509
    %v2513 = vmul.f32 %v2505, %v2509
    %v2514 = vlaneseq
    %v2515 = vshrl.u32 %v2514, 7
    %v2516 = vsub.s32 0, %v2515
    %v2517 = vrot.slane %v2453, %v2516
    %v2518 = vadd.f32 %v2510, %v2517
    %v2519 = vadd.f32 %v2511, %v2517
    %v2520 = vadd.f32 %v2512, %v2517
    %v2521 = vadd.f32 %v2513, %v2517
    %v2522 = vld [vmem:[#allocation2 + $0x140] sm:$0xff]
    %v2523 = vld [vmem:[#allocation2 + $0x148] sm:$0xff]
    %v2524 = vld [vmem:[#allocation2 + $0x150] sm:$0xff]
    %v2525 = vld [vmem:[#allocation2 + $0x158] sm:$0xff]
    %v2526 = vld [vmem:[#allocation2 + $0x160] sm:$0x1]
    %v2527 = vlaneseq
    %v2528 = vshrl.u32 %v2527, 7
    %v2529 = vsub.s32 0, %v2528
    %v2530 = vrot.slane %v2526, %v2529
    %v2532 = vsel %vm220, %v2518, 0
    %v2535 = vsel %vm220, %v2519, 0
    %v2538 = vsel %vm220, %v2520, 0
    %v2541 = vsel %vm220, %v2521, 0
    %2543 = vmatprep.subr.mxu0 0.0
    %2544 = vmatpush1.msra.mxu0 %v2522
    %2545 = vmatprep.subr.mxu0 0.0
    %2546 = vmatpush1.msra.mxu0 %v2523
    %2547 = vmatprep.subr.mxu0 0.0
    %2548 = vmatpush1.msra.mxu0 %v2524
    %2549 = vmatprep.subr.mxu0 0.0
    %2550 = vmatpush1.msra.mxu0 %v2525
    %2551 = vmatprep.subr.mxu0 0.0
    %2552 = vmatpush1.msra.mxu0 0.0
    %2553 = vmatprep.subr.mxu0 0.0
    %2554 = vmatpush1.msra.mxu0 0.0
    %2555 = vmatprep.subr.mxu0 0.0
    %2556 = vmatpush1.msra.mxu0 0.0
    %2557 = vmatprep.subr.mxu0 0.0
    %2558 = vmatpush1.msra.mxu0 0.0
    %2559 = vmatprep.subr.mxu0 0.0
    %2560 = vmatpush1.msra.mxu0 0.0
    %2561 = vmatprep.subr.mxu0 0.0
    %2562 = vmatpush1.msra.mxu0 0.0
    %2563 = vmatprep.subr.mxu0 0.0
    %2564 = vmatpush1.msra.mxu0 0.0
    %2565 = vmatprep.subr.mxu0 0.0
    %2566 = vmatpush1.msra.mxu0 0.0
    %2567 = vmatprep.subr.mxu0 0.0
    %2568 = vmatpush1.msra.mxu0 0.0
    %2569 = vmatprep.subr.mxu0 0.0
    %2570 = vmatpush1.msra.mxu0 0.0
    %2571 = vmatprep.subr.mxu0 0.0
    %2572 = vmatpush1.msra.mxu0 0.0
    %2573 = vmatprep.subr.mxu0 0.0
    %2574 = vmatpush1.msra.mxu0 0.0
    %2575 = vmatprep.subr.mxu0 0.0
    %2576 = vmatpush1.msra.mxu0 0.0
    %2577 = vmatprep.subr.mxu0 0.0
    %2578 = vmatpush1.msra.mxu0 0.0
    %2579 = vmatprep.subr.mxu0 0.0
    %2580 = vmatpush1.msra.mxu0 0.0
    %2581 = vmatprep.subr.mxu0 0.0
    %2582 = vmatpush1.msra.mxu0 0.0
    %2583 = vmatprep.subr.mxu0 0.0
    %2584 = vmatpush1.msra.mxu0 0.0
    %2585 = vmatprep.subr.mxu0 0.0
    %2586 = vmatpush1.msra.mxu0 0.0
    %2587 = vmatprep.subr.mxu0 0.0
    %2588 = vmatpush1.msra.mxu0 0.0
    %2589 = vmatprep.subr.mxu0 0.0
    %2590 = vmatpush1.msra.mxu0 0.0
    %2591 = vmatprep.subr.mxu0 0.0
    %2592 = vmatpush1.msra.mxu0 0.0
    %2593 = vmatprep.subr.mxu0 0.0
    %2594 = vmatpush1.msra.mxu0 0.0
    %2595 = vmatprep.subr.mxu0 0.0
    %2596 = vmatpush1.msra.mxu0 0.0
    %2597 = vmatprep.subr.mxu0 0.0
    %2598 = vmatpush1.msra.mxu0 0.0
    %2599 = vmatprep.subr.mxu0 0.0
    %2600 = vmatpush1.msra.mxu0 0.0
    %2601 = vmatprep.subr.mxu0 0.0
    %2602 = vmatpush1.msra.mxu0 0.0
    %2603 = vmatprep.subr.mxu0 0.0
    %2604 = vmatpush1.msra.mxu0 0.0
    %2605 = vmatprep.subr.mxu0 0.0
    %2606 = vmatpush1.msra.mxu0 0.0
    %2607 = vmatprep.mubr.f32.mxu0 0.0
    %2608 = vmatmul.mubr.f32.gmra.mrb[0].mxu0 %v2532
    %v2609 = vpop.f32.mrb[0].mxu0
    %v2610 = vadd.f32 %v2530, %v2609
    %v2611 = vpop.f32.mrb[0].mxu0
    %2612 = vmatprep.mubr.f32.mxu0 0.0
    %2613 = vmatmul.mubr.f32.gmra.mrb[0].mxu0 %v2535
    %v2614 = vpop.f32.mrb[0].mxu0
    %v2615 = vadd.f32 %v2530, %v2614
    %v2616 = vpop.f32.mrb[0].mxu0
    %2617 = vmatprep.mubr.f32.mxu0 0.0
    %2618 = vmatmul.mubr.f32.gmra.mrb[0].mxu0 %v2538
    %v2619 = vpop.f32.mrb[0].mxu0
    %v2620 = vadd.f32 %v2530, %v2619
    %v2621 = vpop.f32.mrb[0].mxu0
    %2622 = vmatprep.mubr.f32.mxu0 0.0
    %2623 = vmatmul.mubr.f32.gmra.mrb[0].mxu0 %v2541
    %v2624 = vpop.f32.mrb[0].mxu0
    %v2625 = vadd.f32 %v2530, %v2624
    %v2626 = vpop.f32.mrb[0].mxu0
    %2627 = vdwg.mxu0
    %v2628 = vmul.f32 %v2610, %v327
    %v2629 = vmul.f32 %v2615, %v327
    %v2630 = vmul.f32 %v2620, %v327
    %v2631 = vmul.f32 %v2625, %v327
    %2634 = vrot.lane.b32.xlu0 %v2610, 96
    %v2635 = vpop.permute.xlu0 %2634
    %2636 = vrot.lane.b32.xlu0 %v2615, 96
    %v2637 = vpop.permute.xlu0 %2636
    %v2639 = vsel %vm220, %v2628, 0
    %v2642 = vsel %vm220, %v2629, 0
    %v2644 = vsel %vm220, %v2635, 0
    %v2646 = vsel %vm220, %v2637, 0
    %2648 = vmatprep.subr.mxu0 0.0
    %2649 = vmatpush1.xpose.msra.mxu0 %v2644
    %2650 = vmatprep.subr.mxu0 0.0
    %2651 = vmatpush1.xpose.msra.mxu0 %v2646
    %2652 = vmatprep.subr.mxu0 0.0
    %2653 = vmatpush1.xpose.msra.mxu0 0.0
    %2654 = vmatprep.subr.mxu0 0.0
    %2655 = vmatpush1.xpose.msra.mxu0 0.0
    %2656 = vmatprep.subr.mxu0 0.0
    %2657 = vmatpush1.xpose.msra.mxu0 0.0
    %2658 = vmatprep.subr.mxu0 0.0
    %2659 = vmatpush1.xpose.msra.mxu0 0.0
    %2660 = vmatprep.subr.mxu0 0.0
    %2661 = vmatpush1.xpose.msra.mxu0 0.0
    %2662 = vmatprep.subr.mxu0 0.0
    %2663 = vmatpush1.xpose.msra.mxu0 0.0
    %2664 = vmatprep.subr.mxu0 0.0
    %2665 = vmatpush1.xpose.msra.mxu0 0.0
    %2666 = vmatprep.subr.mxu0 0.0
    %2667 = vmatpush1.xpose.msra.mxu0 0.0
    %2668 = vmatprep.subr.mxu0 0.0
    %2669 = vmatpush1.xpose.msra.mxu0 0.0
    %2670 = vmatprep.subr.mxu0 0.0
    %2671 = vmatpush1.xpose.msra.mxu0 0.0
    %2672 = vmatprep.subr.mxu0 0.0
    %2673 = vmatpush1.xpose.msra.mxu0 0.0
    %2674 = vmatprep.subr.mxu0 0.0
    %2675 = vmatpush1.xpose.msra.mxu0 0.0
    %2676 = vmatprep.subr.mxu0 0.0
    %2677 = vmatpush1.xpose.msra.mxu0 0.0
    %2678 = vmatprep.subr.mxu0 0.0
    %2679 = vmatpush1.xpose.msra.mxu0 0.0
    %2680 = vmatprep.subr.mxu0 0.0
    %2681 = vmatpush1.xpose.msra.mxu0 0.0
    %2682 = vmatprep.subr.mxu0 0.0
    %2683 = vmatpush1.xpose.msra.mxu0 0.0
    %2684 = vmatprep.subr.mxu0 0.0
    %2685 = vmatpush1.xpose.msra.mxu0 0.0
    %2686 = vmatprep.subr.mxu0 0.0
    %2687 = vmatpush1.xpose.msra.mxu0 0.0
    %2688 = vmatprep.subr.mxu0 0.0
    %2689 = vmatpush1.xpose.msra.mxu0 0.0
    %2690 = vmatprep.subr.mxu0 0.0
    %2691 = vmatpush1.xpose.msra.mxu0 0.0
    %2692 = vmatprep.subr.mxu0 0.0
    %2693 = vmatpush1.xpose.msra.mxu0 0.0
    %2694 = vmatprep.subr.mxu0 0.0
    %2695 = vmatpush1.xpose.msra.mxu0 0.0
    %2696 = vmatprep.subr.mxu0 0.0
    %2697 = vmatpush1.xpose.msra.mxu0 0.0
    %2698 = vmatprep.subr.mxu0 0.0
    %2699 = vmatpush1.xpose.msra.mxu0 0.0
    %2700 = vmatprep.subr.mxu0 0.0
    %2701 = vmatpush1.xpose.msra.mxu0 0.0
    %2702 = vmatprep.subr.mxu0 0.0
    %2703 = vmatpush1.xpose.msra.mxu0 0.0
    %2704 = vmatprep.subr.mxu0 0.0
    %2705 = vmatpush1.xpose.msra.mxu0 0.0
    %2706 = vmatprep.subr.mxu0 0.0
    %2707 = vmatpush1.xpose.msra.mxu0 0.0
    %2708 = vmatprep.subr.mxu0 0.0
    %2709 = vmatpush1.xpose.msra.mxu0 0.0
    %2710 = vmatprep.subr.mxu0 0.0
    %2711 = vmatpush1.xpose.msra.mxu0 0.0
    %2712 = vmatprep.mubr.f32.mxu0 0.0
    %2713 = vmatmul.mubr.f32.gmra.mrb[0].mxu0 %v2639
    %v2714 = vpop.f32.mrb[0].mxu0
    %v2715 = vadd.f32 0.0, %v2714
    %v2716 = vpop.f32.mrb[0].mxu0
    %2717 = vmatprep.mubr.f32.mxu0 0.0
    %2718 = vmatmul.mubr.f32.gmra.mrb[0].mxu0 %v2642
    %v2719 = vpop.f32.mrb[0].mxu0
    %v2720 = vadd.f32 0.0, %v2719
    %v2721 = vpop.f32.mrb[0].mxu0
    %2722 = vdwg.mxu0
    %2725 = vrot.lane.b32.xlu0 %v2620, 96
    %v2726 = vpop.permute.xlu0 %2725
    %2727 = vrot.lane.b32.xlu0 %v2625, 96
    %v2728 = vpop.permute.xlu0 %2727
    %v2730 = vsel %vm220, %v2630, 0
    %v2733 = vsel %vm220, %v2631, 0
    %v2735 = vsel %vm220, %v2726, 0
    %v2737 = vsel %vm220, %v2728, 0
    %2739 = vmatprep.subr.mxu0 0.0
    %2740 = vmatpush1.xpose.msra.mxu0 %v2735
    %2741 = vmatprep.subr.mxu0 0.0
    %2742 = vmatpush1.xpose.msra.mxu0 %v2737
    %2743 = vmatprep.subr.mxu0 0.0
    %2744 = vmatpush1.xpose.msra.mxu0 0.0
    %2745 = vmatprep.subr.mxu0 0.0
    %2746 = vmatpush1.xpose.msra.mxu0 0.0
    %2747 = vmatprep.subr.mxu0 0.0
    %2748 = vmatpush1.xpose.msra.mxu0 0.0
    %2749 = vmatprep.subr.mxu0 0.0
    %2750 = vmatpush1.xpose.msra.mxu0 0.0
    %2751 = vmatprep.subr.mxu0 0.0
    %2752 = vmatpush1.xpose.msra.mxu0 0.0
    %2753 = vmatprep.subr.mxu0 0.0
    %2754 = vmatpush1.xpose.msra.mxu0 0.0
    %2755 = vmatprep.subr.mxu0 0.0
    %2756 = vmatpush1.xpose.msra.mxu0 0.0
    %2757 = vmatprep.subr.mxu0 0.0
    %2758 = vmatpush1.xpose.msra.mxu0 0.0
    %2759 = vmatprep.subr.mxu0 0.0
    %2760 = vmatpush1.xpose.msra.mxu0 0.0
    %2761 = vmatprep.subr.mxu0 0.0
    %2762 = vmatpush1.xpose.msra.mxu0 0.0
    %2763 = vmatprep.subr.mxu0 0.0
    %2764 = vmatpush1.xpose.msra.mxu0 0.0
    %2765 = vmatprep.subr.mxu0 0.0
    %2766 = vmatpush1.xpose.msra.mxu0 0.0
    %2767 = vmatprep.subr.mxu0 0.0
    %2768 = vmatpush1.xpose.msra.mxu0 0.0
    %2769 = vmatprep.subr.mxu0 0.0
    %2770 = vmatpush1.xpose.msra.mxu0 0.0
    %2771 = vmatprep.subr.mxu0 0.0
    %2772 = vmatpush1.xpose.msra.mxu0 0.0
    %2773 = vmatprep.subr.mxu0 0.0
    %2774 = vmatpush1.xpose.msra.mxu0 0.0
    %2775 = vmatprep.subr.mxu0 0.0
    %2776 = vmatpush1.xpose.msra.mxu0 0.0
    %2777 = vmatprep.subr.mxu0 0.0
    %2778 = vmatpush1.xpose.msra.mxu0 0.0
    %2779 = vmatprep.subr.mxu0 0.0
    %2780 = vmatpush1.xpose.msra.mxu0 0.0
    %2781 = vmatprep.subr.mxu0 0.0
    %2782 = vmatpush1.xpose.msra.mxu0 0.0
    %2783 = vmatprep.subr.mxu0 0.0
    %2784 = vmatpush1.xpose.msra.mxu0 0.0
    %2785 = vmatprep.subr.mxu0 0.0
    %2786 = vmatpush1.xpose.msra.mxu0 0.0
    %2787 = vmatprep.subr.mxu0 0.0
    %2788 = vmatpush1.xpose.msra.mxu0 0.0
    %2789 = vmatprep.subr.mxu0 0.0
    %2790 = vmatpush1.xpose.msra.mxu0 0.0
    %2791 = vmatprep.subr.mxu0 0.0
    %2792 = vmatpush1.xpose.msra.mxu0 0.0
    %2793 = vmatprep.subr.mxu0 0.0
    %2794 = vmatpush1.xpose.msra.mxu0 0.0
    %2795 = vmatprep.subr.mxu0 0.0
    %2796 = vmatpush1.xpose.msra.mxu0 0.0
    %2797 = vmatprep.subr.mxu0 0.0
    %2798 = vmatpush1.xpose.msra.mxu0 0.0
    %2799 = vmatprep.subr.mxu0 0.0
    %2800 = vmatpush1.xpose.msra.mxu0 0.0
    %2801 = vmatprep.subr.mxu0 0.0
    %2802 = vmatpush1.xpose.msra.mxu0 0.0
    %2803 = vmatprep.mubr.f32.mxu0 0.0
    %2804 = vmatmul.mubr.f32.gmra.mrb[0].mxu0 %v2730
    %v2805 = vpop.f32.mrb[0].mxu0
    %v2806 = vadd.f32 0.0, %v2805
    %v2807 = vpop.f32.mrb[0].mxu0
    %2808 = vmatprep.mubr.f32.mxu0 0.0
    %2809 = vmatmul.mubr.f32.gmra.mrb[0].mxu0 %v2733
    %v2810 = vpop.f32.mrb[0].mxu0
    %v2811 = vadd.f32 0.0, %v2810
    %v2812 = vpop.f32.mrb[0].mxu0
    %2813 = vdwg.mxu0
    %v2814 = vmul.f32 %v2715, 0.35355338
    %v2815 = vmul.f32 %v2720, 0.35355338
    %v2816 = vmul.f32 %v2806, 0.35355338
    %v2817 = vmul.f32 %v2811, 0.35355338
    %v2818 = vadd.f32 %v2814, %v317
    %v2819 = vadd.f32 %v2815, %v317
    %v2820 = vadd.f32 %v2816, %v321
    %v2821 = vadd.f32 %v2817, %v321
    %v2822 = vsel %vm640, %v2818, -inf
    %2823 = vmax.xlane.f32.xlu0 %v2822
    %v2824 = vpop.xlane.xlu0 %2823
    %v2825 = vsel %vm640, %v2819, -inf
    %2826 = vmax.xlane.f32.xlu0 %v2825
    %v2827 = vpop.xlane.xlu0 %2826
    %v2828 = vsel %vm640, %v2820, -inf
    %2829 = vmax.xlane.f32.xlu0 %v2828
    %v2830 = vpop.xlane.xlu0 %2829
    %v2831 = vsel %vm640, %v2821, -inf
    %2832 = vmax.xlane.f32.xlu0 %v2831
    %v2833 = vpop.xlane.xlu0 %2832
    %v2834 = vsub.f32 %v2818, %v2824
    %v2835 = vsub.f32 %v2819, %v2827
    %v2836 = vsub.f32 %v2820, %v2830
    %v2837 = vsub.f32 %v2821, %v2833
    %v2838 = vmul.f32 %v2834, 1.442695
    %v2839 = vpow.pop %v2838
    %v2840 = vmul.f32 %v2835, 1.442695
    %v2841 = vpow.pop %v2840
    %v2842 = vmul.f32 %v2836, 1.442695
    %v2843 = vpow.pop %v2842
    %v2844 = vmul.f32 %v2837, 1.442695
    %v2845 = vpow.pop %v2844
    %v2846 = vsel %vm640, %v2839, 0.0
    %2847 = vadd.xlane.f32.xlu0 %v2846
    %v2848 = vpop.xlane.xlu0 %2847
    %v2849 = vsel %vm640, %v2841, 0.0
    %2850 = vadd.xlane.f32.xlu0 %v2849
    %v2851 = vpop.xlane.xlu0 %2850
    %v2852 = vsel %vm640, %v2843, 0.0
    %2853 = vadd.xlane.f32.xlu0 %v2852
    %v2854 = vpop.xlane.xlu0 %2853
    %v2855 = vsel %vm640, %v2845, 0.0
    %2856 = vadd.xlane.f32.xlu0 %v2855
    %v2857 = vpop.xlane.xlu0 %2856
    %v2858 = vrcp.pop %v2848
    %v2859 = vrcp.pop %v2851
    %v2860 = vrcp.pop %v2854
    %v2861 = vrcp.pop %v2857
    %v2862 = vmul.f32 %v2839, %v2858
    %v2863 = vmul.f32 %v2841, %v2859
    %v2864 = vmul.f32 %v2843, %v2860
    %v2865 = vmul.f32 %v2845, %v2861
    %2866 = vrot.lane.b32.xlu0 %v2610, 64
    %v2867 = vpop.permute.xlu0 %2866
    %2868 = vrot.lane.b32.xlu0 %v2615, 64
    %v2869 = vpop.permute.xlu0 %2868
    %v2873 = vsel %vm640, %v2862, 0
    %v2876 = vsel %vm640, %v2863, 0
    %2878 = vmatprep.subr.mxu0 0.0
    %2879 = vmatpush1.msra.mxu0 %v2867
    %2880 = vmatprep.subr.mxu0 0.0
    %2881 = vmatpush1.msra.mxu0 %v2869
    %2882 = vmatprep.subr.mxu0 0.0
    %2883 = vmatpush1.msra.mxu0 0.0
    %2884 = vmatprep.subr.mxu0 0.0
    %2885 = vmatpush1.msra.mxu0 0.0
    %2886 = vmatprep.subr.mxu0 0.0
    %2887 = vmatpush1.msra.mxu0 0.0
    %2888 = vmatprep.subr.mxu0 0.0
    %2889 = vmatpush1.msra.mxu0 0.0
    %2890 = vmatprep.subr.mxu0 0.0
    %2891 = vmatpush1.msra.mxu0 0.0
    %2892 = vmatprep.subr.mxu0 0.0
    %2893 = vmatpush1.msra.mxu0 0.0
    %2894 = vmatprep.subr.mxu0 0.0
    %2895 = vmatpush1.msra.mxu0 0.0
    %2896 = vmatprep.subr.mxu0 0.0
    %2897 = vmatpush1.msra.mxu0 0.0
    %2898 = vmatprep.subr.mxu0 0.0
    %2899 = vmatpush1.msra.mxu0 0.0
    %2900 = vmatprep.subr.mxu0 0.0
    %2901 = vmatpush1.msra.mxu0 0.0
    %2902 = vmatprep.subr.mxu0 0.0
    %2903 = vmatpush1.msra.mxu0 0.0
    %2904 = vmatprep.subr.mxu0 0.0
    %2905 = vmatpush1.msra.mxu0 0.0
    %2906 = vmatprep.subr.mxu0 0.0
    %2907 = vmatpush1.msra.mxu0 0.0
    %2908 = vmatprep.subr.mxu0 0.0
    %2909 = vmatpush1.msra.mxu0 0.0
    %2910 = vmatprep.subr.mxu0 0.0
    %2911 = vmatpush1.msra.mxu0 0.0
    %2912 = vmatprep.subr.mxu0 0.0
    %2913 = vmatpush1.msra.mxu0 0.0
    %2914 = vmatprep.subr.mxu0 0.0
    %2915 = vmatpush1.msra.mxu0 0.0
    %2916 = vmatprep.subr.mxu0 0.0
    %2917 = vmatpush1.msra.mxu0 0.0
    %2918 = vmatprep.subr.mxu0 0.0
    %2919 = vmatpush1.msra.mxu0 0.0
    %2920 = vmatprep.subr.mxu0 0.0
    %2921 = vmatpush1.msra.mxu0 0.0
    %2922 = vmatprep.subr.mxu0 0.0
    %2923 = vmatpush1.msra.mxu0 0.0
    %2924 = vmatprep.subr.mxu0 0.0
    %2925 = vmatpush1.msra.mxu0 0.0
    %2926 = vmatprep.subr.mxu0 0.0
    %2927 = vmatpush1.msra.mxu0 0.0
    %2928 = vmatprep.subr.mxu0 0.0
    %2929 = vmatpush1.msra.mxu0 0.0
    %2930 = vmatprep.subr.mxu0 0.0
    %2931 = vmatpush1.msra.mxu0 0.0
    %2932 = vmatprep.subr.mxu0 0.0
    %2933 = vmatpush1.msra.mxu0 0.0
    %2934 = vmatprep.subr.mxu0 0.0
    %2935 = vmatpush1.msra.mxu0 0.0
    %2936 = vmatprep.subr.mxu0 0.0
    %2937 = vmatpush1.msra.mxu0 0.0
    %2938 = vmatprep.subr.mxu0 0.0
    %2939 = vmatpush1.msra.mxu0 0.0
    %2940 = vmatprep.subr.mxu0 0.0
    %2941 = vmatpush1.msra.mxu0 0.0
    %2942 = vmatprep.mubr.f32.mxu0 0.0
    %2943 = vmatmul.mubr.f32.gmra.mrb[0].mxu0 %v2873
    %v2944 = vpop.f32.mrb[0].mxu0
    %v2945 = vadd.f32 0.0, %v2944
    %v2946 = vpop.f32.mrb[0].mxu0
    %2947 = vmatprep.mubr.f32.mxu0 0.0
    %2948 = vmatmul.mubr.f32.gmra.mrb[0].mxu0 %v2876
    %v2949 = vpop.f32.mrb[0].mxu0
    %v2950 = vadd.f32 0.0, %v2949
    %v2951 = vpop.f32.mrb[0].mxu0
    %2952 = vdwg.mxu0
    %2953 = vrot.lane.b32.xlu0 %v2620, 64
    %v2954 = vpop.permute.xlu0 %2953
    %2955 = vrot.lane.b32.xlu0 %v2625, 64
    %v2956 = vpop.permute.xlu0 %2955
    %v2960 = vsel %vm640, %v2864, 0
    %v2963 = vsel %vm640, %v2865, 0
    %2965 = vmatprep.subr.mxu0 0.0
    %2966 = vmatpush1.msra.mxu0 %v2954
    %2967 = vmatprep.subr.mxu0 0.0
    %2968 = vmatpush1.msra.mxu0 %v2956
    %2969 = vmatprep.subr.mxu0 0.0
    %2970 = vmatpush1.msra.mxu0 0.0
    %2971 = vmatprep.subr.mxu0 0.0
    %2972 = vmatpush1.msra.mxu0 0.0
    %2973 = vmatprep.subr.mxu0 0.0
    %2974 = vmatpush1.msra.mxu0 0.0
    %2975 = vmatprep.subr.mxu0 0.0
    %2976 = vmatpush1.msra.mxu0 0.0
    %2977 = vmatprep.subr.mxu0 0.0
    %2978 = vmatpush1.msra.mxu0 0.0
    %2979 = vmatprep.subr.mxu0 0.0
    %2980 = vmatpush1.msra.mxu0 0.0
    %2981 = vmatprep.subr.mxu0 0.0
    %2982 = vmatpush1.msra.mxu0 0.0
    %2983 = vmatprep.subr.mxu0 0.0
    %2984 = vmatpush1.msra.mxu0 0.0
    %2985 = vmatprep.subr.mxu0 0.0
    %2986 = vmatpush1.msra.mxu0 0.0
    %2987 = vmatprep.subr.mxu0 0.0
    %2988 = vmatpush1.msra.mxu0 0.0
    %2989 = vmatprep.subr.mxu0 0.0
    %2990 = vmatpush1.msra.mxu0 0.0
    %2991 = vmatprep.subr.mxu0 0.0
    %2992 = vmatpush1.msra.mxu0 0.0
    %2993 = vmatprep.subr.mxu0 0.0
    %2994 = vmatpush1.msra.mxu0 0.0
    %2995 = vmatprep.subr.mxu0 0.0
    %2996 = vmatpush1.msra.mxu0 0.0
    %2997 = vmatprep.subr.mxu0 0.0
    %2998 = vmatpush1.msra.mxu0 0.0
    %2999 = vmatprep.subr.mxu0 0.0
    %3000 = vmatpush1.msra.mxu0 0.0
    %3001 = vmatprep.subr.mxu0 0.0
    %3002 = vmatpush1.msra.mxu0 0.0
    %3003 = vmatprep.subr.mxu0 0.0
    %3004 = vmatpush1.msra.mxu0 0.0
    %3005 = vmatprep.subr.mxu0 0.0
    %3006 = vmatpush1.msra.mxu0 0.0
    %3007 = vmatprep.subr.mxu0 0.0
    %3008 = vmatpush1.msra.mxu0 0.0
    %3009 = vmatprep.subr.mxu0 0.0
    %3010 = vmatpush1.msra.mxu0 0.0
    %3011 = vmatprep.subr.mxu0 0.0
    %3012 = vmatpush1.msra.mxu0 0.0
    %3013 = vmatprep.subr.mxu0 0.0
    %3014 = vmatpush1.msra.mxu0 0.0
    %3015 = vmatprep.subr.mxu0 0.0
    %3016 = vmatpush1.msra.mxu0 0.0
    %3017 = vmatprep.subr.mxu0 0.0
    %3018 = vmatpush1.msra.mxu0 0.0
    %3019 = vmatprep.subr.mxu0 0.0
    %3020 = vmatpush1.msra.mxu0 0.0
    %3021 = vmatprep.subr.mxu0 0.0
    %3022 = vmatpush1.msra.mxu0 0.0
    %3023 = vmatprep.subr.mxu0 0.0
    %3024 = vmatpush1.msra.mxu0 0.0
    %3025 = vmatprep.subr.mxu0 0.0
    %3026 = vmatpush1.msra.mxu0 0.0
    %3027 = vmatprep.subr.mxu0 0.0
    %3028 = vmatpush1.msra.mxu0 0.0
    %3029 = vmatprep.mubr.f32.mxu0 0.0
    %3030 = vmatmul.mubr.f32.gmra.mrb[0].mxu0 %v2960
    %v3031 = vpop.f32.mrb[0].mxu0
    %v3032 = vadd.f32 0.0, %v3031
    %v3033 = vpop.f32.mrb[0].mxu0
    %3034 = vmatprep.mubr.f32.mxu0 0.0
    %3035 = vmatmul.mubr.f32.gmra.mrb[0].mxu0 %v2963
    %v3036 = vpop.f32.mrb[0].mxu0
    %v3037 = vadd.f32 0.0, %v3036
    %v3038 = vpop.f32.mrb[0].mxu0
    %3039 = vdwg.mxu0
    %v3040 = vmul.f32 %v2945, %v327
    %v3041 = vmul.f32 %v2950, %v327
    %v3042 = vmul.f32 %v3032, %v327
    %v3043 = vmul.f32 %v3037, %v327
    %v3044 = vadd.f32 %v3040, 0.0
    %v3045 = vadd.f32 %v3041, 0.0
    %v3046 = vadd.f32 %v3042, 0.0
    %v3047 = vadd.f32 %v3043, 0.0
    %v3048 = vmul.f32 %v2610, %v331
    %v3049 = vmul.f32 %v2615, %v331
    %v3050 = vmul.f32 %v2620, %v331
    %v3051 = vmul.f32 %v2625, %v331
    %v3053 = vsel %vm220, %v3048, 0
    %v3056 = vsel %vm220, %v3049, 0
    %3058 = vmatprep.subr.mxu0 0.0
    %3059 = vmatpush1.xpose.msra.mxu0 %v2644
    %3060 = vmatprep.subr.mxu0 0.0
    %3061 = vmatpush1.xpose.msra.mxu0 %v2646
    %3062 = vmatprep.subr.mxu0 0.0
    %3063 = vmatpush1.xpose.msra.mxu0 0.0
    %3064 = vmatprep.subr.mxu0 0.0
    %3065 = vmatpush1.xpose.msra.mxu0 0.0
    %3066 = vmatprep.subr.mxu0 0.0
    %3067 = vmatpush1.xpose.msra.mxu0 0.0
    %3068 = vmatprep.subr.mxu0 0.0
    %3069 = vmatpush1.xpose.msra.mxu0 0.0
    %3070 = vmatprep.subr.mxu0 0.0
    %3071 = vmatpush1.xpose.msra.mxu0 0.0
    %3072 = vmatprep.subr.mxu0 0.0
    %3073 = vmatpush1.xpose.msra.mxu0 0.0
    %3074 = vmatprep.subr.mxu0 0.0
    %3075 = vmatpush1.xpose.msra.mxu0 0.0
    %3076 = vmatprep.subr.mxu0 0.0
    %3077 = vmatpush1.xpose.msra.mxu0 0.0
    %3078 = vmatprep.subr.mxu0 0.0
    %3079 = vmatpush1.xpose.msra.mxu0 0.0
    %3080 = vmatprep.subr.mxu0 0.0
    %3081 = vmatpush1.xpose.msra.mxu0 0.0
    %3082 = vmatprep.subr.mxu0 0.0
    %3083 = vmatpush1.xpose.msra.mxu0 0.0
    %3084 = vmatprep.subr.mxu0 0.0
    %3085 = vmatpush1.xpose.msra.mxu0 0.0
    %3086 = vmatprep.subr.mxu0 0.0
    %3087 = vmatpush1.xpose.msra.mxu0 0.0
    %3088 = vmatprep.subr.mxu0 0.0
    %3089 = vmatpush1.xpose.msra.mxu0 0.0
    %3090 = vmatprep.subr.mxu0 0.0
    %3091 = vmatpush1.xpose.msra.mxu0 0.0
    %3092 = vmatprep.subr.mxu0 0.0
    %3093 = vmatpush1.xpose.msra.mxu0 0.0
    %3094 = vmatprep.subr.mxu0 0.0
    %3095 = vmatpush1.xpose.msra.mxu0 0.0
    %3096 = vmatprep.subr.mxu0 0.0
    %3097 = vmatpush1.xpose.msra.mxu0 0.0
    %3098 = vmatprep.subr.mxu0 0.0
    %3099 = vmatpush1.xpose.msra.mxu0 0.0
    %3100 = vmatprep.subr.mxu0 0.0
    %3101 = vmatpush1.xpose.msra.mxu0 0.0
    %3102 = vmatprep.subr.mxu0 0.0
    %3103 = vmatpush1.xpose.msra.mxu0 0.0
    %3104 = vmatprep.subr.mxu0 0.0
    %3105 = vmatpush1.xpose.msra.mxu0 0.0
    %3106 = vmatprep.subr.mxu0 0.0
    %3107 = vmatpush1.xpose.msra.mxu0 0.0
    %3108 = vmatprep.subr.mxu0 0.0
    %3109 = vmatpush1.xpose.msra.mxu0 0.0
    %3110 = vmatprep.subr.mxu0 0.0
    %3111 = vmatpush1.xpose.msra.mxu0 0.0
    %3112 = vmatprep.subr.mxu0 0.0
    %3113 = vmatpush1.xpose.msra.mxu0 0.0
    %3114 = vmatprep.subr.mxu0 0.0
    %3115 = vmatpush1.xpose.msra.mxu0 0.0
    %3116 = vmatprep.subr.mxu0 0.0
    %3117 = vmatpush1.xpose.msra.mxu0 0.0
    %3118 = vmatprep.subr.mxu0 0.0
    %3119 = vmatpush1.xpose.msra.mxu0 0.0
    %3120 = vmatprep.subr.mxu0 0.0
    %3121 = vmatpush1.xpose.msra.mxu0 0.0
    %3122 = vmatprep.mubr.f32.mxu0 0.0
    %3123 = vmatmul.mubr.f32.gmra.mrb[0].mxu0 %v3053
    %v3124 = vpop.f32.mrb[0].mxu0
    %v3125 = vadd.f32 0.0, %v3124
    %v3126 = vpop.f32.mrb[0].mxu0
    %3127 = vmatprep.mubr.f32.mxu0 0.0
    %3128 = vmatmul.mubr.f32.gmra.mrb[0].mxu0 %v3056
    %v3129 = vpop.f32.mrb[0].mxu0
    %v3130 = vadd.f32 0.0, %v3129
    %v3131 = vpop.f32.mrb[0].mxu0
    %3132 = vdwg.mxu0
    %v3134 = vsel %vm220, %v3050, 0
    %v3137 = vsel %vm220, %v3051, 0
    %3139 = vmatprep.subr.mxu0 0.0
    %3140 = vmatpush1.xpose.msra.mxu0 %v2735
    %3141 = vmatprep.subr.mxu0 0.0
    %3142 = vmatpush1.xpose.msra.mxu0 %v2737
    %3143 = vmatprep.subr.mxu0 0.0
    %3144 = vmatpush1.xpose.msra.mxu0 0.0
    %3145 = vmatprep.subr.mxu0 0.0
    %3146 = vmatpush1.xpose.msra.mxu0 0.0
    %3147 = vmatprep.subr.mxu0 0.0
    %3148 = vmatpush1.xpose.msra.mxu0 0.0
    %3149 = vmatprep.subr.mxu0 0.0
    %3150 = vmatpush1.xpose.msra.mxu0 0.0
    %3151 = vmatprep.subr.mxu0 0.0
    %3152 = vmatpush1.xpose.msra.mxu0 0.0
    %3153 = vmatprep.subr.mxu0 0.0
    %3154 = vmatpush1.xpose.msra.mxu0 0.0
    %3155 = vmatprep.subr.mxu0 0.0
    %3156 = vmatpush1.xpose.msra.mxu0 0.0
    %3157 = vmatprep.subr.mxu0 0.0
    %3158 = vmatpush1.xpose.msra.mxu0 0.0
    %3159 = vmatprep.subr.mxu0 0.0
    %3160 = vmatpush1.xpose.msra.mxu0 0.0
    %3161 = vmatprep.subr.mxu0 0.0
    %3162 = vmatpush1.xpose.msra.mxu0 0.0
    %3163 = vmatprep.subr.mxu0 0.0
    %3164 = vmatpush1.xpose.msra.mxu0 0.0
    %3165 = vmatprep.subr.mxu0 0.0
    %3166 = vmatpush1.xpose.msra.mxu0 0.0
    %3167 = vmatprep.subr.mxu0 0.0
    %3168 = vmatpush1.xpose.msra.mxu0 0.0
    %3169 = vmatprep.subr.mxu0 0.0
    %3170 = vmatpush1.xpose.msra.mxu0 0.0
    %3171 = vmatprep.subr.mxu0 0.0
    %3172 = vmatpush1.xpose.msra.mxu0 0.0
    %3173 = vmatprep.subr.mxu0 0.0
    %3174 = vmatpush1.xpose.msra.mxu0 0.0
    %3175 = vmatprep.subr.mxu0 0.0
    %3176 = vmatpush1.xpose.msra.mxu0 0.0
    %3177 = vmatprep.subr.mxu0 0.0
    %3178 = vmatpush1.xpose.msra.mxu0 0.0
    %3179 = vmatprep.subr.mxu0 0.0
    %3180 = vmatpush1.xpose.msra.mxu0 0.0
    %3181 = vmatprep.subr.mxu0 0.0
    %3182 = vmatpush1.xpose.msra.mxu0 0.0
    %3183 = vmatprep.subr.mxu0 0.0
    %3184 = vmatpush1.xpose.msra.mxu0 0.0
    %3185 = vmatprep.subr.mxu0 0.0
    %3186 = vmatpush1.xpose.msra.mxu0 0.0
    %3187 = vmatprep.subr.mxu0 0.0
    %3188 = vmatpush1.xpose.msra.mxu0 0.0
    %3189 = vmatprep.subr.mxu0 0.0
    %3190 = vmatpush1.xpose.msra.mxu0 0.0
    %3191 = vmatprep.subr.mxu0 0.0
    %3192 = vmatpush1.xpose.msra.mxu0 0.0
    %3193 = vmatprep.subr.mxu0 0.0
    %3194 = vmatpush1.xpose.msra.mxu0 0.0
    %3195 = vmatprep.subr.mxu0 0.0
    %3196 = vmatpush1.xpose.msra.mxu0 0.0
    %3197 = vmatprep.subr.mxu0 0.0
    %3198 = vmatpush1.xpose.msra.mxu0 0.0
    %3199 = vmatprep.subr.mxu0 0.0
    %3200 = vmatpush1.xpose.msra.mxu0 0.0
    %3201 = vmatprep.subr.mxu0 0.0
    %3202 = vmatpush1.xpose.msra.mxu0 0.0
    %3203 = vmatprep.mubr.f32.mxu0 0.0
    %3204 = vmatmul.mubr.f32.gmra.mrb[0].mxu0 %v3134
    %v3205 = vpop.f32.mrb[0].mxu0
    %v3206 = vadd.f32 0.0, %v3205
    %v3207 = vpop.f32.mrb[0].mxu0
    %3208 = vmatprep.mubr.f32.mxu0 0.0
    %3209 = vmatmul.mubr.f32.gmra.mrb[0].mxu0 %v3137
    %v3210 = vpop.f32.mrb[0].mxu0
    %v3211 = vadd.f32 0.0, %v3210
    %v3212 = vpop.f32.mrb[0].mxu0
    %3213 = vdwg.mxu0
    %v3214 = vmul.f32 %v3125, 0.35355338
    %v3215 = vmul.f32 %v3130, 0.35355338
    %v3216 = vmul.f32 %v3206, 0.35355338
    %v3217 = vmul.f32 %v3211, 0.35355338
    %v3218 = vadd.f32 %v3214, %v317
    %v3219 = vadd.f32 %v3215, %v317
    %v3220 = vadd.f32 %v3216, %v321
    %v3221 = vadd.f32 %v3217, %v321
    %v3222 = vsel %vm640, %v3218, -inf
    %3223 = vmax.xlane.f32.xlu0 %v3222
    %v3224 = vpop.xlane.xlu0 %3223
    %v3225 = vsel %vm640, %v3219, -inf
    %3226 = vmax.xlane.f32.xlu0 %v3225
    %v3227 = vpop.xlane.xlu0 %3226
    %v3228 = vsel %vm640, %v3220, -inf
    %3229 = vmax.xlane.f32.xlu0 %v3228
    %v3230 = vpop.xlane.xlu0 %3229
    %v3231 = vsel %vm640, %v3221, -inf
    %3232 = vmax.xlane.f32.xlu0 %v3231
    %v3233 = vpop.xlane.xlu0 %3232
    %v3234 = vsub.f32 %v3218, %v3224
    %v3235 = vsub.f32 %v3219, %v3227
    %v3236 = vsub.f32 %v3220, %v3230
    %v3237 = vsub.f32 %v3221, %v3233
    %v3238 = vmul.f32 %v3234, 1.442695
    %v3239 = vpow.pop %v3238
    %v3240 = vmul.f32 %v3235, 1.442695
    %v3241 = vpow.pop %v3240
    %v3242 = vmul.f32 %v3236, 1.442695
    %v3243 = vpow.pop %v3242
    %v3244 = vmul.f32 %v3237, 1.442695
    %v3245 = vpow.pop %v3244
    %v3246 = vsel %vm640, %v3239, 0.0
    %3247 = vadd.xlane.f32.xlu0 %v3246
    %v3248 = vpop.xlane.xlu0 %3247
    %v3249 = vsel %vm640, %v3241, 0.0
    %3250 = vadd.xlane.f32.xlu0 %v3249
    %v3251 = vpop.xlane.xlu0 %3250
    %v3252 = vsel %vm640, %v3243, 0.0
    %3253 = vadd.xlane.f32.xlu0 %v3252
    %v3254 = vpop.xlane.xlu0 %3253
    %v3255 = vsel %vm640, %v3245, 0.0
    %3256 = vadd.xlane.f32.xlu0 %v3255
    %v3257 = vpop.xlane.xlu0 %3256
    %v3258 = vrcp.pop %v3248
    %v3259 = vrcp.pop %v3251
    %v3260 = vrcp.pop %v3254
    %v3261 = vrcp.pop %v3257
    %v3262 = vmul.f32 %v3239, %v3258
    %v3263 = vmul.f32 %v3241, %v3259
    %v3264 = vmul.f32 %v3243, %v3260
    %v3265 = vmul.f32 %v3245, %v3261
    %v3267 = vsel %vm640, %v3262, 0
    %v3270 = vsel %vm640, %v3263, 0
    %3272 = vmatprep.subr.mxu0 0.0
    %3273 = vmatpush1.msra.mxu0 %v2867
    %3274 = vmatprep.subr.mxu0 0.0
    %3275 = vmatpush1.msra.mxu0 %v2869
    %3276 = vmatprep.subr.mxu0 0.0
    %3277 = vmatpush1.msra.mxu0 0.0
    %3278 = vmatprep.subr.mxu0 0.0
    %3279 = vmatpush1.msra.mxu0 0.0
    %3280 = vmatprep.subr.mxu0 0.0
    %3281 = vmatpush1.msra.mxu0 0.0
    %3282 = vmatprep.subr.mxu0 0.0
    %3283 = vmatpush1.msra.mxu0 0.0
    %3284 = vmatprep.subr.mxu0 0.0
    %3285 = vmatpush1.msra.mxu0 0.0
    %3286 = vmatprep.subr.mxu0 0.0
    %3287 = vmatpush1.msra.mxu0 0.0
    %3288 = vmatprep.subr.mxu0 0.0
    %3289 = vmatpush1.msra.mxu0 0.0
    %3290 = vmatprep.subr.mxu0 0.0
    %3291 = vmatpush1.msra.mxu0 0.0
    %3292 = vmatprep.subr.mxu0 0.0
    %3293 = vmatpush1.msra.mxu0 0.0
    %3294 = vmatprep.subr.mxu0 0.0
    %3295 = vmatpush1.msra.mxu0 0.0
    %3296 = vmatprep.subr.mxu0 0.0
    %3297 = vmatpush1.msra.mxu0 0.0
    %3298 = vmatprep.subr.mxu0 0.0
    %3299 = vmatpush1.msra.mxu0 0.0
    %3300 = vmatprep.subr.mxu0 0.0
    %3301 = vmatpush1.msra.mxu0 0.0
    %3302 = vmatprep.subr.mxu0 0.0
    %3303 = vmatpush1.msra.mxu0 0.0
    %3304 = vmatprep.subr.mxu0 0.0
    %3305 = vmatpush1.msra.mxu0 0.0
    %3306 = vmatprep.subr.mxu0 0.0
    %3307 = vmatpush1.msra.mxu0 0.0
    %3308 = vmatprep.subr.mxu0 0.0
    %3309 = vmatpush1.msra.mxu0 0.0
    %3310 = vmatprep.subr.mxu0 0.0
    %3311 = vmatpush1.msra.mxu0 0.0
    %3312 = vmatprep.subr.mxu0 0.0
    %3313 = vmatpush1.msra.mxu0 0.0
    %3314 = vmatprep.subr.mxu0 0.0
    %3315 = vmatpush1.msra.mxu0 0.0
    %3316 = vmatprep.subr.mxu0 0.0
    %3317 = vmatpush1.msra.mxu0 0.0
    %3318 = vmatprep.subr.mxu0 0.0
    %3319 = vmatpush1.msra.mxu0 0.0
    %3320 = vmatprep.subr.mxu0 0.0
    %3321 = vmatpush1.msra.mxu0 0.0
    %3322 = vmatprep.subr.mxu0 0.0
    %3323 = vmatpush1.msra.mxu0 0.0
    %3324 = vmatprep.subr.mxu0 0.0
    %3325 = vmatpush1.msra.mxu0 0.0
    %3326 = vmatprep.subr.mxu0 0.0
    %3327 = vmatpush1.msra.mxu0 0.0
    %3328 = vmatprep.subr.mxu0 0.0
    %3329 = vmatpush1.msra.mxu0 0.0
    %3330 = vmatprep.subr.mxu0 0.0
    %3331 = vmatpush1.msra.mxu0 0.0
    %3332 = vmatprep.subr.mxu0 0.0
    %3333 = vmatpush1.msra.mxu0 0.0
    %3334 = vmatprep.subr.mxu0 0.0
    %3335 = vmatpush1.msra.mxu0 0.0
    %3336 = vmatprep.mubr.f32.mxu0 0.0
    %3337 = vmatmul.mubr.f32.gmra.mrb[0].mxu0 %v3267
    %v3338 = vpop.f32.mrb[0].mxu0
    %v3339 = vadd.f32 0.0, %v3338
    %v3340 = vpop.f32.mrb[0].mxu0
    %3341 = vmatprep.mubr.f32.mxu0 0.0
    %3342 = vmatmul.mubr.f32.gmra.mrb[0].mxu0 %v3270
    %v3343 = vpop.f32.mrb[0].mxu0
    %v3344 = vadd.f32 0.0, %v3343
    %v3345 = vpop.f32.mrb[0].mxu0
    %3346 = vdwg.mxu0
    %v3348 = vsel %vm640, %v3264, 0
    %v3351 = vsel %vm640, %v3265, 0
    %3353 = vmatprep.subr.mxu0 0.0
    %3354 = vmatpush1.msra.mxu0 %v2954
    %3355 = vmatprep.subr.mxu0 0.0
    %3356 = vmatpush1.msra.mxu0 %v2956
    %3357 = vmatprep.subr.mxu0 0.0
    %3358 = vmatpush1.msra.mxu0 0.0
    %3359 = vmatprep.subr.mxu0 0.0
    %3360 = vmatpush1.msra.mxu0 0.0
    %3361 = vmatprep.subr.mxu0 0.0
    %3362 = vmatpush1.msra.mxu0 0.0
    %3363 = vmatprep.subr.mxu0 0.0
    %3364 = vmatpush1.msra.mxu0 0.0
    %3365 = vmatprep.subr.mxu0 0.0
    %3366 = vmatpush1.msra.mxu0 0.0
    %3367 = vmatprep.subr.mxu0 0.0
    %3368 = vmatpush1.msra.mxu0 0.0
    %3369 = vmatprep.subr.mxu0 0.0
    %3370 = vmatpush1.msra.mxu0 0.0
    %3371 = vmatprep.subr.mxu0 0.0
    %3372 = vmatpush1.msra.mxu0 0.0
    %3373 = vmatprep.subr.mxu0 0.0
    %3374 = vmatpush1.msra.mxu0 0.0
    %3375 = vmatprep.subr.mxu0 0.0
    %3376 = vmatpush1.msra.mxu0 0.0
    %3377 = vmatprep.subr.mxu0 0.0
    %3378 = vmatpush1.msra.mxu0 0.0
    %3379 = vmatprep.subr.mxu0 0.0
    %3380 = vmatpush1.msra.mxu0 0.0
    %3381 = vmatprep.subr.mxu0 0.0
    %3382 = vmatpush1.msra.mxu0 0.0
    %3383 = vmatprep.subr.mxu0 0.0
    %3384 = vmatpush1.msra.mxu0 0.0
    %3385 = vmatprep.subr.mxu0 0.0
    %3386 = vmatpush1.msra.mxu0 0.0
    %3387 = vmatprep.subr.mxu0 0.0
    %3388 = vmatpush1.msra.mxu0 0.0
    %3389 = vmatprep.subr.mxu0 0.0
    %3390 = vmatpush1.msra.mxu0 0.0
    %3391 = vmatprep.subr.mxu0 0.0
    %3392 = vmatpush1.msra.mxu0 0.0
    %3393 = vmatprep.subr.mxu0 0.0
    %3394 = vmatpush1.msra.mxu0 0.0
    %3395 = vmatprep.subr.mxu0 0.0
    %3396 = vmatpush1.msra.mxu0 0.0
    %3397 = vmatprep.subr.mxu0 0.0
    %3398 = vmatpush1.msra.mxu0 0.0
    %3399 = vmatprep.subr.mxu0 0.0
    %3400 = vmatpush1.msra.mxu0 0.0
    %3401 = vmatprep.subr.mxu0 0.0
    %3402 = vmatpush1.msra.mxu0 0.0
    %3403 = vmatprep.subr.mxu0 0.0
    %3404 = vmatpush1.msra.mxu0 0.0
    %3405 = vmatprep.subr.mxu0 0.0
    %3406 = vmatpush1.msra.mxu0 0.0
    %3407 = vmatprep.subr.mxu0 0.0
    %3408 = vmatpush1.msra.mxu0 0.0
    %3409 = vmatprep.subr.mxu0 0.0
    %3410 = vmatpush1.msra.mxu0 0.0
    %3411 = vmatprep.subr.mxu0 0.0
    %3412 = vmatpush1.msra.mxu0 0.0
    %3413 = vmatprep.subr.mxu0 0.0
    %3414 = vmatpush1.msra.mxu0 0.0
    %3415 = vmatprep.subr.mxu0 0.0
    %3416 = vmatpush1.msra.mxu0 0.0
    %3417 = vmatprep.mubr.f32.mxu0 0.0
    %3418 = vmatmul.mubr.f32.gmra.mrb[0].mxu0 %v3348
    %v3419 = vpop.f32.mrb[0].mxu0
    %v3420 = vadd.f32 0.0, %v3419
    %v3421 = vpop.f32.mrb[0].mxu0
    %3422 = vmatprep.mubr.f32.mxu0 0.0
    %3423 = vmatmul.mubr.f32.gmra.mrb[0].mxu0 %v3351
    %v3424 = vpop.f32.mrb[0].mxu0
    %v3425 = vadd.f32 0.0, %v3424
    %v3426 = vpop.f32.mrb[0].mxu0
    %3427 = vdwg.mxu0
    %v3428 = vmul.f32 %v3339, %v331
    %v3429 = vmul.f32 %v3344, %v331
    %v3430 = vmul.f32 %v3420, %v331
    %v3431 = vmul.f32 %v3425, %v331
    %v3432 = vadd.f32 %v3044, %v3428
    %v3433 = vadd.f32 %v3045, %v3429
    %v3434 = vadd.f32 %v3046, %v3430
    %v3435 = vadd.f32 %v3047, %v3431
    %v3436 = vmul.f32 %v2610, %v335
    %v3437 = vmul.f32 %v2615, %v335
    %v3438 = vmul.f32 %v2620, %v335
    %v3439 = vmul.f32 %v2625, %v335
    %v3441 = vsel %vm220, %v3436, 0
    %v3444 = vsel %vm220, %v3437, 0
    %3446 = vmatprep.subr.mxu0 0.0
    %3447 = vmatpush1.xpose.msra.mxu0 %v2644
    %3448 = vmatprep.subr.mxu0 0.0
    %3449 = vmatpush1.xpose.msra.mxu0 %v2646
    %3450 = vmatprep.subr.mxu0 0.0
    %3451 = vmatpush1.xpose.msra.mxu0 0.0
    %3452 = vmatprep.subr.mxu0 0.0
    %3453 = vmatpush1.xpose.msra.mxu0 0.0
    %3454 = vmatprep.subr.mxu0 0.0
    %3455 = vmatpush1.xpose.msra.mxu0 0.0
    %3456 = vmatprep.subr.mxu0 0.0
    %3457 = vmatpush1.xpose.msra.mxu0 0.0
    %3458 = vmatprep.subr.mxu0 0.0
    %3459 = vmatpush1.xpose.msra.mxu0 0.0
    %3460 = vmatprep.subr.mxu0 0.0
    %3461 = vmatpush1.xpose.msra.mxu0 0.0
    %3462 = vmatprep.subr.mxu0 0.0
    %3463 = vmatpush1.xpose.msra.mxu0 0.0
    %3464 = vmatprep.subr.mxu0 0.0
    %3465 = vmatpush1.xpose.msra.mxu0 0.0
    %3466 = vmatprep.subr.mxu0 0.0
    %3467 = vmatpush1.xpose.msra.mxu0 0.0
    %3468 = vmatprep.subr.mxu0 0.0
    %3469 = vmatpush1.xpose.msra.mxu0 0.0
    %3470 = vmatprep.subr.mxu0 0.0
    %3471 = vmatpush1.xpose.msra.mxu0 0.0
    %3472 = vmatprep.subr.mxu0 0.0
    %3473 = vmatpush1.xpose.msra.mxu0 0.0
    %3474 = vmatprep.subr.mxu0 0.0
    %3475 = vmatpush1.xpose.msra.mxu0 0.0
    %3476 = vmatprep.subr.mxu0 0.0
    %3477 = vmatpush1.xpose.msra.mxu0 0.0
    %3478 = vmatprep.subr.mxu0 0.0
    %3479 = vmatpush1.xpose.msra.mxu0 0.0
    %3480 = vmatprep.subr.mxu0 0.0
    %3481 = vmatpush1.xpose.msra.mxu0 0.0
    %3482 = vmatprep.subr.mxu0 0.0
    %3483 = vmatpush1.xpose.msra.mxu0 0.0
    %3484 = vmatprep.subr.mxu0 0.0
    %3485 = vmatpush1.xpose.msra.mxu0 0.0
    %3486 = vmatprep.subr.mxu0 0.0
    %3487 = vmatpush1.xpose.msra.mxu0 0.0
    %3488 = vmatprep.subr.mxu0 0.0
    %3489 = vmatpush1.xpose.msra.mxu0 0.0
    %3490 = vmatprep.subr.mxu0 0.0
    %3491 = vmatpush1.xpose.msra.mxu0 0.0
    %3492 = vmatprep.subr.mxu0 0.0
    %3493 = vmatpush1.xpose.msra.mxu0 0.0
    %3494 = vmatprep.subr.mxu0 0.0
    %3495 = vmatpush1.xpose.msra.mxu0 0.0
    %3496 = vmatprep.subr.mxu0 0.0
    %3497 = vmatpush1.xpose.msra.mxu0 0.0
    %3498 = vmatprep.subr.mxu0 0.0
    %3499 = vmatpush1.xpose.msra.mxu0 0.0
    %3500 = vmatprep.subr.mxu0 0.0
    %3501 = vmatpush1.xpose.msra.mxu0 0.0
    %3502 = vmatprep.subr.mxu0 0.0
    %3503 = vmatpush1.xpose.msra.mxu0 0.0
    %3504 = vmatprep.subr.mxu0 0.0
    %3505 = vmatpush1.xpose.msra.mxu0 0.0
    %3506 = vmatprep.subr.mxu0 0.0
    %3507 = vmatpush1.xpose.msra.mxu0 0.0
    %3508 = vmatprep.subr.mxu0 0.0
    %3509 = vmatpush1.xpose.msra.mxu0 0.0
    %3510 = vmatprep.mubr.f32.mxu0 0.0
    %3511 = vmatmul.mubr.f32.gmra.mrb[0].mxu0 %v3441
    %v3512 = vpop.f32.mrb[0].mxu0
    %v3513 = vadd.f32 0.0, %v3512
    %v3514 = vpop.f32.mrb[0].mxu0
    %3515 = vmatprep.mubr.f32.mxu0 0.0
    %3516 = vmatmul.mubr.f32.gmra.mrb[0].mxu0 %v3444
    %v3517 = vpop.f32.mrb[0].mxu0
    %v3518 = vadd.f32 0.0, %v3517
    %v3519 = vpop.f32.mrb[0].mxu0
    %3520 = vdwg.mxu0
    %v3522 = vsel %vm220, %v3438, 0
    %v3525 = vsel %vm220, %v3439, 0
    %3527 = vmatprep.subr.mxu0 0.0
    %3528 = vmatpush1.xpose.msra.mxu0 %v2735
    %3529 = vmatprep.subr.mxu0 0.0
    %3530 = vmatpush1.xpose.msra.mxu0 %v2737
    %3531 = vmatprep.subr.mxu0 0.0
    %3532 = vmatpush1.xpose.msra.mxu0 0.0
    %3533 = vmatprep.subr.mxu0 0.0
    %3534 = vmatpush1.xpose.msra.mxu0 0.0
    %3535 = vmatprep.subr.mxu0 0.0
    %3536 = vmatpush1.xpose.msra.mxu0 0.0
    %3537 = vmatprep.subr.mxu0 0.0
    %3538 = vmatpush1.xpose.msra.mxu0 0.0
    %3539 = vmatprep.subr.mxu0 0.0
    %3540 = vmatpush1.xpose.msra.mxu0 0.0
    %3541 = vmatprep.subr.mxu0 0.0
    %3542 = vmatpush1.xpose.msra.mxu0 0.0
    %3543 = vmatprep.subr.mxu0 0.0
    %3544 = vmatpush1.xpose.msra.mxu0 0.0
    %3545 = vmatprep.subr.mxu0 0.0
    %3546 = vmatpush1.xpose.msra.mxu0 0.0
    %3547 = vmatprep.subr.mxu0 0.0
    %3548 = vmatpush1.xpose.msra.mxu0 0.0
    %3549 = vmatprep.subr.mxu0 0.0
    %3550 = vmatpush1.xpose.msra.mxu0 0.0
    %3551 = vmatprep.subr.mxu0 0.0
    %3552 = vmatpush1.xpose.msra.mxu0 0.0
    %3553 = vmatprep.subr.mxu0 0.0
    %3554 = vmatpush1.xpose.msra.mxu0 0.0
    %3555 = vmatprep.subr.mxu0 0.0
    %3556 = vmatpush1.xpose.msra.mxu0 0.0
    %3557 = vmatprep.subr.mxu0 0.0
    %3558 = vmatpush1.xpose.msra.mxu0 0.0
    %3559 = vmatprep.subr.mxu0 0.0
    %3560 = vmatpush1.xpose.msra.mxu0 0.0
    %3561 = vmatprep.subr.mxu0 0.0
    %3562 = vmatpush1.xpose.msra.mxu0 0.0
    %3563 = vmatprep.subr.mxu0 0.0
    %3564 = vmatpush1.xpose.msra.mxu0 0.0
    %3565 = vmatprep.subr.mxu0 0.0
    %3566 = vmatpush1.xpose.msra.mxu0 0.0
    %3567 = vmatprep.subr.mxu0 0.0
    %3568 = vmatpush1.xpose.msra.mxu0 0.0
    %3569 = vmatprep.subr.mxu0 0.0
    %3570 = vmatpush1.xpose.msra.mxu0 0.0
    %3571 = vmatprep.subr.mxu0 0.0
    %3572 = vmatpush1.xpose.msra.mxu0 0.0
    %3573 = vmatprep.subr.mxu0 0.0
    %3574 = vmatpush1.xpose.msra.mxu0 0.0
    %3575 = vmatprep.subr.mxu0 0.0
    %3576 = vmatpush1.xpose.msra.mxu0 0.0
    %3577 = vmatprep.subr.mxu0 0.0
    %3578 = vmatpush1.xpose.msra.mxu0 0.0
    %3579 = vmatprep.subr.mxu0 0.0
    %3580 = vmatpush1.xpose.msra.mxu0 0.0
    %3581 = vmatprep.subr.mxu0 0.0
    %3582 = vmatpush1.xpose.msra.mxu0 0.0
    %3583 = vmatprep.subr.mxu0 0.0
    %3584 = vmatpush1.xpose.msra.mxu0 0.0
    %3585 = vmatprep.subr.mxu0 0.0
    %3586 = vmatpush1.xpose.msra.mxu0 0.0
    %3587 = vmatprep.subr.mxu0 0.0
    %3588 = vmatpush1.xpose.msra.mxu0 0.0
    %3589 = vmatprep.subr.mxu0 0.0
    %3590 = vmatpush1.xpose.msra.mxu0 0.0
    %3591 = vmatprep.mubr.f32.mxu0 0.0
    %3592 = vmatmul.mubr.f32.gmra.mrb[0].mxu0 %v3522
    %v3593 = vpop.f32.mrb[0].mxu0
    %v3594 = vadd.f32 0.0, %v3593
    %v3595 = vpop.f32.mrb[0].mxu0
    %3596 = vmatprep.mubr.f32.mxu0 0.0
    %3597 = vmatmul.mubr.f32.gmra.mrb[0].mxu0 %v3525
    %v3598 = vpop.f32.mrb[0].mxu0
    %v3599 = vadd.f32 0.0, %v3598
    %v3600 = vpop.f32.mrb[0].mxu0
    %3601 = vdwg.mxu0
    %v3602 = vmul.f32 %v3513, 0.35355338
    %v3603 = vmul.f32 %v3518, 0.35355338
    %v3604 = vmul.f32 %v3594, 0.35355338
    %v3605 = vmul.f32 %v3599, 0.35355338
    %v3606 = vadd.f32 %v3602, %v317
    %v3607 = vadd.f32 %v3603, %v317
    %v3608 = vadd.f32 %v3604, %v321
    %v3609 = vadd.f32 %v3605, %v321
    %v3610 = vsel %vm640, %v3606, -inf
    %3611 = vmax.xlane.f32.xlu0 %v3610
    %v3612 = vpop.xlane.xlu0 %3611
    %v3613 = vsel %vm640, %v3607, -inf
    %3614 = vmax.xlane.f32.xlu0 %v3613
    %v3615 = vpop.xlane.xlu0 %3614
    %v3616 = vsel %vm640, %v3608, -inf
    %3617 = vmax.xlane.f32.xlu0 %v3616
    %v3618 = vpop.xlane.xlu0 %3617
    %v3619 = vsel %vm640, %v3609, -inf
    %3620 = vmax.xlane.f32.xlu0 %v3619
    %v3621 = vpop.xlane.xlu0 %3620
    %v3622 = vsub.f32 %v3606, %v3612
    %v3623 = vsub.f32 %v3607, %v3615
    %v3624 = vsub.f32 %v3608, %v3618
    %v3625 = vsub.f32 %v3609, %v3621
    %v3626 = vmul.f32 %v3622, 1.442695
    %v3627 = vpow.pop %v3626
    %v3628 = vmul.f32 %v3623, 1.442695
    %v3629 = vpow.pop %v3628
    %v3630 = vmul.f32 %v3624, 1.442695
    %v3631 = vpow.pop %v3630
    %v3632 = vmul.f32 %v3625, 1.442695
    %v3633 = vpow.pop %v3632
    %v3634 = vsel %vm640, %v3627, 0.0
    %3635 = vadd.xlane.f32.xlu0 %v3634
    %v3636 = vpop.xlane.xlu0 %3635
    %v3637 = vsel %vm640, %v3629, 0.0
    %3638 = vadd.xlane.f32.xlu0 %v3637
    %v3639 = vpop.xlane.xlu0 %3638
    %v3640 = vsel %vm640, %v3631, 0.0
    %3641 = vadd.xlane.f32.xlu0 %v3640
    %v3642 = vpop.xlane.xlu0 %3641
    %v3643 = vsel %vm640, %v3633, 0.0
    %3644 = vadd.xlane.f32.xlu0 %v3643
    %v3645 = vpop.xlane.xlu0 %3644
    %v3646 = vrcp.pop %v3636
    %v3647 = vrcp.pop %v3639
    %v3648 = vrcp.pop %v3642
    %v3649 = vrcp.pop %v3645
    %v3650 = vmul.f32 %v3627, %v3646
    %v3651 = vmul.f32 %v3629, %v3647
    %v3652 = vmul.f32 %v3631, %v3648
    %v3653 = vmul.f32 %v3633, %v3649
    %v3655 = vsel %vm640, %v3650, 0
    %v3658 = vsel %vm640, %v3651, 0
    %3660 = vmatprep.subr.mxu0 0.0
    %3661 = vmatpush1.msra.mxu0 %v2867
    %3662 = vmatprep.subr.mxu0 0.0
    %3663 = vmatpush1.msra.mxu0 %v2869
    %3664 = vmatprep.subr.mxu0 0.0
    %3665 = vmatpush1.msra.mxu0 0.0
    %3666 = vmatprep.subr.mxu0 0.0
    %3667 = vmatpush1.msra.mxu0 0.0
    %3668 = vmatprep.subr.mxu0 0.0
    %3669 = vmatpush1.msra.mxu0 0.0
    %3670 = vmatprep.subr.mxu0 0.0
    %3671 = vmatpush1.msra.mxu0 0.0
    %3672 = vmatprep.subr.mxu0 0.0
    %3673 = vmatpush1.msra.mxu0 0.0
    %3674 = vmatprep.subr.mxu0 0.0
    %3675 = vmatpush1.msra.mxu0 0.0
    %3676 = vmatprep.subr.mxu0 0.0
    %3677 = vmatpush1.msra.mxu0 0.0
    %3678 = vmatprep.subr.mxu0 0.0
    %3679 = vmatpush1.msra.mxu0 0.0
    %3680 = vmatprep.subr.mxu0 0.0
    %3681 = vmatpush1.msra.mxu0 0.0
    %3682 = vmatprep.subr.mxu0 0.0
    %3683 = vmatpush1.msra.mxu0 0.0
    %3684 = vmatprep.subr.mxu0 0.0
    %3685 = vmatpush1.msra.mxu0 0.0
    %3686 = vmatprep.subr.mxu0 0.0
    %3687 = vmatpush1.msra.mxu0 0.0
    %3688 = vmatprep.subr.mxu0 0.0
    %3689 = vmatpush1.msra.mxu0 0.0
    %3690 = vmatprep.subr.mxu0 0.0
    %3691 = vmatpush1.msra.mxu0 0.0
    %3692 = vmatprep.subr.mxu0 0.0
    %3693 = vmatpush1.msra.mxu0 0.0
    %3694 = vmatprep.subr.mxu0 0.0
    %3695 = vmatpush1.msra.mxu0 0.0
    %3696 = vmatprep.subr.mxu0 0.0
    %3697 = vmatpush1.msra.mxu0 0.0
    %3698 = vmatprep.subr.mxu0 0.0
    %3699 = vmatpush1.msra.mxu0 0.0
    %3700 = vmatprep.subr.mxu0 0.0
    %3701 = vmatpush1.msra.mxu0 0.0
    %3702 = vmatprep.subr.mxu0 0.0
    %3703 = vmatpush1.msra.mxu0 0.0
    %3704 = vmatprep.subr.mxu0 0.0
    %3705 = vmatpush1.msra.mxu0 0.0
    %3706 = vmatprep.subr.mxu0 0.0
    %3707 = vmatpush1.msra.mxu0 0.0
    %3708 = vmatprep.subr.mxu0 0.0
    %3709 = vmatpush1.msra.mxu0 0.0
    %3710 = vmatprep.subr.mxu0 0.0
    %3711 = vmatpush1.msra.mxu0 0.0
    %3712 = vmatprep.subr.mxu0 0.0
    %3713 = vmatpush1.msra.mxu0 0.0
    %3714 = vmatprep.subr.mxu0 0.0
    %3715 = vmatpush1.msra.mxu0 0.0
    %3716 = vmatprep.subr.mxu0 0.0
    %3717 = vmatpush1.msra.mxu0 0.0
    %3718 = vmatprep.subr.mxu0 0.0
    %3719 = vmatpush1.msra.mxu0 0.0
    %3720 = vmatprep.subr.mxu0 0.0
    %3721 = vmatpush1.msra.mxu0 0.0
    %3722 = vmatprep.subr.mxu0 0.0
    %3723 = vmatpush1.msra.mxu0 0.0
    %3724 = vmatprep.mubr.f32.mxu0 0.0
    %3725 = vmatmul.mubr.f32.gmra.mrb[0].mxu0 %v3655
    %v3726 = vpop.f32.mrb[0].mxu0
    %v3727 = vadd.f32 0.0, %v3726
    %v3728 = vpop.f32.mrb[0].mxu0
    %3729 = vmatprep.mubr.f32.mxu0 0.0
    %3730 = vmatmul.mubr.f32.gmra.mrb[0].mxu0 %v3658
    %v3731 = vpop.f32.mrb[0].mxu0
    %v3732 = vadd.f32 0.0, %v3731
    %v3733 = vpop.f32.mrb[0].mxu0
    %3734 = vdwg.mxu0
    %v3736 = vsel %vm640, %v3652, 0
    %v3739 = vsel %vm640, %v3653, 0
    %3741 = vmatprep.subr.mxu0 0.0
    %3742 = vmatpush1.msra.mxu0 %v2954
    %3743 = vmatprep.subr.mxu0 0.0
    %3744 = vmatpush1.msra.mxu0 %v2956
    %3745 = vmatprep.subr.mxu0 0.0
    %3746 = vmatpush1.msra.mxu0 0.0
    %3747 = vmatprep.subr.mxu0 0.0
    %3748 = vmatpush1.msra.mxu0 0.0
    %3749 = vmatprep.subr.mxu0 0.0
    %3750 = vmatpush1.msra.mxu0 0.0
    %3751 = vmatprep.subr.mxu0 0.0
    %3752 = vmatpush1.msra.mxu0 0.0
    %3753 = vmatprep.subr.mxu0 0.0
    %3754 = vmatpush1.msra.mxu0 0.0
    %3755 = vmatprep.subr.mxu0 0.0
    %3756 = vmatpush1.msra.mxu0 0.0
    %3757 = vmatprep.subr.mxu0 0.0
    %3758 = vmatpush1.msra.mxu0 0.0
    %3759 = vmatprep.subr.mxu0 0.0
    %3760 = vmatpush1.msra.mxu0 0.0
    %3761 = vmatprep.subr.mxu0 0.0
    %3762 = vmatpush1.msra.mxu0 0.0
    %3763 = vmatprep.subr.mxu0 0.0
    %3764 = vmatpush1.msra.mxu0 0.0
    %3765 = vmatprep.subr.mxu0 0.0
    %3766 = vmatpush1.msra.mxu0 0.0
    %3767 = vmatprep.subr.mxu0 0.0
    %3768 = vmatpush1.msra.mxu0 0.0
    %3769 = vmatprep.subr.mxu0 0.0
    %3770 = vmatpush1.msra.mxu0 0.0
    %3771 = vmatprep.subr.mxu0 0.0
    %3772 = vmatpush1.msra.mxu0 0.0
    %3773 = vmatprep.subr.mxu0 0.0
    %3774 = vmatpush1.msra.mxu0 0.0
    %3775 = vmatprep.subr.mxu0 0.0
    %3776 = vmatpush1.msra.mxu0 0.0
    %3777 = vmatprep.subr.mxu0 0.0
    %3778 = vmatpush1.msra.mxu0 0.0
    %3779 = vmatprep.subr.mxu0 0.0
    %3780 = vmatpush1.msra.mxu0 0.0
    %3781 = vmatprep.subr.mxu0 0.0
    %3782 = vmatpush1.msra.mxu0 0.0
    %3783 = vmatprep.subr.mxu0 0.0
    %3784 = vmatpush1.msra.mxu0 0.0
    %3785 = vmatprep.subr.mxu0 0.0
    %3786 = vmatpush1.msra.mxu0 0.0
    %3787 = vmatprep.subr.mxu0 0.0
    %3788 = vmatpush1.msra.mxu0 0.0
    %3789 = vmatprep.subr.mxu0 0.0
    %3790 = vmatpush1.msra.mxu0 0.0
    %3791 = vmatprep.subr.mxu0 0.0
    %3792 = vmatpush1.msra.mxu0 0.0
    %3793 = vmatprep.subr.mxu0 0.0
    %3794 = vmatpush1.msra.mxu0 0.0
    %3795 = vmatprep.subr.mxu0 0.0
    %3796 = vmatpush1.msra.mxu0 0.0
    %3797 = vmatprep.subr.mxu0 0.0
    %3798 = vmatpush1.msra.mxu0 0.0
    %3799 = vmatprep.subr.mxu0 0.0
    %3800 = vmatpush1.msra.mxu0 0.0
    %3801 = vmatprep.subr.mxu0 0.0
    %3802 = vmatpush1.msra.mxu0 0.0
    %3803 = vmatprep.subr.mxu0 0.0
    %3804 = vmatpush1.msra.mxu0 0.0
    %3805 = vmatprep.mubr.f32.mxu0 0.0
    %3806 = vmatmul.mubr.f32.gmra.mrb[0].mxu0 %v3736
    %v3807 = vpop.f32.mrb[0].mxu0
    %v3808 = vadd.f32 0.0, %v3807
    %v3809 = vpop.f32.mrb[0].mxu0
    %3810 = vmatprep.mubr.f32.mxu0 0.0
    %3811 = vmatmul.mubr.f32.gmra.mrb[0].mxu0 %v3739
    %v3812 = vpop.f32.mrb[0].mxu0
    %v3813 = vadd.f32 0.0, %v3812
    %v3814 = vpop.f32.mrb[0].mxu0
    %3815 = vdwg.mxu0
    %v3816 = vmul.f32 %v3727, %v335
    %v3817 = vmul.f32 %v3732, %v335
    %v3818 = vmul.f32 %v3808, %v335
    %v3819 = vmul.f32 %v3813, %v335
    %v3820 = vadd.f32 %v3432, %v3816
    %v3821 = vadd.f32 %v3433, %v3817
    %v3822 = vadd.f32 %v3434, %v3818
    %v3823 = vadd.f32 %v3435, %v3819
    %v3824 = vmul.f32 %v2610, %v339
    %v3825 = vmul.f32 %v2615, %v339
    %v3826 = vmul.f32 %v2620, %v339
    %v3827 = vmul.f32 %v2625, %v339
    %v3829 = vsel %vm220, %v3824, 0
    %v3832 = vsel %vm220, %v3825, 0
    %3834 = vmatprep.subr.mxu0 0.0
    %3835 = vmatpush1.xpose.msra.mxu0 %v2644
    %3836 = vmatprep.subr.mxu0 0.0
    %3837 = vmatpush1.xpose.msra.mxu0 %v2646
    %3838 = vmatprep.subr.mxu0 0.0
    %3839 = vmatpush1.xpose.msra.mxu0 0.0
    %3840 = vmatprep.subr.mxu0 0.0
    %3841 = vmatpush1.xpose.msra.mxu0 0.0
    %3842 = vmatprep.subr.mxu0 0.0
    %3843 = vmatpush1.xpose.msra.mxu0 0.0
    %3844 = vmatprep.subr.mxu0 0.0
    %3845 = vmatpush1.xpose.msra.mxu0 0.0
    %3846 = vmatprep.subr.mxu0 0.0
    %3847 = vmatpush1.xpose.msra.mxu0 0.0
    %3848 = vmatprep.subr.mxu0 0.0
    %3849 = vmatpush1.xpose.msra.mxu0 0.0
    %3850 = vmatprep.subr.mxu0 0.0
    %3851 = vmatpush1.xpose.msra.mxu0 0.0
    %3852 = vmatprep.subr.mxu0 0.0
    %3853 = vmatpush1.xpose.msra.mxu0 0.0
    %3854 = vmatprep.subr.mxu0 0.0
    %3855 = vmatpush1.xpose.msra.mxu0 0.0
    %3856 = vmatprep.subr.mxu0 0.0
    %3857 = vmatpush1.xpose.msra.mxu0 0.0
    %3858 = vmatprep.subr.mxu0 0.0
    %3859 = vmatpush1.xpose.msra.mxu0 0.0
    %3860 = vmatprep.subr.mxu0 0.0
    %3861 = vmatpush1.xpose.msra.mxu0 0.0
    %3862 = vmatprep.subr.mxu0 0.0
    %3863 = vmatpush1.xpose.msra.mxu0 0.0
    %3864 = vmatprep.subr.mxu0 0.0
    %3865 = vmatpush1.xpose.msra.mxu0 0.0
    %3866 = vmatprep.subr.mxu0 0.0
    %3867 = vmatpush1.xpose.msra.mxu0 0.0
    %3868 = vmatprep.subr.mxu0 0.0
    %3869 = vmatpush1.xpose.msra.mxu0 0.0
    %3870 = vmatprep.subr.mxu0 0.0
    %3871 = vmatpush1.xpose.msra.mxu0 0.0
    %3872 = vmatprep.subr.mxu0 0.0
    %3873 = vmatpush1.xpose.msra.mxu0 0.0
    %3874 = vmatprep.subr.mxu0 0.0
    %3875 = vmatpush1.xpose.msra.mxu0 0.0
    %3876 = vmatprep.subr.mxu0 0.0
    %3877 = vmatpush1.xpose.msra.mxu0 0.0
    %3878 = vmatprep.subr.mxu0 0.0
    %3879 = vmatpush1.xpose.msra.mxu0 0.0
    %3880 = vmatprep.subr.mxu0 0.0
    %3881 = vmatpush1.xpose.msra.mxu0 0.0
    %3882 = vmatprep.subr.mxu0 0.0
    %3883 = vmatpush1.xpose.msra.mxu0 0.0
    %3884 = vmatprep.subr.mxu0 0.0
    %3885 = vmatpush1.xpose.msra.mxu0 0.0
    %3886 = vmatprep.subr.mxu0 0.0
    %3887 = vmatpush1.xpose.msra.mxu0 0.0
    %3888 = vmatprep.subr.mxu0 0.0
    %3889 = vmatpush1.xpose.msra.mxu0 0.0
    %3890 = vmatprep.subr.mxu0 0.0
    %3891 = vmatpush1.xpose.msra.mxu0 0.0
    %3892 = vmatprep.subr.mxu0 0.0
    %3893 = vmatpush1.xpose.msra.mxu0 0.0
    %3894 = vmatprep.subr.mxu0 0.0
    %3895 = vmatpush1.xpose.msra.mxu0 0.0
    %3896 = vmatprep.subr.mxu0 0.0
    %3897 = vmatpush1.xpose.msra.mxu0 0.0
    %3898 = vmatprep.mubr.f32.mxu0 0.0
    %3899 = vmatmul.mubr.f32.gmra.mrb[0].mxu0 %v3829
    %v3900 = vpop.f32.mrb[0].mxu0
    %v3901 = vadd.f32 0.0, %v3900
    %v3902 = vpop.f32.mrb[0].mxu0
    %3903 = vmatprep.mubr.f32.mxu0 0.0
    %3904 = vmatmul.mubr.f32.gmra.mrb[0].mxu0 %v3832
    %v3905 = vpop.f32.mrb[0].mxu0
    %v3906 = vadd.f32 0.0, %v3905
    %v3907 = vpop.f32.mrb[0].mxu0
    %3908 = vdwg.mxu0
    %v3910 = vsel %vm220, %v3826, 0
    %v3913 = vsel %vm220, %v3827, 0
    %3915 = vmatprep.subr.mxu0 0.0
    %3916 = vmatpush1.xpose.msra.mxu0 %v2735
    %3917 = vmatprep.subr.mxu0 0.0
    %3918 = vmatpush1.xpose.msra.mxu0 %v2737
    %3919 = vmatprep.subr.mxu0 0.0
    %3920 = vmatpush1.xpose.msra.mxu0 0.0
    %3921 = vmatprep.subr.mxu0 0.0
    %3922 = vmatpush1.xpose.msra.mxu0 0.0
    %3923 = vmatprep.subr.mxu0 0.0
    %3924 = vmatpush1.xpose.msra.mxu0 0.0
    %3925 = vmatprep.subr.mxu0 0.0
    %3926 = vmatpush1.xpose.msra.mxu0 0.0
    %3927 = vmatprep.subr.mxu0 0.0
    %3928 = vmatpush1.xpose.msra.mxu0 0.0
    %3929 = vmatprep.subr.mxu0 0.0
    %3930 = vmatpush1.xpose.msra.mxu0 0.0
    %3931 = vmatprep.subr.mxu0 0.0
    %3932 = vmatpush1.xpose.msra.mxu0 0.0
    %3933 = vmatprep.subr.mxu0 0.0
    %3934 = vmatpush1.xpose.msra.mxu0 0.0
    %3935 = vmatprep.subr.mxu0 0.0
    %3936 = vmatpush1.xpose.msra.mxu0 0.0
    %3937 = vmatprep.subr.mxu0 0.0
    %3938 = vmatpush1.xpose.msra.mxu0 0.0
    %3939 = vmatprep.subr.mxu0 0.0
    %3940 = vmatpush1.xpose.msra.mxu0 0.0
    %3941 = vmatprep.subr.mxu0 0.0
    %3942 = vmatpush1.xpose.msra.mxu0 0.0
    %3943 = vmatprep.subr.mxu0 0.0
    %3944 = vmatpush1.xpose.msra.mxu0 0.0
    %3945 = vmatprep.subr.mxu0 0.0
    %3946 = vmatpush1.xpose.msra.mxu0 0.0
    %3947 = vmatprep.subr.mxu0 0.0
    %3948 = vmatpush1.xpose.msra.mxu0 0.0
    %3949 = vmatprep.subr.mxu0 0.0
    %3950 = vmatpush1.xpose.msra.mxu0 0.0
    %3951 = vmatprep.subr.mxu0 0.0
    %3952 = vmatpush1.xpose.msra.mxu0 0.0
    %3953 = vmatprep.subr.mxu0 0.0
    %3954 = vmatpush1.xpose.msra.mxu0 0.0
    %3955 = vmatprep.subr.mxu0 0.0
    %3956 = vmatpush1.xpose.msra.mxu0 0.0
    %3957 = vmatprep.subr.mxu0 0.0
    %3958 = vmatpush1.xpose.msra.mxu0 0.0
    %3959 = vmatprep.subr.mxu0 0.0
    %3960 = vmatpush1.xpose.msra.mxu0 0.0
    %3961 = vmatprep.subr.mxu0 0.0
    %3962 = vmatpush1.xpose.msra.mxu0 0.0
    %3963 = vmatprep.subr.mxu0 0.0
    %3964 = vmatpush1.xpose.msra.mxu0 0.0
    %3965 = vmatprep.subr.mxu0 0.0
    %3966 = vmatpush1.xpose.msra.mxu0 0.0
    %3967 = vmatprep.subr.mxu0 0.0
    %3968 = vmatpush1.xpose.msra.mxu0 0.0
    %3969 = vmatprep.subr.mxu0 0.0
    %3970 = vmatpush1.xpose.msra.mxu0 0.0
    %3971 = vmatprep.subr.mxu0 0.0
    %3972 = vmatpush1.xpose.msra.mxu0 0.0
    %3973 = vmatprep.subr.mxu0 0.0
    %3974 = vmatpush1.xpose.msra.mxu0 0.0
    %3975 = vmatprep.subr.mxu0 0.0
    %3976 = vmatpush1.xpose.msra.mxu0 0.0
    %3977 = vmatprep.subr.mxu0 0.0
    %3978 = vmatpush1.xpose.msra.mxu0 0.0
    %3979 = vmatprep.mubr.f32.mxu0 0.0
    %3980 = vmatmul.mubr.f32.gmra.mrb[0].mxu0 %v3910
    %v3981 = vpop.f32.mrb[0].mxu0
    %v3982 = vadd.f32 0.0, %v3981
    %v3983 = vpop.f32.mrb[0].mxu0
    %3984 = vmatprep.mubr.f32.mxu0 0.0
    %3985 = vmatmul.mubr.f32.gmra.mrb[0].mxu0 %v3913
    %v3986 = vpop.f32.mrb[0].mxu0
    %v3987 = vadd.f32 0.0, %v3986
    %v3988 = vpop.f32.mrb[0].mxu0
    %3989 = vdwg.mxu0
    %v3990 = vmul.f32 %v3901, 0.35355338
    %v3991 = vmul.f32 %v3906, 0.35355338
    %v3992 = vmul.f32 %v3982, 0.35355338
    %v3993 = vmul.f32 %v3987, 0.35355338
    %v3994 = vadd.f32 %v3990, %v317
    %v3995 = vadd.f32 %v3991, %v317
    %v3996 = vadd.f32 %v3992, %v321
    %v3997 = vadd.f32 %v3993, %v321
    %v3998 = vsel %vm640, %v3994, -inf
    %3999 = vmax.xlane.f32.xlu0 %v3998
    %v4000 = vpop.xlane.xlu0 %3999
    %v4001 = vsel %vm640, %v3995, -inf
    %4002 = vmax.xlane.f32.xlu0 %v4001
    %v4003 = vpop.xlane.xlu0 %4002
    %v4004 = vsel %vm640, %v3996, -inf
    %4005 = vmax.xlane.f32.xlu0 %v4004
    %v4006 = vpop.xlane.xlu0 %4005
    %v4007 = vsel %vm640, %v3997, -inf
    %4008 = vmax.xlane.f32.xlu0 %v4007
    %v4009 = vpop.xlane.xlu0 %4008
    %v4010 = vsub.f32 %v3994, %v4000
    %v4011 = vsub.f32 %v3995, %v4003
    %v4012 = vsub.f32 %v3996, %v4006
    %v4013 = vsub.f32 %v3997, %v4009
    %v4014 = vmul.f32 %v4010, 1.442695
    %v4015 = vpow.pop %v4014
    %v4016 = vmul.f32 %v4011, 1.442695
    %v4017 = vpow.pop %v4016
    %v4018 = vmul.f32 %v4012, 1.442695
    %v4019 = vpow.pop %v4018
    %v4020 = vmul.f32 %v4013, 1.442695
    %v4021 = vpow.pop %v4020
    %v4022 = vsel %vm640, %v4015, 0.0
    %4023 = vadd.xlane.f32.xlu0 %v4022
    %v4024 = vpop.xlane.xlu0 %4023
    %v4025 = vsel %vm640, %v4017, 0.0
    %4026 = vadd.xlane.f32.xlu0 %v4025
    %v4027 = vpop.xlane.xlu0 %4026
    %v4028 = vsel %vm640, %v4019, 0.0
    %4029 = vadd.xlane.f32.xlu0 %v4028
    %v4030 = vpop.xlane.xlu0 %4029
    %v4031 = vsel %vm640, %v4021, 0.0
    %4032 = vadd.xlane.f32.xlu0 %v4031
    %v4033 = vpop.xlane.xlu0 %4032
    %v4034 = vrcp.pop %v4024
    %v4035 = vrcp.pop %v4027
    %v4036 = vrcp.pop %v4030
    %v4037 = vrcp.pop %v4033
    %v4038 = vmul.f32 %v4015, %v4034
    %v4039 = vmul.f32 %v4017, %v4035
    %v4040 = vmul.f32 %v4019, %v4036
    %v4041 = vmul.f32 %v4021, %v4037
    %v4043 = vsel %vm640, %v4038, 0
    %v4046 = vsel %vm640, %v4039, 0
    %4048 = vmatprep.subr.mxu0 0.0
    %4049 = vmatpush1.msra.mxu0 %v2867
    %4050 = vmatprep.subr.mxu0 0.0
    %4051 = vmatpush1.msra.mxu0 %v2869
    %4052 = vmatprep.subr.mxu0 0.0
    %4053 = vmatpush1.msra.mxu0 0.0
    %4054 = vmatprep.subr.mxu0 0.0
    %4055 = vmatpush1.msra.mxu0 0.0
    %4056 = vmatprep.subr.mxu0 0.0
    %4057 = vmatpush1.msra.mxu0 0.0
    %4058 = vmatprep.subr.mxu0 0.0
    %4059 = vmatpush1.msra.mxu0 0.0
    %4060 = vmatprep.subr.mxu0 0.0
    %4061 = vmatpush1.msra.mxu0 0.0
    %4062 = vmatprep.subr.mxu0 0.0
    %4063 = vmatpush1.msra.mxu0 0.0
    %4064 = vmatprep.subr.mxu0 0.0
    %4065 = vmatpush1.msra.mxu0 0.0
    %4066 = vmatprep.subr.mxu0 0.0
    %4067 = vmatpush1.msra.mxu0 0.0
    %4068 = vmatprep.subr.mxu0 0.0
    %4069 = vmatpush1.msra.mxu0 0.0
    %4070 = vmatprep.subr.mxu0 0.0
    %4071 = vmatpush1.msra.mxu0 0.0
    %4072 = vmatprep.subr.mxu0 0.0
    %4073 = vmatpush1.msra.mxu0 0.0
    %4074 = vmatprep.subr.mxu0 0.0
    %4075 = vmatpush1.msra.mxu0 0.0
    %4076 = vmatprep.subr.mxu0 0.0
    %4077 = vmatpush1.msra.mxu0 0.0
    %4078 = vmatprep.subr.mxu0 0.0
    %4079 = vmatpush1.msra.mxu0 0.0
    %4080 = vmatprep.subr.mxu0 0.0
    %4081 = vmatpush1.msra.mxu0 0.0
    %4082 = vmatprep.subr.mxu0 0.0
    %4083 = vmatpush1.msra.mxu0 0.0
    %4084 = vmatprep.subr.mxu0 0.0
    %4085 = vmatpush1.msra.mxu0 0.0
    %4086 = vmatprep.subr.mxu0 0.0
    %4087 = vmatpush1.msra.mxu0 0.0
    %4088 = vmatprep.subr.mxu0 0.0
    %4089 = vmatpush1.msra.mxu0 0.0
    %4090 = vmatprep.subr.mxu0 0.0
    %4091 = vmatpush1.msra.mxu0 0.0
    %4092 = vmatprep.subr.mxu0 0.0
    %4093 = vmatpush1.msra.mxu0 0.0
    %4094 = vmatprep.subr.mxu0 0.0
    %4095 = vmatpush1.msra.mxu0 0.0
    %4096 = vmatprep.subr.mxu0 0.0
    %4097 = vmatpush1.msra.mxu0 0.0
    %4098 = vmatprep.subr.mxu0 0.0
    %4099 = vmatpush1.msra.mxu0 0.0
    %4100 = vmatprep.subr.mxu0 0.0
    %4101 = vmatpush1.msra.mxu0 0.0
    %4102 = vmatprep.subr.mxu0 0.0
    %4103 = vmatpush1.msra.mxu0 0.0
    %4104 = vmatprep.subr.mxu0 0.0
    %4105 = vmatpush1.msra.mxu0 0.0
    %4106 = vmatprep.subr.mxu0 0.0
    %4107 = vmatpush1.msra.mxu0 0.0
    %4108 = vmatprep.subr.mxu0 0.0
    %4109 = vmatpush1.msra.mxu0 0.0
    %4110 = vmatprep.subr.mxu0 0.0
    %4111 = vmatpush1.msra.mxu0 0.0
    %4112 = vmatprep.mubr.f32.mxu0 0.0
    %4113 = vmatmul.mubr.f32.gmra.mrb[0].mxu0 %v4043
    %v4114 = vpop.f32.mrb[0].mxu0
    %v4115 = vadd.f32 0.0, %v4114
    %v4116 = vpop.f32.mrb[0].mxu0
    %4117 = vmatprep.mubr.f32.mxu0 0.0
    %4118 = vmatmul.mubr.f32.gmra.mrb[0].mxu0 %v4046
    %v4119 = vpop.f32.mrb[0].mxu0
    %v4120 = vadd.f32 0.0, %v4119
    %v4121 = vpop.f32.mrb[0].mxu0
    %4122 = vdwg.mxu0
    %v4124 = vsel %vm640, %v4040, 0
    %v4127 = vsel %vm640, %v4041, 0
    %4129 = vmatprep.subr.mxu0 0.0
    %4130 = vmatpush1.msra.mxu0 %v2954
    %4131 = vmatprep.subr.mxu0 0.0
    %4132 = vmatpush1.msra.mxu0 %v2956
    %4133 = vmatprep.subr.mxu0 0.0
    %4134 = vmatpush1.msra.mxu0 0.0
    %4135 = vmatprep.subr.mxu0 0.0
    %4136 = vmatpush1.msra.mxu0 0.0
    %4137 = vmatprep.subr.mxu0 0.0
    %4138 = vmatpush1.msra.mxu0 0.0
    %4139 = vmatprep.subr.mxu0 0.0
    %4140 = vmatpush1.msra.mxu0 0.0
    %4141 = vmatprep.subr.mxu0 0.0
    %4142 = vmatpush1.msra.mxu0 0.0
    %4143 = vmatprep.subr.mxu0 0.0
    %4144 = vmatpush1.msra.mxu0 0.0
    %4145 = vmatprep.subr.mxu0 0.0
    %4146 = vmatpush1.msra.mxu0 0.0
    %4147 = vmatprep.subr.mxu0 0.0
    %4148 = vmatpush1.msra.mxu0 0.0
    %4149 = vmatprep.subr.mxu0 0.0
    %4150 = vmatpush1.msra.mxu0 0.0
    %4151 = vmatprep.subr.mxu0 0.0
    %4152 = vmatpush1.msra.mxu0 0.0
    %4153 = vmatprep.subr.mxu0 0.0
    %4154 = vmatpush1.msra.mxu0 0.0
    %4155 = vmatprep.subr.mxu0 0.0
    %4156 = vmatpush1.msra.mxu0 0.0
    %4157 = vmatprep.subr.mxu0 0.0
    %4158 = vmatpush1.msra.mxu0 0.0
    %4159 = vmatprep.subr.mxu0 0.0
    %4160 = vmatpush1.msra.mxu0 0.0
    %4161 = vmatprep.subr.mxu0 0.0
    %4162 = vmatpush1.msra.mxu0 0.0
    %4163 = vmatprep.subr.mxu0 0.0
    %4164 = vmatpush1.msra.mxu0 0.0
    %4165 = vmatprep.subr.mxu0 0.0
    %4166 = vmatpush1.msra.mxu0 0.0
    %4167 = vmatprep.subr.mxu0 0.0
    %4168 = vmatpush1.msra.mxu0 0.0
    %4169 = vmatprep.subr.mxu0 0.0
    %4170 = vmatpush1.msra.mxu0 0.0
    %4171 = vmatprep.subr.mxu0 0.0
    %4172 = vmatpush1.msra.mxu0 0.0
    %4173 = vmatprep.subr.mxu0 0.0
    %4174 = vmatpush1.msra.mxu0 0.0
    %4175 = vmatprep.subr.mxu0 0.0
    %4176 = vmatpush1.msra.mxu0 0.0
    %4177 = vmatprep.subr.mxu0 0.0
    %4178 = vmatpush1.msra.mxu0 0.0
    %4179 = vmatprep.subr.mxu0 0.0
    %4180 = vmatpush1.msra.mxu0 0.0
    %4181 = vmatprep.subr.mxu0 0.0
    %4182 = vmatpush1.msra.mxu0 0.0
    %4183 = vmatprep.subr.mxu0 0.0
    %4184 = vmatpush1.msra.mxu0 0.0
    %4185 = vmatprep.subr.mxu0 0.0
    %4186 = vmatpush1.msra.mxu0 0.0
    %4187 = vmatprep.subr.mxu0 0.0
    %4188 = vmatpush1.msra.mxu0 0.0
    %4189 = vmatprep.subr.mxu0 0.0
    %4190 = vmatpush1.msra.mxu0 0.0
    %4191 = vmatprep.subr.mxu0 0.0
    %4192 = vmatpush1.msra.mxu0 0.0
    %4193 = vmatprep.mubr.f32.mxu0 0.0
    %4194 = vmatmul.mubr.f32.gmra.mrb[0].mxu0 %v4124
    %v4195 = vpop.f32.mrb[0].mxu0
    %v4196 = vadd.f32 0.0, %v4195
    %v4197 = vpop.f32.mrb[0].mxu0
    %4198 = vmatprep.mubr.f32.mxu0 0.0
    %4199 = vmatmul.mubr.f32.gmra.mrb[0].mxu0 %v4127
    %v4200 = vpop.f32.mrb[0].mxu0
    %v4201 = vadd.f32 0.0, %v4200
    %v4202 = vpop.f32.mrb[0].mxu0
    %4203 = vdwg.mxu0
    %v4204 = vmul.f32 %v4115, %v339
    %v4205 = vmul.f32 %v4120, %v339
    %v4206 = vmul.f32 %v4196, %v339
    %v4207 = vmul.f32 %v4201, %v339
    %v4208 = vadd.f32 %v3820, %v4204
    %v4209 = vadd.f32 %v3821, %v4205
    %v4210 = vadd.f32 %v3822, %v4206
    %v4211 = vadd.f32 %v3823, %v4207
    %v4212 = vld [vmem:[#allocation2 + $0x168] sm:$0xff]
    %v4213 = vld [vmem:[#allocation2 + $0x170] sm:$0xff]
    %v4214 = vld [vmem:[#allocation2 + $0x178] sm:$0xff]
    %v4215 = vld [vmem:[#allocation2 + $0x180] sm:$0xff]
    %v4216 = vld [vmem:[#allocation2 + $0x188] sm:$0x1]
    %v4217 = vlaneseq
    %v4218 = vshrl.u32 %v4217, 7
    %v4219 = vsub.s32 0, %v4218
    %v4220 = vrot.slane %v4216, %v4219
    %v4222 = vsel %vm220, %v4208, 0
    %v4225 = vsel %vm220, %v4209, 0
    %v4228 = vsel %vm220, %v4210, 0
    %v4231 = vsel %vm220, %v4211, 0
    %4233 = vmatprep.subr.mxu0 0.0
    %4234 = vmatpush1.msra.mxu0 %v4212
    %4235 = vmatprep.subr.mxu0 0.0
    %4236 = vmatpush1.msra.mxu0 %v4213
    %4237 = vmatprep.subr.mxu0 0.0
    %4238 = vmatpush1.msra.mxu0 %v4214
    %4239 = vmatprep.subr.mxu0 0.0
    %4240 = vmatpush1.msra.mxu0 %v4215
    %4241 = vmatprep.subr.mxu0 0.0
    %4242 = vmatpush1.msra.mxu0 0.0
    %4243 = vmatprep.subr.mxu0 0.0
    %4244 = vmatpush1.msra.mxu0 0.0
    %4245 = vmatprep.subr.mxu0 0.0
    %4246 = vmatpush1.msra.mxu0 0.0
    %4247 = vmatprep.subr.mxu0 0.0
    %4248 = vmatpush1.msra.mxu0 0.0
    %4249 = vmatprep.subr.mxu0 0.0
    %4250 = vmatpush1.msra.mxu0 0.0
    %4251 = vmatprep.subr.mxu0 0.0
    %4252 = vmatpush1.msra.mxu0 0.0
    %4253 = vmatprep.subr.mxu0 0.0
    %4254 = vmatpush1.msra.mxu0 0.0
    %4255 = vmatprep.subr.mxu0 0.0
    %4256 = vmatpush1.msra.mxu0 0.0
    %4257 = vmatprep.subr.mxu0 0.0
    %4258 = vmatpush1.msra.mxu0 0.0
    %4259 = vmatprep.subr.mxu0 0.0
    %4260 = vmatpush1.msra.mxu0 0.0
    %4261 = vmatprep.subr.mxu0 0.0
    %4262 = vmatpush1.msra.mxu0 0.0
    %4263 = vmatprep.subr.mxu0 0.0
    %4264 = vmatpush1.msra.mxu0 0.0
    %4265 = vmatprep.subr.mxu0 0.0
    %4266 = vmatpush1.msra.mxu0 0.0
    %4267 = vmatprep.subr.mxu0 0.0
    %4268 = vmatpush1.msra.mxu0 0.0
    %4269 = vmatprep.subr.mxu0 0.0
    %4270 = vmatpush1.msra.mxu0 0.0
    %4271 = vmatprep.subr.mxu0 0.0
    %4272 = vmatpush1.msra.mxu0 0.0
    %4273 = vmatprep.subr.mxu0 0.0
    %4274 = vmatpush1.msra.mxu0 0.0
    %4275 = vmatprep.subr.mxu0 0.0
    %4276 = vmatpush1.msra.mxu0 0.0
    %4277 = vmatprep.subr.mxu0 0.0
    %4278 = vmatpush1.msra.mxu0 0.0
    %4279 = vmatprep.subr.mxu0 0.0
    %4280 = vmatpush1.msra.mxu0 0.0
    %4281 = vmatprep.subr.mxu0 0.0
    %4282 = vmatpush1.msra.mxu0 0.0
    %4283 = vmatprep.subr.mxu0 0.0
    %4284 = vmatpush1.msra.mxu0 0.0
    %4285 = vmatprep.subr.mxu0 0.0
    %4286 = vmatpush1.msra.mxu0 0.0
    %4287 = vmatprep.subr.mxu0 0.0
    %4288 = vmatpush1.msra.mxu0 0.0
    %4289 = vmatprep.subr.mxu0 0.0
    %4290 = vmatpush1.msra.mxu0 0.0
    %4291 = vmatprep.subr.mxu0 0.0
    %4292 = vmatpush1.msra.mxu0 0.0
    %4293 = vmatprep.subr.mxu0 0.0
    %4294 = vmatpush1.msra.mxu0 0.0
    %4295 = vmatprep.subr.mxu0 0.0
    %4296 = vmatpush1.msra.mxu0 0.0
    %4297 = vmatprep.mubr.f32.mxu0 0.0
    %4298 = vmatmul.mubr.f32.gmra.mrb[0].mxu0 %v4222
    %v4299 = vpop.f32.mrb[0].mxu0
    %v4300 = vadd.f32 %v4220, %v4299
    %v4301 = vpop.f32.mrb[0].mxu0
    %4302 = vmatprep.mubr.f32.mxu0 0.0
    %4303 = vmatmul.mubr.f32.gmra.mrb[0].mxu0 %v4225
    %v4304 = vpop.f32.mrb[0].mxu0
    %v4305 = vadd.f32 %v4220, %v4304
    %v4306 = vpop.f32.mrb[0].mxu0
    %4307 = vmatprep.mubr.f32.mxu0 0.0
    %4308 = vmatmul.mubr.f32.gmra.mrb[0].mxu0 %v4228
    %v4309 = vpop.f32.mrb[0].mxu0
    %v4310 = vadd.f32 %v4220, %v4309
    %v4311 = vpop.f32.mrb[0].mxu0
    %4312 = vmatprep.mubr.f32.mxu0 0.0
    %4313 = vmatmul.mubr.f32.gmra.mrb[0].mxu0 %v4231
    %v4314 = vpop.f32.mrb[0].mxu0
    %v4315 = vadd.f32 %v4220, %v4314
    %v4316 = vpop.f32.mrb[0].mxu0
    %4317 = vdwg.mxu0
    %v4318 = vadd.f32 %v4300, %v2518
    %v4319 = vadd.f32 %v4305, %v2519
    %v4320 = vadd.f32 %v4310, %v2520
    %v4321 = vadd.f32 %v4315, %v2521
    %v4322 = vld [vmem:[#allocation2 + $0x190] sm:$0x1]
    %v4323 = vld [vmem:[#allocation2 + $0x198] sm:$0x1]
    %v4324 = vsel %vm220, %v4318, 0.0
    %4325 = vadd.xlane.f32.xlu0 %v4324
    %v4326 = vpop.xlane.xlu0 %4325
    %v4327 = vsel %vm220, %v4319, 0.0
    %4328 = vadd.xlane.f32.xlu0 %v4327
    %v4329 = vpop.xlane.xlu0 %4328
    %v4330 = vsel %vm220, %v4320, 0.0
    %4331 = vadd.xlane.f32.xlu0 %v4330
    %v4332 = vpop.xlane.xlu0 %4331
    %v4333 = vsel %vm220, %v4321, 0.0
    %4334 = vadd.xlane.f32.xlu0 %v4333
    %v4335 = vpop.xlane.xlu0 %4334
    %v4336 = vmul.f32 %v4326, %v233
    %v4337 = vmul.f32 %v4329, %v233
    %v4338 = vmul.f32 %v4332, %v233
    %v4339 = vmul.f32 %v4335, %v233
    %v4340 = vsub.f32 %v4318, %v4336
    %v4341 = vsub.f32 %v4319, %v4337
    %v4342 = vsub.f32 %v4320, %v4338
    %v4343 = vsub.f32 %v4321, %v4339
    %v4344 = vmul.f32 %v4340, %v4340
    %v4345 = vmul.f32 %v4341, %v4341
    %v4346 = vmul.f32 %v4342, %v4342
    %v4347 = vmul.f32 %v4343, %v4343
    %v4348 = vsel %vm220, %v4344, 0.0
    %4349 = vadd.xlane.f32.xlu0 %v4348
    %v4350 = vpop.xlane.xlu0 %4349
    %v4351 = vsel %vm220, %v4345, 0.0
    %4352 = vadd.xlane.f32.xlu0 %v4351
    %v4353 = vpop.xlane.xlu0 %4352
    %v4354 = vsel %vm220, %v4346, 0.0
    %4355 = vadd.xlane.f32.xlu0 %v4354
    %v4356 = vpop.xlane.xlu0 %4355
    %v4357 = vsel %vm220, %v4347, 0.0
    %4358 = vadd.xlane.f32.xlu0 %v4357
    %v4359 = vpop.xlane.xlu0 %4358
    %v4360 = vmul.f32 %v4350, %v233
    %v4361 = vmul.f32 %v4353, %v233
    %v4362 = vmul.f32 %v4356, %v233
    %v4363 = vmul.f32 %v4359, %v233
    %v4364 = vadd.f32 %v4360, 1e-12
    %v4365 = vadd.f32 %v4361, 1e-12
    %v4366 = vadd.f32 %v4362, 1e-12
    %v4367 = vadd.f32 %v4363, 1e-12
    %v4368 = vrsqrt.pop %v4364
    %v4369 = vrsqrt.pop %v4365
    %v4370 = vrsqrt.pop %v4366
    %v4371 = vrsqrt.pop %v4367
    %v4372 = vmul.f32 %v4340, %v4368
    %v4373 = vmul.f32 %v4341, %v4369
    %v4374 = vmul.f32 %v4342, %v4370
    %v4375 = vmul.f32 %v4343, %v4371
    %v4376 = vlaneseq
    %v4377 = vshrl.u32 %v4376, 7
    %v4378 = vsub.s32 0, %v4377
    %v4379 = vrot.slane %v4322, %v4378
    %v4380 = vmul.f32 %v4372, %v4379
    %v4381 = vmul.f32 %v4373, %v4379
    %v4382 = vmul.f32 %v4374, %v4379
    %v4383 = vmul.f32 %v4375, %v4379
    %v4384 = vlaneseq
    %v4385 = vshrl.u32 %v4384, 7
    %v4386 = vsub.s32 0, %v4385
    %v4387 = vrot.slane %v4323, %v4386
    %v4388 = vadd.f32 %v4380, %v4387
    %v4389 = vadd.f32 %v4381, %v4387
    %v4390 = vadd.f32 %v4382, %v4387
    %v4391 = vadd.f32 %v4383, %v4387
    %v4392 = vld [vmem:[#allocation2 + $0x1a0] sm:$0xff]
    %v4393 = vld [vmem:[#allocation2 + $0x1a8] sm:$0xff]
    %v4394 = vld [vmem:[#allocation2 + $0x1b0] sm:$0xff]
    %v4395 = vld [vmem:[#allocation2 + $0x1b8] sm:$0xff]
    %v4396 = vld [vmem:[#allocation2 + $0x1c0] sm:$0x1]
    %v4397 = vlaneseq
    %v4398 = vshrl.u32 %v4397, 7
    %v4399 = vsub.s32 0, %v4398
    %v4400 = vrot.slane %v4396, %v4399
    %v4402 = vsel %vm220, %v4388, 0
    %v4405 = vsel %vm220, %v4389, 0
    %v4408 = vsel %vm220, %v4390, 0
    %v4411 = vsel %vm220, %v4391, 0
    %4413 = vmatprep.subr.mxu0 0.0
    %4414 = vmatpush1.msra.mxu0 %v4392
    %4415 = vmatprep.subr.mxu0 0.0
    %4416 = vmatpush1.msra.mxu0 %v4393
    %4417 = vmatprep.subr.mxu0 0.0
    %4418 = vmatpush1.msra.mxu0 %v4394
    %4419 = vmatprep.subr.mxu0 0.0
    %4420 = vmatpush1.msra.mxu0 %v4395
    %4421 = vmatprep.subr.mxu0 0.0
    %4422 = vmatpush1.msra.mxu0 0.0
    %4423 = vmatprep.subr.mxu0 0.0
    %4424 = vmatpush1.msra.mxu0 0.0
    %4425 = vmatprep.subr.mxu0 0.0
    %4426 = vmatpush1.msra.mxu0 0.0
    %4427 = vmatprep.subr.mxu0 0.0
    %4428 = vmatpush1.msra.mxu0 0.0
    %4429 = vmatprep.subr.mxu0 0.0
    %4430 = vmatpush1.msra.mxu0 0.0
    %4431 = vmatprep.subr.mxu0 0.0
    %4432 = vmatpush1.msra.mxu0 0.0
    %4433 = vmatprep.subr.mxu0 0.0
    %4434 = vmatpush1.msra.mxu0 0.0
    %4435 = vmatprep.subr.mxu0 0.0
    %4436 = vmatpush1.msra.mxu0 0.0
    %4437 = vmatprep.subr.mxu0 0.0
    %4438 = vmatpush1.msra.mxu0 0.0
    %4439 = vmatprep.subr.mxu0 0.0
    %4440 = vmatpush1.msra.mxu0 0.0
    %4441 = vmatprep.subr.mxu0 0.0
    %4442 = vmatpush1.msra.mxu0 0.0
    %4443 = vmatprep.subr.mxu0 0.0
    %4444 = vmatpush1.msra.mxu0 0.0
    %4445 = vmatprep.subr.mxu0 0.0
    %4446 = vmatpush1.msra.mxu0 0.0
    %4447 = vmatprep.subr.mxu0 0.0
    %4448 = vmatpush1.msra.mxu0 0.0
    %4449 = vmatprep.subr.mxu0 0.0
    %4450 = vmatpush1.msra.mxu0 0.0
    %4451 = vmatprep.subr.mxu0 0.0
    %4452 = vmatpush1.msra.mxu0 0.0
    %4453 = vmatprep.subr.mxu0 0.0
    %4454 = vmatpush1.msra.mxu0 0.0
    %4455 = vmatprep.subr.mxu0 0.0
    %4456 = vmatpush1.msra.mxu0 0.0
    %4457 = vmatprep.subr.mxu0 0.0
    %4458 = vmatpush1.msra.mxu0 0.0
    %4459 = vmatprep.subr.mxu0 0.0
    %4460 = vmatpush1.msra.mxu0 0.0
    %4461 = vmatprep.subr.mxu0 0.0
    %4462 = vmatpush1.msra.mxu0 0.0
    %4463 = vmatprep.subr.mxu0 0.0
    %4464 = vmatpush1.msra.mxu0 0.0
    %4465 = vmatprep.subr.mxu0 0.0
    %4466 = vmatpush1.msra.mxu0 0.0
    %4467 = vmatprep.subr.mxu0 0.0
    %4468 = vmatpush1.msra.mxu0 0.0
    %4469 = vmatprep.subr.mxu0 0.0
    %4470 = vmatpush1.msra.mxu0 0.0
    %4471 = vmatprep.subr.mxu0 0.0
    %4472 = vmatpush1.msra.mxu0 0.0
    %4473 = vmatprep.subr.mxu0 0.0
    %4474 = vmatpush1.msra.mxu0 0.0
    %4475 = vmatprep.subr.mxu0 0.0
    %4476 = vmatpush1.msra.mxu0 0.0
    %4477 = vmatprep.mubr.f32.mxu0 0.0
    %4478 = vmatmul.mubr.f32.gmra.mrb[0].mxu0 %v4402
    %v4479 = vpop.f32.mrb[0].mxu0
    %v4480 = vadd.f32 %v4400, %v4479
    %v4481 = vpop.f32.mrb[0].mxu0
    %4482 = vmatprep.mubr.f32.mxu0 0.0
    %4483 = vmatmul.mubr.f32.gmra.mrb[0].mxu0 %v4405
    %v4484 = vpop.f32.mrb[0].mxu0
    %v4485 = vadd.f32 %v4400, %v4484
    %v4486 = vpop.f32.mrb[0].mxu0
    %4487 = vmatprep.mubr.f32.mxu0 0.0
    %4488 = vmatmul.mubr.f32.gmra.mrb[0].mxu0 %v4408
    %v4489 = vpop.f32.mrb[0].mxu0
    %v4490 = vadd.f32 %v4400, %v4489
    %v4491 = vpop.f32.mrb[0].mxu0
    %4492 = vmatprep.mubr.f32.mxu0 0.0
    %4493 = vmatmul.mubr.f32.gmra.mrb[0].mxu0 %v4411
    %v4494 = vpop.f32.mrb[0].mxu0
    %v4495 = vadd.f32 %v4400, %v4494
    %v4496 = vpop.f32.mrb[0].mxu0
    %4497 = vdwg.mxu0
    %v4498 = vmul.f32 %v4480, 0.5
    %v4499 = vmul.f32 %v4485, 0.5
    %v4500 = vmul.f32 %v4490, 0.5
    %v4501 = vmul.f32 %v4495, 0.5
    %v4502 = vmul.f32 %v4480, 0.70710677
    %v4503 = vmul.f32 %v4485, 0.70710677
    %v4504 = vmul.f32 %v4490, 0.70710677
    %v4505 = vmul.f32 %v4495, 0.70710677
    %v4506 = verf.f32.pop %v4502
    %v4507 = verf.f32.pop %v4503
    %v4508 = verf.f32.pop %v4504
    %v4509 = verf.f32.pop %v4505
    %v4510 = vadd.f32 %v4506, 1.0
    %v4511 = vadd.f32 %v4507, 1.0
    %v4512 = vadd.f32 %v4508, 1.0
    %v4513 = vadd.f32 %v4509, 1.0
    %v4514 = vmul.f32 %v4498, %v4510
    %v4515 = vmul.f32 %v4499, %v4511
    %v4516 = vmul.f32 %v4500, %v4512
    %v4517 = vmul.f32 %v4501, %v4513
    %v4518 = vld [vmem:[#allocation2 + $0x1c8] sm:$0xff]
    %v4519 = vld [vmem:[#allocation2 + $0x1d0] sm:$0xff]
    %v4520 = vld [vmem:[#allocation2 + $0x1d8] sm:$0xff]
    %v4521 = vld [vmem:[#allocation2 + $0x1e0] sm:$0xff]
    %v4522 = vld [vmem:[#allocation2 + $0x1e8] sm:$0xff]
    %v4523 = vld [vmem:[#allocation2 + $0x1f0] sm:$0xff]
    %v4524 = vld [vmem:[#allocation2 + $0x1f8] sm:$0xff]
    %v4525 = vld [vmem:[#allocation2 + $0x200] sm:$0xff]
    %v4526 = vld [vmem:[#allocation2 + $0x208] sm:$0x1]
    %v4527 = vlaneseq
    %v4528 = vshrl.u32 %v4527, 7
    %v4529 = vsub.s32 0, %v4528
    %v4530 = vrot.slane %v4526, %v4529
    %v4532 = vsel %vm2350, %v4514, 0
    %v4535 = vsel %vm2350, %v4515, 0
    %v4538 = vsel %vm2350, %v4516, 0
    %v4541 = vsel %vm2350, %v4517, 0
    %4543 = vmatprep.subr.mxu0 0.0
    %4544 = vmatpush1.msra.mxu0 %v4518
    %4545 = vmatprep.subr.mxu0 0.0
    %4546 = vmatpush1.msra.mxu0 %v4519
    %4547 = vmatprep.subr.mxu0 0.0
    %4548 = vmatpush1.msra.mxu0 %v4520
    %4549 = vmatprep.subr.mxu0 0.0
    %4550 = vmatpush1.msra.mxu0 %v4521
    %4551 = vmatprep.subr.mxu0 0.0
    %4552 = vmatpush1.msra.mxu0 %v4522
    %4553 = vmatprep.subr.mxu0 0.0
    %4554 = vmatpush1.msra.mxu0 %v4523
    %4555 = vmatprep.subr.mxu0 0.0
    %4556 = vmatpush1.msra.mxu0 %v4524
    %4557 = vmatprep.subr.mxu0 0.0
    %4558 = vmatpush1.msra.mxu0 %v4525
    %4559 = vmatprep.subr.mxu0 0.0
    %4560 = vmatpush1.msra.mxu0 0.0
    %4561 = vmatprep.subr.mxu0 0.0
    %4562 = vmatpush1.msra.mxu0 0.0
    %4563 = vmatprep.subr.mxu0 0.0
    %4564 = vmatpush1.msra.mxu0 0.0
    %4565 = vmatprep.subr.mxu0 0.0
    %4566 = vmatpush1.msra.mxu0 0.0
    %4567 = vmatprep.subr.mxu0 0.0
    %4568 = vmatpush1.msra.mxu0 0.0
    %4569 = vmatprep.subr.mxu0 0.0
    %4570 = vmatpush1.msra.mxu0 0.0
    %4571 = vmatprep.subr.mxu0 0.0
    %4572 = vmatpush1.msra.mxu0 0.0
    %4573 = vmatprep.subr.mxu0 0.0
    %4574 = vmatpush1.msra.mxu0 0.0
    %4575 = vmatprep.subr.mxu0 0.0
    %4576 = vmatpush1.msra.mxu0 0.0
    %4577 = vmatprep.subr.mxu0 0.0
    %4578 = vmatpush1.msra.mxu0 0.0
    %4579 = vmatprep.subr.mxu0 0.0
    %4580 = vmatpush1.msra.mxu0 0.0
    %4581 = vmatprep.subr.mxu0 0.0
    %4582 = vmatpush1.msra.mxu0 0.0
    %4583 = vmatprep.subr.mxu0 0.0
    %4584 = vmatpush1.msra.mxu0 0.0
    %4585 = vmatprep.subr.mxu0 0.0
    %4586 = vmatpush1.msra.mxu0 0.0
    %4587 = vmatprep.subr.mxu0 0.0
    %4588 = vmatpush1.msra.mxu0 0.0
    %4589 = vmatprep.subr.mxu0 0.0
    %4590 = vmatpush1.msra.mxu0 0.0
    %4591 = vmatprep.subr.mxu0 0.0
    %4592 = vmatpush1.msra.mxu0 0.0
    %4593 = vmatprep.subr.mxu0 0.0
    %4594 = vmatpush1.msra.mxu0 0.0
    %4595 = vmatprep.subr.mxu0 0.0
    %4596 = vmatpush1.msra.mxu0 0.0
    %4597 = vmatprep.subr.mxu0 0.0
    %4598 = vmatpush1.msra.mxu0 0.0
    %4599 = vmatprep.subr.mxu0 0.0
    %4600 = vmatpush1.msra.mxu0 0.0
    %4601 = vmatprep.subr.mxu0 0.0
    %4602 = vmatpush1.msra.mxu0 0.0
    %4603 = vmatprep.subr.mxu0 0.0
    %4604 = vmatpush1.msra.mxu0 0.0
    %4605 = vmatprep.subr.mxu0 0.0
    %4606 = vmatpush1.msra.mxu0 0.0
    %4607 = vmatprep.mubr.f32.mxu0 0.0
    %4608 = vmatmul.mubr.f32.gmra.mrb[0].mxu0 %v4532
    %v4609 = vpop.f32.mrb[0].mxu0
    %v4610 = vadd.f32 %v4530, %v4609
    %v4611 = vpop.f32.mrb[0].mxu0
    %4612 = vmatprep.mubr.f32.mxu0 0.0
    %4613 = vmatmul.mubr.f32.gmra.mrb[0].mxu0 %v4535
    %v4614 = vpop.f32.mrb[0].mxu0
    %v4615 = vadd.f32 %v4530, %v4614
    %v4616 = vpop.f32.mrb[0].mxu0
    %4617 = vmatprep.mubr.f32.mxu0 0.0
    %4618 = vmatmul.mubr.f32.gmra.mrb[0].mxu0 %v4538
    %v4619 = vpop.f32.mrb[0].mxu0
    %v4620 = vadd.f32 %v4530, %v4619
    %v4621 = vpop.f32.mrb[0].mxu0
    %4622 = vmatprep.mubr.f32.mxu0 0.0
    %4623 = vmatmul.mubr.f32.gmra.mrb[0].mxu0 %v4541
    %v4624 = vpop.f32.mrb[0].mxu0
    %v4625 = vadd.f32 %v4530, %v4624
    %v4626 = vpop.f32.mrb[0].mxu0
    %4627 = vdwg.mxu0
    %v4628 = vadd.f32 %v4610, %v4388
    %v4629 = vadd.f32 %v4615, %v4389
    %v4630 = vadd.f32 %v4620, %v4390
    %v4631 = vadd.f32 %v4625, %v4391
    %v4632 = vld [vmem:[#allocation2 + $0x210] sm:$0x1]
    %v4633 = vld [vmem:[#allocation2 + $0x218] sm:$0x1]
    %v4634 = vsel %vm220, %v4628, 0.0
    %4635 = vadd.xlane.f32.xlu0 %v4634
    %v4636 = vpop.xlane.xlu0 %4635
    %v4637 = vsel %vm220, %v4629, 0.0
    %4638 = vadd.xlane.f32.xlu0 %v4637
    %v4639 = vpop.xlane.xlu0 %4638
    %v4640 = vsel %vm220, %v4630, 0.0
    %4641 = vadd.xlane.f32.xlu0 %v4640
    %v4642 = vpop.xlane.xlu0 %4641
    %v4643 = vsel %vm220, %v4631, 0.0
    %4644 = vadd.xlane.f32.xlu0 %v4643
    %v4645 = vpop.xlane.xlu0 %4644
    %v4646 = vmul.f32 %v4636, %v233
    %v4647 = vmul.f32 %v4639, %v233
    %v4648 = vmul.f32 %v4642, %v233
    %v4649 = vmul.f32 %v4645, %v233
    %v4650 = vsub.f32 %v4628, %v4646
    %v4651 = vsub.f32 %v4629, %v4647
    %v4652 = vsub.f32 %v4630, %v4648
    %v4653 = vsub.f32 %v4631, %v4649
    %v4654 = vmul.f32 %v4650, %v4650
    %v4655 = vmul.f32 %v4651, %v4651
    %v4656 = vmul.f32 %v4652, %v4652
    %v4657 = vmul.f32 %v4653, %v4653
    %v4658 = vsel %vm220, %v4654, 0.0
    %4659 = vadd.xlane.f32.xlu0 %v4658
    %v4660 = vpop.xlane.xlu0 %4659
    %v4661 = vsel %vm220, %v4655, 0.0
    %4662 = vadd.xlane.f32.xlu0 %v4661
    %v4663 = vpop.xlane.xlu0 %4662
    %v4664 = vsel %vm220, %v4656, 0.0
    %4665 = vadd.xlane.f32.xlu0 %v4664
    %v4666 = vpop.xlane.xlu0 %4665
    %v4667 = vsel %vm220, %v4657, 0.0
    %4668 = vadd.xlane.f32.xlu0 %v4667
    %v4669 = vpop.xlane.xlu0 %4668
    %v4670 = vmul.f32 %v4660, %v233
    %v4671 = vmul.f32 %v4663, %v233
    %v4672 = vmul.f32 %v4666, %v233
    %v4673 = vmul.f32 %v4669, %v233
    %v4674 = vadd.f32 %v4670, 1e-12
    %v4675 = vadd.f32 %v4671, 1e-12
    %v4676 = vadd.f32 %v4672, 1e-12
    %v4677 = vadd.f32 %v4673, 1e-12
    %v4678 = vrsqrt.pop %v4674
    %v4679 = vrsqrt.pop %v4675
    %v4680 = vrsqrt.pop %v4676
    %v4681 = vrsqrt.pop %v4677
    %v4682 = vmul.f32 %v4650, %v4678
    %v4683 = vmul.f32 %v4651, %v4679
    %v4684 = vmul.f32 %v4652, %v4680
    %v4685 = vmul.f32 %v4653, %v4681
    %v4686 = vlaneseq
    %v4687 = vshrl.u32 %v4686, 7
    %v4688 = vsub.s32 0, %v4687
    %v4689 = vrot.slane %v4632, %v4688
    %v4690 = vmul.f32 %v4682, %v4689
    %v4691 = vmul.f32 %v4683, %v4689
    %v4692 = vmul.f32 %v4684, %v4689
    %v4693 = vmul.f32 %v4685, %v4689
    %v4694 = vlaneseq
    %v4695 = vshrl.u32 %v4694, 7
    %v4696 = vsub.s32 0, %v4695
    %v4697 = vrot.slane %v4633, %v4696
    %v4698 = vadd.f32 %v4690, %v4697
    %v4699 = vadd.f32 %v4691, %v4697
    %v4700 = vadd.f32 %v4692, %v4697
    %v4701 = vadd.f32 %v4693, %v4697
    %4702 = vset.pattern.permute.xlu0 2
    %4703 = vperm.xlu0 %4702, %v28
    %v4704 = vpop.permute.xlu0 %4703
    %vm4705 = vcmp.eq.s32.totalorder %v33, %v4704
    %v4706 = vsel %vm4705, 1.0, 0.0
    %v4708 = vsel %vm220, %v4706, 0
    %4710 = vmatprep.subr.mxu0 0.0
    %4711 = vmatpush1.msra.mxu0 %v4698
    %4712 = vmatprep.subr.mxu0 0.0
    %4713 = vmatpush1.msra.mxu0 %v4699
    %4714 = vmatprep.subr.mxu0 0.0
    %4715 = vmatpush1.msra.mxu0 %v4700
    %4716 = vmatprep.subr.mxu0 0.0
    %4717 = vmatpush1.msra.mxu0 %v4701
    %4718 = vmatprep.subr.mxu0 0.0
    %4719 = vmatpush1.msra.mxu0 0.0
    %4720 = vmatprep.subr.mxu0 0.0
    %4721 = vmatpush1.msra.mxu0 0.0
    %4722 = vmatprep.subr.mxu0 0.0
    %4723 = vmatpush1.msra.mxu0 0.0
    %4724 = vmatprep.subr.mxu0 0.0
    %4725 = vmatpush1.msra.mxu0 0.0
    %4726 = vmatprep.subr.mxu0 0.0
    %4727 = vmatpush1.msra.mxu0 0.0
    %4728 = vmatprep.subr.mxu0 0.0
    %4729 = vmatpush1.msra.mxu0 0.0
    %4730 = vmatprep.subr.mxu0 0.0
    %4731 = vmatpush1.msra.mxu0 0.0
    %4732 = vmatprep.subr.mxu0 0.0
    %4733 = vmatpush1.msra.mxu0 0.0
    %4734 = vmatprep.subr.mxu0 0.0
    %4735 = vmatpush1.msra.mxu0 0.0
    %4736 = vmatprep.subr.mxu0 0.0
    %4737 = vmatpush1.msra.mxu0 0.0
    %4738 = vmatprep.subr.mxu0 0.0
    %4739 = vmatpush1.msra.mxu0 0.0
    %4740 = vmatprep.subr.mxu0 0.0
    %4741 = vmatpush1.msra.mxu0 0.0
    %4742 = vmatprep.subr.mxu0 0.0
    %4743 = vmatpush1.msra.mxu0 0.0
    %4744 = vmatprep.subr.mxu0 0.0
    %4745 = vmatpush1.msra.mxu0 0.0
    %4746 = vmatprep.subr.mxu0 0.0
    %4747 = vmatpush1.msra.mxu0 0.0
    %4748 = vmatprep.subr.mxu0 0.0
    %4749 = vmatpush1.msra.mxu0 0.0
    %4750 = vmatprep.subr.mxu0 0.0
    %4751 = vmatpush1.msra.mxu0 0.0
    %4752 = vmatprep.subr.mxu0 0.0
    %4753 = vmatpush1.msra.mxu0 0.0
    %4754 = vmatprep.subr.mxu0 0.0
    %4755 = vmatpush1.msra.mxu0 0.0
    %4756 = vmatprep.subr.mxu0 0.0
    %4757 = vmatpush1.msra.mxu0 0.0
    %4758 = vmatprep.subr.mxu0 0.0
    %4759 = vmatpush1.msra.mxu0 0.0
    %4760 = vmatprep.subr.mxu0 0.0
    %4761 = vmatpush1.msra.mxu0 0.0
    %4762 = vmatprep.subr.mxu0 0.0
    %4763 = vmatpush1.msra.mxu0 0.0
    %4764 = vmatprep.subr.mxu0 0.0
    %4765 = vmatpush1.msra.mxu0 0.0
    %4766 = vmatprep.subr.mxu0 0.0
    %4767 = vmatpush1.msra.mxu0 0.0
    %4768 = vmatprep.subr.mxu0 0.0
    %4769 = vmatpush1.msra.mxu0 0.0
    %4770 = vmatprep.subr.mxu0 0.0
    %4771 = vmatpush1.msra.mxu0 0.0
    %4772 = vmatprep.subr.mxu0 0.0
    %4773 = vmatpush1.msra.mxu0 0.0
    %4774 = vmatprep.mubr.f32.mxu0 0.0
    %4775 = vmatmul.mubr.f32.gmra.mrb[0].mxu0 %v4708
    %v4776 = vpop.f32.mrb[0].mxu0
    %v4777 = vadd.f32 0.0, %v4776
    %v4778 = vpop.f32.mrb[0].mxu0
    %4779 = vdwg.mxu0
    %v4780 = vld [vmem:[#allocation2 + $0x220] sm:$0xff]
    %v4781 = vld [vmem:[#allocation2 + $0x228] sm:$0xff]
    %v4782 = vld [vmem:[#allocation2 + $0x230] sm:$0xff]
    %v4783 = vld [vmem:[#allocation2 + $0x238] sm:$0xff]
    %v4784 = vld [vmem:[#allocation2 + $0x240] sm:$0x1]
    %v4785 = vlaneseq
    %v4786 = vshrl.u32 %v4785, 7
    %v4787 = vsub.s32 0, %v4786
    %v4788 = vrot.slane %v4784, %v4787
    %v4790 = vsel %vm220, %v4777, 0
    %4792 = vmatprep.subr.mxu0 0.0
    %4793 = vmatpush1.msra.mxu0 %v4780
    %4794 = vmatprep.subr.mxu0 0.0
    %4795 = vmatpush1.msra.mxu0 %v4781
    %4796 = vmatprep.subr.mxu0 0.0
    %4797 = vmatpush1.msra.mxu0 %v4782
    %4798 = vmatprep.subr.mxu0 0.0
    %4799 = vmatpush1.msra.mxu0 %v4783
    %4800 = vmatprep.subr.mxu0 0.0
    %4801 = vmatpush1.msra.mxu0 0.0
    %4802 = vmatprep.subr.mxu0 0.0
    %4803 = vmatpush1.msra.mxu0 0.0
    %4804 = vmatprep.subr.mxu0 0.0
    %4805 = vmatpush1.msra.mxu0 0.0
    %4806 = vmatprep.subr.mxu0 0.0
    %4807 = vmatpush1.msra.mxu0 0.0
    %4808 = vmatprep.subr.mxu0 0.0
    %4809 = vmatpush1.msra.mxu0 0.0
    %4810 = vmatprep.subr.mxu0 0.0
    %4811 = vmatpush1.msra.mxu0 0.0
    %4812 = vmatprep.subr.mxu0 0.0
    %4813 = vmatpush1.msra.mxu0 0.0
    %4814 = vmatprep.subr.mxu0 0.0
    %4815 = vmatpush1.msra.mxu0 0.0
    %4816 = vmatprep.subr.mxu0 0.0
    %4817 = vmatpush1.msra.mxu0 0.0
    %4818 = vmatprep.subr.mxu0 0.0
    %4819 = vmatpush1.msra.mxu0 0.0
    %4820 = vmatprep.subr.mxu0 0.0
    %4821 = vmatpush1.msra.mxu0 0.0
    %4822 = vmatprep.subr.mxu0 0.0
    %4823 = vmatpush1.msra.mxu0 0.0
    %4824 = vmatprep.subr.mxu0 0.0
    %4825 = vmatpush1.msra.mxu0 0.0
    %4826 = vmatprep.subr.mxu0 0.0
    %4827 = vmatpush1.msra.mxu0 0.0
    %4828 = vmatprep.subr.mxu0 0.0
    %4829 = vmatpush1.msra.mxu0 0.0
    %4830 = vmatprep.subr.mxu0 0.0
    %4831 = vmatpush1.msra.mxu0 0.0
    %4832 = vmatprep.subr.mxu0 0.0
    %4833 = vmatpush1.msra.mxu0 0.0
    %4834 = vmatprep.subr.mxu0 0.0
    %4835 = vmatpush1.msra.mxu0 0.0
    %4836 = vmatprep.subr.mxu0 0.0
    %4837 = vmatpush1.msra.mxu0 0.0
    %4838 = vmatprep.subr.mxu0 0.0
    %4839 = vmatpush1.msra.mxu0 0.0
    %4840 = vmatprep.subr.mxu0 0.0
    %4841 = vmatpush1.msra.mxu0 0.0
    %4842 = vmatprep.subr.mxu0 0.0
    %4843 = vmatpush1.msra.mxu0 0.0
    %4844 = vmatprep.subr.mxu0 0.0
    %4845 = vmatpush1.msra.mxu0 0.0
    %4846 = vmatprep.subr.mxu0 0.0
    %4847 = vmatpush1.msra.mxu0 0.0
    %4848 = vmatprep.subr.mxu0 0.0
    %4849 = vmatpush1.msra.mxu0 0.0
    %4850 = vmatprep.subr.mxu0 0.0
    %4851 = vmatpush1.msra.mxu0 0.0
    %4852 = vmatprep.subr.mxu0 0.0
    %4853 = vmatpush1.msra.mxu0 0.0
    %4854 = vmatprep.subr.mxu0 0.0
    %4855 = vmatpush1.msra.mxu0 0.0
    %4856 = vmatprep.mubr.f32.mxu0 0.0
    %4857 = vmatmul.mubr.f32.gmra.mrb[0].mxu0 %v4790
    %v4858 = vpop.f32.mrb[0].mxu0
    %v4859 = vadd.f32 %v4788, %v4858
    %v4860 = vpop.f32.mrb[0].mxu0
    %4861 = vdwg.mxu0
    %v4862 = vtanh.pop %v4859
    %v4863 = vld [vmem:[#allocation2 + $0x248] sm:$0xff]
    %v4864 = vld [vmem:[#allocation2 + $0x250] sm:$0xff]
    %v4865 = vld [vmem:[#allocation2 + $0x258] sm:$0xff]
    %v4866 = vld [vmem:[#allocation2 + $0x260] sm:$0xff]
    %v4867 = vld [vmem:[#allocation2 + $0x268] sm:$0x1]
    %v4868 = vlaneseq
    %v4869 = vshrl.u32 %v4868, 7
    %v4870 = vsub.s32 0, %v4869
    %v4871 = vrot.slane %v4867, %v4870
    %4872 = vmatprep.subr.mxu0 0.0
    %4873 = vmatpush1.msra.mxu0 %v4863
    %4874 = vmatprep.subr.mxu0 0.0
    %4875 = vmatpush1.msra.mxu0 %v4864
    %4876 = vmatprep.subr.mxu0 0.0
    %4877 = vmatpush1.msra.mxu0 %v4865
    %4878 = vmatprep.subr.mxu0 0.0
    %4879 = vmatpush1.msra.mxu0 %v4866
    %4880 = vmatprep.subr.mxu0 0.0
    %4881 = vmatpush1.msra.mxu0 0.0
    %4882 = vmatprep.subr.mxu0 0.0
    %4883 = vmatpush1.msra.mxu0 0.0
    %4884 = vmatprep.subr.mxu0 0.0
    %4885 = vmatpush1.msra.mxu0 0.0
    %4886 = vmatprep.subr.mxu0 0.0
    %4887 = vmatpush1.msra.mxu0 0.0
    %4888 = vmatprep.subr.mxu0 0.0
    %4889 = vmatpush1.msra.mxu0 0.0
    %4890 = vmatprep.subr.mxu0 0.0
    %4891 = vmatpush1.msra.mxu0 0.0
    %4892 = vmatprep.subr.mxu0 0.0
    %4893 = vmatpush1.msra.mxu0 0.0
    %4894 = vmatprep.subr.mxu0 0.0
    %4895 = vmatpush1.msra.mxu0 0.0
    %4896 = vmatprep.subr.mxu0 0.0
    %4897 = vmatpush1.msra.mxu0 0.0
    %4898 = vmatprep.subr.mxu0 0.0
    %4899 = vmatpush1.msra.mxu0 0.0
    %4900 = vmatprep.subr.mxu0 0.0
    %4901 = vmatpush1.msra.mxu0 0.0
    %4902 = vmatprep.subr.mxu0 0.0
    %4903 = vmatpush1.msra.mxu0 0.0
    %4904 = vmatprep.subr.mxu0 0.0
    %4905 = vmatpush1.msra.mxu0 0.0
    %4906 = vmatprep.subr.mxu0 0.0
    %4907 = vmatpush1.msra.mxu0 0.0
    %4908 = vmatprep.subr.mxu0 0.0
    %4909 = vmatpush1.msra.mxu0 0.0
    %4910 = vmatprep.subr.mxu0 0.0
    %4911 = vmatpush1.msra.mxu0 0.0
    %4912 = vmatprep.subr.mxu0 0.0
    %4913 = vmatpush1.msra.mxu0 0.0
    %4914 = vmatprep.subr.mxu0 0.0
    %4915 = vmatpush1.msra.mxu0 0.0
    %4916 = vmatprep.subr.mxu0 0.0
    %4917 = vmatpush1.msra.mxu0 0.0
    %4918 = vmatprep.subr.mxu0 0.0
    %4919 = vmatpush1.msra.mxu0 0.0
    %4920 = vmatprep.subr.mxu0 0.0
    %4921 = vmatpush1.msra.mxu0 0.0
    %4922 = vmatprep.subr.mxu0 0.0
    %4923 = vmatpush1.msra.mxu0 0.0
    %4924 = vmatprep.subr.mxu0 0.0
    %4925 = vmatpush1.msra.mxu0 0.0
    %4926 = vmatprep.subr.mxu0 0.0
    %4927 = vmatpush1.msra.mxu0 0.0
    %4928 = vmatprep.subr.mxu0 0.0
    %4929 = vmatpush1.msra.mxu0 0.0
    %4930 = vmatprep.subr.mxu0 0.0
    %4931 = vmatpush1.msra.mxu0 0.0
    %4932 = vmatprep.subr.mxu0 0.0
    %4933 = vmatpush1.msra.mxu0 0.0
    %4934 = vmatprep.subr.mxu0 0.0
    %4935 = vmatpush1.msra.mxu0 0.0
    %4936 = vmatprep.mubr.f32.mxu0 0.0
    %4937 = vmatmul.mubr.f32.gmra.mrb[0].mxu0 %v4790
    %v4938 = vpop.f32.mrb[0].mxu0
    %v4939 = vadd.f32 %v4871, %v4938
    %v4940 = vpop.f32.mrb[0].mxu0
    %4941 = vdwg.mxu0
    %v4942 = vlaneseq
    %v4943 = vshrl.u32 %v4942, 7
    %vm4944 = vcmp.lt.s32.totalorder %v4943, 6
    %v4945 = vsel %vm4944, %v4777, %v4862
    %4947 = vrot.lane.b32.xlu0 %v4939, 32
    %v4948 = vpop.permute.xlu0 %4947
    %v4950 = vsel %vm220, %v4945, %v4948
    %v4951 = vsel %vm2350, %v4950, 0.0
    %4952 = vst [vmem:[%s3] sm:$0xff] %v4951
    // Predicated region
    $region18: #{encoder_forward.1} parent=1 // pred_check
      _
    $region19: #{encoder_forward.1} parent=1 // pred_check_branch
      %4954 = sbr.rel (0) target = $region21
    $region20: #{encoder_forward.1} parent=1 // pred_region
      _
    $region21: #{encoder_forward.1} parent=1 // pred_fallthru
      _
    // Predicated region
    $region22: #{encoder_forward.1} parent=1 // pred_check
      _
    $region23: #{encoder_forward.1} parent=1 // pred_check_branch
      %4956 = sbr.rel (0) target = $region25
    $region24: #{encoder_forward.1} parent=1 // pred_region
      _
    $region25: #{encoder_forward.1} parent=1 // pred_fallthru
      _
    %4957 = vsyncpa [#allocation3], 1

</llo_original>
